<compile_context>
chip_gen: v7x
topology: tpu7x:2x2x1
jax: 0.10.0
libtpu: 0.0.40
codegen_flags: <defaults>
</compile_context>

<pallas_src>
import numpy as np
import jax
import jax.numpy as jnp
from jax.experimental import pallas as pl
from jax.experimental.pallas import tpu as pltpu

# ---------------------------------------------------------------------------
# Module constants (match BSRBF_KANLayer defaults)
# ---------------------------------------------------------------------------
GRID_SIZE = 5
SPLINE_ORDER = 3
GRID_RANGE = (-1.5, 1.5)
NUM_BASES = GRID_SIZE + SPLINE_ORDER                     # 8 final bases / RBF grids
N0 = GRID_SIZE + 2 * SPLINE_ORDER                        # 11 order-0 b-spline bases
H = (GRID_RANGE[1] - GRID_RANGE[0]) / GRID_SIZE
RBF_DENOM = (GRID_RANGE[1] - GRID_RANGE[0]) / (NUM_BASES - 1)
LN_EPS = 1e-5

# knot / center values computed in f32 exactly as torch does.
_GRID1D_NP = (np.arange(-SPLINE_ORDER, GRID_SIZE + SPLINE_ORDER + 1,
                        dtype=np.float32) * np.float32(H)
              + np.float32(GRID_RANGE[0]))               # [12] knots
_RBF_CENTERS_NP = np.linspace(GRID_RANGE[0], GRID_RANGE[1], NUM_BASES,
                              dtype=np.float32)          # [8] centers

# Row layout of the per-layer packed "aux" constant array ([16, NG*din] f32).
AUX_ROWS = 16
R_GAMMA, R_BETA, R_TJ = 0, 1, 2
R_K0 = 3                                                  # 3 rows per level k
R_CENTERS = R_K0 + 3 * SPLINE_ORDER                       # == 12


def _round_up(a, b):
    return (a + b - 1) // b * b


def _choose_num_slots(din):
    """Number of packed grid slots NG: >= N0+1, lane-aligned (NG*din % 128==0)
    when achievable with <= 8 extra slots; otherwise the minimum (roll still
    works, just on an unaligned width)."""
    base = N0 + 1                                         # need slots 0..N0
    for ng in range(base, base + 9):
        if (ng * din) % 128 == 0:
            return ng
    return base


def _layer_aux_np(din, gamma, beta):
    """Pack gamma/beta + knots + per-level reciprocals + RBF centers into a
    single [AUX_ROWS, NG*din] f32 array (g-major lane layout: col = j*din+i)."""
    ng = _choose_num_slots(din)
    w = ng * din
    g = _GRID1D_NP
    aux = np.zeros((AUX_ROWS, w), np.float32)
    aux[R_GAMMA, :din] = np.asarray(gamma, np.float32).reshape(-1)
    aux[R_BETA, :din] = np.asarray(beta, np.float32).reshape(-1)

    def grid_row(off):
        vals = np.array([g[min(j + off, len(g) - 1)] for j in range(ng)],
                        np.float32)
        return np.repeat(vals, din)

    def inv_row(a_off, b_off):
        vals = np.zeros((ng,), np.float32)
        for j in range(ng):
            if j + b_off < len(g):
                vals[j] = np.float32(1.0) / (g[j + b_off] - g[j + a_off])
        return np.repeat(vals, din)

    aux[R_TJ] = grid_row(0)                               # t_j
    for k in range(1, SPLINE_ORDER + 1):
        r = R_K0 + 3 * (k - 1)
        aux[r + 0] = inv_row(0, k)                        # 1/(t_{j+k}-t_j)
        aux[r + 1] = grid_row(k + 1)                      # t_{j+k+1}
        aux[r + 2] = inv_row(1, k + 1)                    # 1/(t_{j+k+1}-t_{j+1})
    aux[R_CENTERS, :NUM_BASES * din] = np.repeat(_RBF_CENTERS_NP, din)
    return aux, ng


# ---------------------------------------------------------------------------
# In-kernel single-layer compute (lane-packed B-spline/RBF + merged matmul)
# ---------------------------------------------------------------------------
def _layer_compute(x, aux_ref, w_ref, din, ng):
    W = ng * din
    nb = NUM_BASES * din
    gamma = aux_ref[R_GAMMA:R_GAMMA + 1, :din]            # [1, din]
    beta = aux_ref[R_BETA:R_BETA + 1, :din]

    # LayerNorm (torch defaults: biased variance, eps=1e-5, affine), all f32.
    mean = jnp.mean(x, axis=-1, keepdims=True)
    var = jnp.mean(jnp.square(x - mean), axis=-1, keepdims=True)
    xn = (x - mean) * jax.lax.rsqrt(var + LN_EPS)
    xn = xn * gamma + beta

    # base branch activation: exact SiLU (no approx reciprocal -> no compounding
    # error across layers).
    act = xn / (1.0 + jnp.exp(-xn))                       # [TB, din]

    # g-major lane-packed slab: column j*din+i holds xn[:, i].
    xr = jnp.tile(xn, (1, ng))                            # [TB, W]
    shift = W - din                                       # roll fetching slot j+1

    # Order-0 bases via the "ge" trick (half the comparisons):
    #   bases0[j] = (x >= t_j) & !(x >= t_{j+1})
    tj = aux_ref[R_TJ:R_TJ + 1, :]                        # [1, W]
    ge = (xr >= tj).astype(jnp.float32)
    b = ge * (1.0 - pltpu.roll(ge, shift, 1))

    # Cox-de Boor recurrence: one wide elementwise op + one XLU roll per level.
    # Slots >= N0-k hold garbage that never feeds a valid slot (checked layout).
    xmg = xr - tj                                         # (x - t_j), level-invariant
    for k in range(1, SPLINE_ORDER + 1):
        r = R_K0 + 3 * (k - 1)
        inv_d = aux_ref[r:r + 1, :]
        g2 = aux_ref[r + 1:r + 2, :]
        inv_e = aux_ref[r + 2:r + 3, :]
        b = xmg * inv_d * b + (g2 - xr) * inv_e * pltpu.roll(b, shift, 1)

    # RBF over the 8 valid grid slots; add to b-spline bases.
    centers = aux_ref[R_CENTERS:R_CENTERS + 1, :nb]
    t = (xr[:, :nb] - centers) * np.float32(1.0 / RBF_DENOM)
    bsrbf = b[:, :nb] + jnp.exp(-(t * t))                 # [TB, 8*din]

    # Single merged MXU matmul: [bsrbf | act] @ [spline_wT ; base_wT].
    operand = jnp.concatenate([bsrbf, act], axis=-1).astype(jnp.bfloat16)
    return jnp.dot(operand, w_ref[...], preferred_element_type=jnp.float32)


def make_network_kernel(metas):
    def kernel(x_ref, *refs):
        o_ref = refs[-1]
        prm = refs[:-1]                                   # 2 refs per layer
        x = x_ref[...]
        for li, (din, ng) in enumerate(metas):
            x = _layer_compute(x, prm[2 * li], prm[2 * li + 1], din, ng)
        o_ref[...] = x
    return kernel


# ---------------------------------------------------------------------------
# Parameter construction (mirrors BSRBF_KANLayer.__init__)
# ---------------------------------------------------------------------------
def init_layer(key, din, dout):
    k1, k2 = jax.random.split(key)
    bound_b = 1.0 / np.sqrt(din)                          # kaiming_uniform(a=sqrt(5))
    base_w = jax.random.uniform(k1, (dout, din), jnp.float32, -bound_b, bound_b)
    bound_s = 1.0 / np.sqrt(din * NUM_BASES)
    spline_w = jax.random.uniform(k2, (dout, din * NUM_BASES), jnp.float32,
                                  -bound_s, bound_s)
    # Network stores weights in bf16 (MXU-native); keep the dequantized f32
    # copies so kernel and reference use identical parameter values.
    base_w = base_w.astype(jnp.bfloat16).astype(jnp.float32)
    spline_w = spline_w.astype(jnp.bfloat16).astype(jnp.float32)
    gamma = jnp.ones((din,), jnp.float32)
    beta = jnp.zeros((din,), jnp.float32)
    return dict(base_w=base_w, spline_w=spline_w, gamma=gamma, beta=beta)


def build_network(key, layers_hidden):
    num_layers = len(layers_hidden) - 1
    keys = jax.random.split(key, num_layers)
    raw = [init_layer(keys[i], din, dout)
           for i, (din, dout) in enumerate(zip(layers_hidden, layers_hidden[1:]))]

    dout_last = layers_hidden[-1]
    dout_pad = _round_up(dout_last, 128)                  # lane-dense output slab

    flat, metas = [], []
    for li, (p, din, dout) in enumerate(zip(raw, layers_hidden, layers_hidden[1:])):
        aux_np, ng = _layer_aux_np(din, p["gamma"], p["beta"])
        metas.append((din, ng))
        # torch spline columns are i*8+g; kernel bsrbf columns are g*din+i.
        spline_wT = (p["spline_w"].T.reshape(din, NUM_BASES, dout)
                     .transpose(1, 0, 2).reshape(NUM_BASES * din, dout))
        w_merged = jnp.concatenate([spline_wT, p["base_w"].T], axis=0)  # [9*din,dout]
        dp = dout_pad if li == num_layers - 1 else dout   # only last layer padded
        if dp > dout:
            w_merged = jnp.pad(w_merged, ((0, 0), (0, dp - dout)))
        flat += [jnp.asarray(aux_np), w_merged.astype(jnp.bfloat16)]
    return dict(flat=flat, metas=metas, num_layers=num_layers, raw=raw,
                dout=dout_last, dout_pad=dout_pad)


# ---------------------------------------------------------------------------
# Wrapper: fused multi-layer forward with a batch grid
# ---------------------------------------------------------------------------
def bsrbf_kan_forward(x, net, *, tile_b=128):
    batch, din0 = x.shape
    flat, metas = net["flat"], net["metas"]
    dout, dout_pad = net["dout"], net["dout_pad"]

    tb = min(tile_b, _round_up(batch, 8))
    batch_pad = _round_up(batch, tb)
    xp = x if batch_pad == batch else jnp.pad(x, ((0, batch_pad - batch), (0, 0)))

    grid = (batch_pad // tb,)
    in_specs = [pl.BlockSpec((tb, din0), lambda i: (i, 0))]
    for arr in flat:                                      # params: full-array blocks
        in_specs.append(pl.BlockSpec(arr.shape, lambda i: (0, 0)))
    out_specs = pl.BlockSpec((tb, dout_pad), lambda i: (i, 0))

    # Footprint-based VMEM limit: params (double-buffered) + IO tiles (double-
    # buffered) + intermediate slab estimate, capped at 3/4 of physical VMEM.
    param_bytes = sum(int(np.prod(a.shape)) * a.dtype.itemsize for a in flat)
    io_bytes = tb * din0 * 4 + tb * dout_pad * 4
    slab = max(ng * din for din, ng in metas)
    interm_bytes = 8 * tb * max(slab, dout_pad) * 4
    needed = 2 * param_bytes + 2 * io_bytes + interm_bytes
    try:
        phys = int(pltpu.get_tpu_info().vmem_capacity_bytes)
    except Exception:
        phys = 64 * 1024 * 1024                           # conservative (v7x-sized)
    vmem_limit = int(min(max(needed + (16 << 20), 32 << 20), (phys * 3) // 4))

    # Advisory cost estimate for the XLA scheduler.
    flops, transc = 0, 0
    bytes_acc = xp.size * 4 + batch_pad * dout_pad * 4
    for (din, ng), w in zip(metas, flat[1::2]):
        kdim, dp = w.shape
        flops += 2 * batch_pad * kdim * dp                # merged matmul
        flops += 40 * batch_pad * ng * din                # LN + recurrence + RBF
        transc += batch_pad * (2 * din + NUM_BASES * din) # rsqrt + sigmoid + rbf exp
    for a in flat:
        bytes_acc += int(np.prod(a.shape)) * a.dtype.itemsize

    y = pl.pallas_call(
        make_network_kernel(metas),
        out_shape=jax.ShapeDtypeStruct((batch_pad, dout_pad), jnp.float32),
        grid=grid,
        in_specs=in_specs,
        out_specs=out_specs,
        compiler_params=pltpu.CompilerParams(
            dimension_semantics=("parallel",),
            vmem_limit_bytes=vmem_limit),
        cost_estimate=pl.CostEstimate(flops=int(flops),
                                      transcendentals=int(transc),
                                      bytes_accessed=int(bytes_acc)),
    )(xp, *flat)
    return y[:batch, :dout]


# ---------------------------------------------------------------------------
# Plain-JAX reference (direct transcription of the PyTorch forward)
# ---------------------------------------------------------------------------
def ref_layer(x, p):
    mean = jnp.mean(x, -1, keepdims=True)
    var = jnp.mean((x - mean) ** 2, -1, keepdims=True)
    xn = (x - mean) / jnp.sqrt(var + LN_EPS) * p["gamma"] + p["beta"]
    base = (xn * jax.nn.sigmoid(xn)) @ p["base_w"].T
    grid = jnp.asarray(_GRID1D_NP)
    xe = xn[..., None]
    bases = ((xe >= grid[:-1]) & (xe < grid[1:])).astype(jnp.float32)
    for k in range(1, SPLINE_ORDER + 1):
        bases = ((xe - grid[:-(k + 1)]) / (grid[k:-1] - grid[:-(k + 1)]) * bases[..., :-1]
                 + (grid[k + 1:] - xe) / (grid[k + 1:] - grid[1:-k]) * bases[..., 1:])
    rbf = jnp.exp(-((xe - jnp.asarray(_RBF_CENTERS_NP)) / RBF_DENOM) ** 2)
    bsrbf = (bases + rbf).reshape(x.shape[0], -1)
    return base + bsrbf @ p["spline_w"].T


# ---------------------------------------------------------------------------
if __name__ == "__main__":
    layers_hidden = [16, 32, 8]
    batch = 256

    root = jax.random.PRNGKey(0)
    kx, knet = jax.random.split(root)
    net = build_network(knet, layers_hidden)
    x = jax.random.normal(kx, (batch, layers_hidden[0]), jnp.float32)

    # Pallas fused forward
    y = jax.block_until_ready(bsrbf_kan_forward(x, net, tile_b=128))

    # Reference forward (f32, same dequantized weights)
    y_ref = x
    for p in net["raw"]:
        y_ref = ref_layer(y_ref, p)
    y_ref = jax.block_until_ready(y_ref)

    np.testing.assert_allclose(np.asarray(y), np.asarray(y_ref),
                               rtol=2e-2, atol=2e-2)
    print("KERNEL_OK")
</pallas_src>

<mosaic_0001>
module attributes {stable_mosaic.version = 11 : i64} {
  func.func @kernel(%arg0: i32, %arg1: memref<128x16xf32, #tpu.memory_space<vmem>>, %arg2: memref<16x256xf32, #tpu.memory_space<vmem>>, %arg3: memref<144x32xbf16, #tpu.memory_space<vmem>>, %arg4: memref<16x384xf32, #tpu.memory_space<vmem>>, %arg5: memref<288x128xbf16, #tpu.memory_space<vmem>>, %arg6: memref<128x128xf32, #tpu.memory_space<vmem>>) attributes {dimension_semantics = [#tpu.dimension_semantics<parallel>], iteration_bounds = array<i64: 2>, scalar_prefetch = 0 : i64, scratch_operands = 0 : i64, tpu.core_type = #tpu.core_type<tc>, window_params = [{transform_indices = @transform_0, window_bounds = array<i64: 128, 16>}, {pipeline_mode = #tpu.pipeline_mode<synchronous>, transform_indices = @transform_1, window_bounds = array<i64: 16, 256>}, {pipeline_mode = #tpu.pipeline_mode<synchronous>, transform_indices = @transform_2, window_bounds = array<i64: 144, 32>}, {pipeline_mode = #tpu.pipeline_mode<synchronous>, transform_indices = @transform_3, window_bounds = array<i64: 16, 384>}, {pipeline_mode = #tpu.pipeline_mode<synchronous>, transform_indices = @transform_4, window_bounds = array<i64: 288, 128>}, {transform_indices = @transform_5, window_bounds = array<i64: 128, 128>}]} {
    %c0 = arith.constant 0 : index
    %c0_0 = arith.constant 0 : index
    %0 = vector.load %arg1[%c0, %c0_0] : memref<128x16xf32, #tpu.memory_space<vmem>>, vector<128x16xf32>
    %c0_1 = arith.constant 0 : index
    %c0_2 = arith.constant 0 : index
    %1 = vector.load %arg2[%c0_1, %c0_2] : memref<16x256xf32, #tpu.memory_space<vmem>>, vector<1x16xf32>
    %c1 = arith.constant 1 : index
    %c0_3 = arith.constant 0 : index
    %2 = vector.load %arg2[%c1, %c0_3] : memref<16x256xf32, #tpu.memory_space<vmem>>, vector<1x16xf32>
    %cst = arith.constant dense<0.000000e+00> : vector<128xf32>
    %3 = vector.multi_reduction <add>, %0, %cst [1] : vector<128x16xf32> to vector<128xf32>
    %4 = vector.shape_cast %3 : vector<128xf32> to vector<128x1xf32>
    %cst_4 = arith.constant 1.600000e+01 : f32
    %5 = vector.broadcast %cst_4 : f32 to vector<128x1xf32>
    %6 = arith.divf %4, %5 : vector<128x1xf32>
    %7 = vector.broadcast %6 : vector<128x1xf32> to vector<128x16xf32>
    %8 = arith.subf %0, %7 : vector<128x16xf32>
    %9 = arith.mulf %8, %8 : vector<128x16xf32>
    %cst_5 = arith.constant dense<0.000000e+00> : vector<128xf32>
    %10 = vector.multi_reduction <add>, %9, %cst_5 [1] : vector<128x16xf32> to vector<128xf32>
    %11 = vector.shape_cast %10 : vector<128xf32> to vector<128x1xf32>
    %cst_6 = arith.constant 1.600000e+01 : f32
    %12 = vector.broadcast %cst_6 : f32 to vector<128x1xf32>
    %13 = arith.divf %11, %12 : vector<128x1xf32>
    %14 = vector.broadcast %6 : vector<128x1xf32> to vector<128x16xf32>
    %15 = arith.subf %0, %14 : vector<128x16xf32>
    %cst_7 = arith.constant 9.99999974E-6 : f32
    %16 = vector.broadcast %cst_7 : f32 to vector<128x1xf32>
    %17 = arith.addf %13, %16 : vector<128x1xf32>
    %18 = math.rsqrt %17 : vector<128x1xf32>
    %19 = vector.broadcast %18 : vector<128x1xf32> to vector<128x16xf32>
    %20 = arith.mulf %15, %19 : vector<128x16xf32>
    %21 = vector.broadcast %1 : vector<1x16xf32> to vector<128x16xf32>
    %22 = arith.mulf %20, %21 : vector<128x16xf32>
    %23 = vector.broadcast %2 : vector<1x16xf32> to vector<128x16xf32>
    %24 = arith.addf %22, %23 : vector<128x16xf32>
    %cst_8 = arith.constant 0.000000e+00 : f32
    %25 = vector.broadcast %cst_8 : f32 to vector<128x16xf32>
    %26 = arith.subf %25, %24 : vector<128x16xf32>
    %27 = math.exp %26 : vector<128x16xf32>
    %cst_9 = arith.constant 1.000000e+00 : f32
    %28 = vector.broadcast %cst_9 : f32 to vector<128x16xf32>
    %29 = arith.addf %28, %27 : vector<128x16xf32>
    %30 = arith.divf %24, %29 : vector<128x16xf32>
    %31 = tpu.concatenate %24, %24, %24, %24, %24, %24, %24, %24, %24, %24, %24, %24, %24, %24, %24, %24 in 1 : vector<128x16xf32>, vector<128x16xf32>, vector<128x16xf32>, vector<128x16xf32>, vector<128x16xf32>, vector<128x16xf32>, vector<128x16xf32>, vector<128x16xf32>, vector<128x16xf32>, vector<128x16xf32>, vector<128x16xf32>, vector<128x16xf32>, vector<128x16xf32>, vector<128x16xf32>, vector<128x16xf32>, vector<128x16xf32> -> vector<128x256xf32>
    %c2 = arith.constant 2 : index
    %c0_10 = arith.constant 0 : index
    %32 = vector.load %arg2[%c2, %c0_10] : memref<16x256xf32, #tpu.memory_space<vmem>>, vector<1x256xf32>
    %33 = vector.broadcast %32 : vector<1x256xf32> to vector<128x256xf32>
    %34 = arith.cmpf oge, %31, %33 : vector<128x256xf32>
    %35 = arith.extui %34 : vector<128x256xi1> to vector<128x256xi32>
    %36 = arith.sitofp %35 : vector<128x256xi32> to vector<128x256xf32>
    %c240_i32 = arith.constant 240 : i32
    %37 = tpu.dynamic_rotate %36 by %c240_i32 dim 1 : vector<128x256xf32>, i32 -> vector<128x256xf32>
    %cst_11 = arith.constant 1.000000e+00 : f32
    %38 = vector.broadcast %cst_11 : f32 to vector<128x256xf32>
    %39 = arith.subf %38, %37 : vector<128x256xf32>
    %40 = arith.mulf %36, %39 : vector<128x256xf32>
    %41 = vector.broadcast %32 : vector<1x256xf32> to vector<128x256xf32>
    %42 = arith.subf %31, %41 : vector<128x256xf32>
    %c3 = arith.constant 3 : index
    %c0_12 = arith.constant 0 : index
    %43 = vector.load %arg2[%c3, %c0_12] : memref<16x256xf32, #tpu.memory_space<vmem>>, vector<1x256xf32>
    %c4 = arith.constant 4 : index
    %c0_13 = arith.constant 0 : index
    %44 = vector.load %arg2[%c4, %c0_13] : memref<16x256xf32, #tpu.memory_space<vmem>>, vector<1x256xf32>
    %c5 = arith.constant 5 : index
    %c0_14 = arith.constant 0 : index
    %45 = vector.load %arg2[%c5, %c0_14] : memref<16x256xf32, #tpu.memory_space<vmem>>, vector<1x256xf32>
    %46 = vector.broadcast %43 : vector<1x256xf32> to vector<128x256xf32>
    %47 = arith.mulf %42, %46 : vector<128x256xf32>
    %48 = arith.mulf %47, %40 : vector<128x256xf32>
    %49 = vector.broadcast %44 : vector<1x256xf32> to vector<128x256xf32>
    %50 = arith.subf %49, %31 : vector<128x256xf32>
    %51 = vector.broadcast %45 : vector<1x256xf32> to vector<128x256xf32>
    %52 = arith.mulf %50, %51 : vector<128x256xf32>
    %c240_i32_15 = arith.constant 240 : i32
    %53 = tpu.dynamic_rotate %40 by %c240_i32_15 dim 1 : vector<128x256xf32>, i32 -> vector<128x256xf32>
    %54 = arith.mulf %52, %53 : vector<128x256xf32>
    %55 = arith.addf %48, %54 : vector<128x256xf32>
    %c6 = arith.constant 6 : index
    %c0_16 = arith.constant 0 : index
    %56 = vector.load %arg2[%c6, %c0_16] : memref<16x256xf32, #tpu.memory_space<vmem>>, vector<1x256xf32>
    %c7 = arith.constant 7 : index
    %c0_17 = arith.constant 0 : index
    %57 = vector.load %arg2[%c7, %c0_17] : memref<16x256xf32, #tpu.memory_space<vmem>>, vector<1x256xf32>
    %c8 = arith.constant 8 : index
    %c0_18 = arith.constant 0 : index
    %58 = vector.load %arg2[%c8, %c0_18] : memref<16x256xf32, #tpu.memory_space<vmem>>, vector<1x256xf32>
    %59 = vector.broadcast %56 : vector<1x256xf32> to vector<128x256xf32>
    %60 = arith.mulf %42, %59 : vector<128x256xf32>
    %61 = arith.mulf %60, %55 : vector<128x256xf32>
    %62 = vector.broadcast %57 : vector<1x256xf32> to vector<128x256xf32>
    %63 = arith.subf %62, %31 : vector<128x256xf32>
    %64 = vector.broadcast %58 : vector<1x256xf32> to vector<128x256xf32>
    %65 = arith.mulf %63, %64 : vector<128x256xf32>
    %c240_i32_19 = arith.constant 240 : i32
    %66 = tpu.dynamic_rotate %55 by %c240_i32_19 dim 1 : vector<128x256xf32>, i32 -> vector<128x256xf32>
    %67 = arith.mulf %65, %66 : vector<128x256xf32>
    %68 = arith.addf %61, %67 : vector<128x256xf32>
    %c9 = arith.constant 9 : index
    %c0_20 = arith.constant 0 : index
    %69 = vector.load %arg2[%c9, %c0_20] : memref<16x256xf32, #tpu.memory_space<vmem>>, vector<1x256xf32>
    %c10 = arith.constant 10 : index
    %c0_21 = arith.constant 0 : index
    %70 = vector.load %arg2[%c10, %c0_21] : memref<16x256xf32, #tpu.memory_space<vmem>>, vector<1x256xf32>
    %c11 = arith.constant 11 : index
    %c0_22 = arith.constant 0 : index
    %71 = vector.load %arg2[%c11, %c0_22] : memref<16x256xf32, #tpu.memory_space<vmem>>, vector<1x256xf32>
    %72 = vector.broadcast %69 : vector<1x256xf32> to vector<128x256xf32>
    %73 = arith.mulf %42, %72 : vector<128x256xf32>
    %74 = arith.mulf %73, %68 : vector<128x256xf32>
    %75 = vector.broadcast %70 : vector<1x256xf32> to vector<128x256xf32>
    %76 = arith.subf %75, %31 : vector<128x256xf32>
    %77 = vector.broadcast %71 : vector<1x256xf32> to vector<128x256xf32>
    %78 = arith.mulf %76, %77 : vector<128x256xf32>
    %c240_i32_23 = arith.constant 240 : i32
    %79 = tpu.dynamic_rotate %68 by %c240_i32_23 dim 1 : vector<128x256xf32>, i32 -> vector<128x256xf32>
    %80 = arith.mulf %78, %79 : vector<128x256xf32>
    %81 = arith.addf %74, %80 : vector<128x256xf32>
    %c12 = arith.constant 12 : index
    %c0_24 = arith.constant 0 : index
    %82 = vector.load %arg2[%c12, %c0_24] : memref<16x256xf32, #tpu.memory_space<vmem>>, vector<1x128xf32>
    %83 = vector.extract_strided_slice %31 {offsets = [0, 0], sizes = [128, 128], strides = [1, 1]} : vector<128x256xf32> to vector<128x128xf32>
    %84 = vector.broadcast %82 : vector<1x128xf32> to vector<128x128xf32>
    %85 = arith.subf %83, %84 : vector<128x128xf32>
    %cst_25 = arith.constant 2.33333325 : f32
    %86 = vector.broadcast %cst_25 : f32 to vector<128x128xf32>
    %87 = arith.mulf %85, %86 : vector<128x128xf32>
    %88 = vector.extract_strided_slice %81 {offsets = [0, 0], sizes = [128, 128], strides = [1, 1]} : vector<128x256xf32> to vector<128x128xf32>
    %89 = arith.mulf %87, %87 : vector<128x128xf32>
    %cst_26 = arith.constant 0.000000e+00 : f32
    %90 = vector.broadcast %cst_26 : f32 to vector<128x128xf32>
    %91 = arith.subf %90, %89 : vector<128x128xf32>
    %92 = math.exp %91 : vector<128x128xf32>
    %93 = arith.addf %88, %92 : vector<128x128xf32>
    %94 = tpu.concatenate %93, %30 in 1 : vector<128x128xf32>, vector<128x16xf32> -> vector<128x144xf32>
    %95 = arith.truncf %94 : vector<128x144xf32> to vector<128x144xbf16>
    %c0_27 = arith.constant 0 : index
    %c0_28 = arith.constant 0 : index
    %96 = vector.load %arg3[%c0_27, %c0_28] : memref<144x32xbf16, #tpu.memory_space<vmem>>, vector<144x32xbf16>
    %cst_29 = arith.constant dense<0.000000e+00> : vector<128x32xf32>
    %97 = tpu.matmul %95, %96, %cst_29 {dimension_numbers = #tpu.dot_dimension_numbers<[1], [0], [0], [1], [0, 0, 1, 1], [], []>} : vector<128x144xbf16>, vector<144x32xbf16>, vector<128x32xf32> -> vector<128x32xf32>
    %c0_30 = arith.constant 0 : index
    %c0_31 = arith.constant 0 : index
    %98 = vector.load %arg4[%c0_30, %c0_31] : memref<16x384xf32, #tpu.memory_space<vmem>>, vector<1x32xf32>
    %c1_32 = arith.constant 1 : index
    %c0_33 = arith.constant 0 : index
    %99 = vector.load %arg4[%c1_32, %c0_33] : memref<16x384xf32, #tpu.memory_space<vmem>>, vector<1x32xf32>
    %cst_34 = arith.constant dense<0.000000e+00> : vector<128xf32>
    %100 = vector.multi_reduction <add>, %97, %cst_34 [1] : vector<128x32xf32> to vector<128xf32>
    %101 = vector.shape_cast %100 : vector<128xf32> to vector<128x1xf32>
    %cst_35 = arith.constant 3.200000e+01 : f32
    %102 = vector.broadcast %cst_35 : f32 to vector<128x1xf32>
    %103 = arith.divf %101, %102 : vector<128x1xf32>
    %104 = vector.broadcast %103 : vector<128x1xf32> to vector<128x32xf32>
    %105 = arith.subf %97, %104 : vector<128x32xf32>
    %106 = arith.mulf %105, %105 : vector<128x32xf32>
    %cst_36 = arith.constant dense<0.000000e+00> : vector<128xf32>
    %107 = vector.multi_reduction <add>, %106, %cst_36 [1] : vector<128x32xf32> to vector<128xf32>
    %108 = vector.shape_cast %107 : vector<128xf32> to vector<128x1xf32>
    %cst_37 = arith.constant 3.200000e+01 : f32
    %109 = vector.broadcast %cst_37 : f32 to vector<128x1xf32>
    %110 = arith.divf %108, %109 : vector<128x1xf32>
    %111 = vector.broadcast %103 : vector<128x1xf32> to vector<128x32xf32>
    %112 = arith.subf %97, %111 : vector<128x32xf32>
    %cst_38 = arith.constant 9.99999974E-6 : f32
    %113 = vector.broadcast %cst_38 : f32 to vector<128x1xf32>
    %114 = arith.addf %110, %113 : vector<128x1xf32>
    %115 = math.rsqrt %114 : vector<128x1xf32>
    %116 = vector.broadcast %115 : vector<128x1xf32> to vector<128x32xf32>
    %117 = arith.mulf %112, %116 : vector<128x32xf32>
    %118 = vector.broadcast %98 : vector<1x32xf32> to vector<128x32xf32>
    %119 = arith.mulf %117, %118 : vector<128x32xf32>
    %120 = vector.broadcast %99 : vector<1x32xf32> to vector<128x32xf32>
    %121 = arith.addf %119, %120 : vector<128x32xf32>
    %cst_39 = arith.constant 0.000000e+00 : f32
    %122 = vector.broadcast %cst_39 : f32 to vector<128x32xf32>
    %123 = arith.subf %122, %121 : vector<128x32xf32>
    %124 = math.exp %123 : vector<128x32xf32>
    %cst_40 = arith.constant 1.000000e+00 : f32
    %125 = vector.broadcast %cst_40 : f32 to vector<128x32xf32>
    %126 = arith.addf %125, %124 : vector<128x32xf32>
    %127 = arith.divf %121, %126 : vector<128x32xf32>
    %128 = tpu.concatenate %121, %121, %121, %121, %121, %121, %121, %121, %121, %121, %121, %121 in 1 : vector<128x32xf32>, vector<128x32xf32>, vector<128x32xf32>, vector<128x32xf32>, vector<128x32xf32>, vector<128x32xf32>, vector<128x32xf32>, vector<128x32xf32>, vector<128x32xf32>, vector<128x32xf32>, vector<128x32xf32>, vector<128x32xf32> -> vector<128x384xf32>
    %c2_41 = arith.constant 2 : index
    %c0_42 = arith.constant 0 : index
    %129 = vector.load %arg4[%c2_41, %c0_42] : memref<16x384xf32, #tpu.memory_space<vmem>>, vector<1x384xf32>
    %130 = vector.broadcast %129 : vector<1x384xf32> to vector<128x384xf32>
    %131 = arith.cmpf oge, %128, %130 : vector<128x384xf32>
    %132 = arith.extui %131 : vector<128x384xi1> to vector<128x384xi32>
    %133 = arith.sitofp %132 : vector<128x384xi32> to vector<128x384xf32>
    %c352_i32 = arith.constant 352 : i32
    %134 = tpu.dynamic_rotate %133 by %c352_i32 dim 1 : vector<128x384xf32>, i32 -> vector<128x384xf32>
    %cst_43 = arith.constant 1.000000e+00 : f32
    %135 = vector.broadcast %cst_43 : f32 to vector<128x384xf32>
    %136 = arith.subf %135, %134 : vector<128x384xf32>
    %137 = arith.mulf %133, %136 : vector<128x384xf32>
    %138 = vector.broadcast %129 : vector<1x384xf32> to vector<128x384xf32>
    %139 = arith.subf %128, %138 : vector<128x384xf32>
    %c3_44 = arith.constant 3 : index
    %c0_45 = arith.constant 0 : index
    %140 = vector.load %arg4[%c3_44, %c0_45] : memref<16x384xf32, #tpu.memory_space<vmem>>, vector<1x384xf32>
    %c4_46 = arith.constant 4 : index
    %c0_47 = arith.constant 0 : index
    %141 = vector.load %arg4[%c4_46, %c0_47] : memref<16x384xf32, #tpu.memory_space<vmem>>, vector<1x384xf32>
    %c5_48 = arith.constant 5 : index
    %c0_49 = arith.constant 0 : index
    %142 = vector.load %arg4[%c5_48, %c0_49] : memref<16x384xf32, #tpu.memory_space<vmem>>, vector<1x384xf32>
    %143 = vector.broadcast %140 : vector<1x384xf32> to vector<128x384xf32>
    %144 = arith.mulf %139, %143 : vector<128x384xf32>
    %145 = arith.mulf %144, %137 : vector<128x384xf32>
    %146 = vector.broadcast %141 : vector<1x384xf32> to vector<128x384xf32>
    %147 = arith.subf %146, %128 : vector<128x384xf32>
    %148 = vector.broadcast %142 : vector<1x384xf32> to vector<128x384xf32>
    %149 = arith.mulf %147, %148 : vector<128x384xf32>
    %c352_i32_50 = arith.constant 352 : i32
    %150 = tpu.dynamic_rotate %137 by %c352_i32_50 dim 1 : vector<128x384xf32>, i32 -> vector<128x384xf32>
    %151 = arith.mulf %149, %150 : vector<128x384xf32>
    %152 = arith.addf %145, %151 : vector<128x384xf32>
    %c6_51 = arith.constant 6 : index
    %c0_52 = arith.constant 0 : index
    %153 = vector.load %arg4[%c6_51, %c0_52] : memref<16x384xf32, #tpu.memory_space<vmem>>, vector<1x384xf32>
    %c7_53 = arith.constant 7 : index
    %c0_54 = arith.constant 0 : index
    %154 = vector.load %arg4[%c7_53, %c0_54] : memref<16x384xf32, #tpu.memory_space<vmem>>, vector<1x384xf32>
    %c8_55 = arith.constant 8 : index
    %c0_56 = arith.constant 0 : index
    %155 = vector.load %arg4[%c8_55, %c0_56] : memref<16x384xf32, #tpu.memory_space<vmem>>, vector<1x384xf32>
    %156 = vector.broadcast %153 : vector<1x384xf32> to vector<128x384xf32>
    %157 = arith.mulf %139, %156 : vector<128x384xf32>
    %158 = arith.mulf %157, %152 : vector<128x384xf32>
    %159 = vector.broadcast %154 : vector<1x384xf32> to vector<128x384xf32>
    %160 = arith.subf %159, %128 : vector<128x384xf32>
    %161 = vector.broadcast %155 : vector<1x384xf32> to vector<128x384xf32>
    %162 = arith.mulf %160, %161 : vector<128x384xf32>
    %c352_i32_57 = arith.constant 352 : i32
    %163 = tpu.dynamic_rotate %152 by %c352_i32_57 dim 1 : vector<128x384xf32>, i32 -> vector<128x384xf32>
    %164 = arith.mulf %162, %163 : vector<128x384xf32>
    %165 = arith.addf %158, %164 : vector<128x384xf32>
    %c9_58 = arith.constant 9 : index
    %c0_59 = arith.constant 0 : index
    %166 = vector.load %arg4[%c9_58, %c0_59] : memref<16x384xf32, #tpu.memory_space<vmem>>, vector<1x384xf32>
    %c10_60 = arith.constant 10 : index
    %c0_61 = arith.constant 0 : index
    %167 = vector.load %arg4[%c10_60, %c0_61] : memref<16x384xf32, #tpu.memory_space<vmem>>, vector<1x384xf32>
    %c11_62 = arith.constant 11 : index
    %c0_63 = arith.constant 0 : index
    %168 = vector.load %arg4[%c11_62, %c0_63] : memref<16x384xf32, #tpu.memory_space<vmem>>, vector<1x384xf32>
    %169 = vector.broadcast %166 : vector<1x384xf32> to vector<128x384xf32>
    %170 = arith.mulf %139, %169 : vector<128x384xf32>
    %171 = arith.mulf %170, %165 : vector<128x384xf32>
    %172 = vector.broadcast %167 : vector<1x384xf32> to vector<128x384xf32>
    %173 = arith.subf %172, %128 : vector<128x384xf32>
    %174 = vector.broadcast %168 : vector<1x384xf32> to vector<128x384xf32>
    %175 = arith.mulf %173, %174 : vector<128x384xf32>
    %c352_i32_64 = arith.constant 352 : i32
    %176 = tpu.dynamic_rotate %165 by %c352_i32_64 dim 1 : vector<128x384xf32>, i32 -> vector<128x384xf32>
    %177 = arith.mulf %175, %176 : vector<128x384xf32>
    %178 = arith.addf %171, %177 : vector<128x384xf32>
    %c12_65 = arith.constant 12 : index
    %c0_66 = arith.constant 0 : index
    %179 = vector.load %arg4[%c12_65, %c0_66] : memref<16x384xf32, #tpu.memory_space<vmem>>, vector<1x256xf32>
    %180 = vector.extract_strided_slice %128 {offsets = [0, 0], sizes = [128, 256], strides = [1, 1]} : vector<128x384xf32> to vector<128x256xf32>
    %181 = vector.broadcast %179 : vector<1x256xf32> to vector<128x256xf32>
    %182 = arith.subf %180, %181 : vector<128x256xf32>
    %cst_67 = arith.constant 2.33333325 : f32
    %183 = vector.broadcast %cst_67 : f32 to vector<128x256xf32>
    %184 = arith.mulf %182, %183 : vector<128x256xf32>
    %185 = vector.extract_strided_slice %178 {offsets = [0, 0], sizes = [128, 256], strides = [1, 1]} : vector<128x384xf32> to vector<128x256xf32>
    %186 = arith.mulf %184, %184 : vector<128x256xf32>
    %cst_68 = arith.constant 0.000000e+00 : f32
    %187 = vector.broadcast %cst_68 : f32 to vector<128x256xf32>
    %188 = arith.subf %187, %186 : vector<128x256xf32>
    %189 = math.exp %188 : vector<128x256xf32>
    %190 = arith.addf %185, %189 : vector<128x256xf32>
    %191 = tpu.concatenate %190, %127 in 1 : vector<128x256xf32>, vector<128x32xf32> -> vector<128x288xf32>
    %192 = arith.truncf %191 : vector<128x288xf32> to vector<128x288xbf16>
    %c0_69 = arith.constant 0 : index
    %c0_70 = arith.constant 0 : index
    %193 = vector.load %arg5[%c0_69, %c0_70] : memref<288x128xbf16, #tpu.memory_space<vmem>>, vector<288x128xbf16>
    %cst_71 = arith.constant dense<0.000000e+00> : vector<128x128xf32>
    %194 = tpu.matmul %192, %193, %cst_71 {dimension_numbers = #tpu.dot_dimension_numbers<[1], [0], [0], [1], [0, 0, 1, 1], [], []>} : vector<128x288xbf16>, vector<288x128xbf16>, vector<128x128xf32> -> vector<128x128xf32>
    %c0_72 = arith.constant 0 : index
    %c0_73 = arith.constant 0 : index
    %195 = vector.load %arg6[%c0_72, %c0_73] : memref<128x128xf32, #tpu.memory_space<vmem>>, vector<128x128xf32>
    tpu.vector_store %arg6[%c0_72, %c0_73], %194 {strides = array<i32>} : memref<128x128xf32, #tpu.memory_space<vmem>>, vector<128x128xf32>,
    return
  }
  func.func @transform_0(%arg0: i32) -> (i32, i32) {
    %c0_i32 = arith.constant 0 : i32
    %c0_i32_0 = arith.constant 0 : i32
    return %arg0, %c0_i32 : i32, i32
  }
  func.func @transform_1(%arg0: i32) -> (i32, i32) {
    %c0_i32 = arith.constant 0 : i32
    %c0_i32_0 = arith.constant 0 : i32
    %c0_i32_1 = arith.constant 0 : i32
    return %c0_i32, %c0_i32_0 : i32, i32
  }
  func.func @transform_2(%arg0: i32) -> (i32, i32) {
    %c0_i32 = arith.constant 0 : i32
    %c0_i32_0 = arith.constant 0 : i32
    %c0_i32_1 = arith.constant 0 : i32
    return %c0_i32, %c0_i32_0 : i32, i32
  }
  func.func @transform_3(%arg0: i32) -> (i32, i32) {
    %c0_i32 = arith.constant 0 : i32
    %c0_i32_0 = arith.constant 0 : i32
    %c0_i32_1 = arith.constant 0 : i32
    return %c0_i32, %c0_i32_0 : i32, i32
  }
  func.func @transform_4(%arg0: i32) -> (i32, i32) {
    %c0_i32 = arith.constant 0 : i32
    %c0_i32_0 = arith.constant 0 : i32
    %c0_i32_1 = arith.constant 0 : i32
    return %c0_i32, %c0_i32_0 : i32, i32
  }
  func.func @transform_5(%arg0: i32) -> (i32, i32) {
    %c0_i32 = arith.constant 0 : i32
    %c0_i32_0 = arith.constant 0 : i32
    return %arg0, %c0_i32 : i32, i32
  }
}

</mosaic_0001>

<llo_original>
// kernel: tpu_custom_call.1
$region0: #{tpu_custom_call.1}
  #allocation0 [shape = 'u32[]', space=smem, size = 0x4, offset = 0x4, fixed_abs, tag = 'smem constant byte address 0x4 - core index']
  #allocation1 [shape = 'u32[144,128]{1,0:T(1,128)}', space=vmem, size = 0x12000, scoped, tag = 'internal scratch']
  %s0 = inlined_call_operand.vmem [shape: f32[256,16], index: 0, kind: input, shape index: {}]
  %s1 = inlined_call_operand.vmem [shape: f32[16,256], index: 1, kind: input, shape index: {}]
  %s2 = inlined_call_operand.vmem [shape: bf16[144,32], index: 2, kind: input, shape index: {}]
  %s3 = inlined_call_operand.vmem [shape: f32[16,384], index: 3, kind: input, shape index: {}]
  %s4 = inlined_call_operand.vmem [shape: bf16[288,128], index: 4, kind: input, shape index: {}]
  %s5 = inlined_call_operand.hbm [shape: f32[256,128], index: 5, kind: output, shape index: {}]
  %s6 = sld [smem:[#allocation0]]
  $region53: #{tpu_custom_call.1} parent=0
    _
  %s8 = ssub.s32 1, %s6
  %s9 = scalar_select 0, %s8, %s6
  $region1: #{tpu_custom_call.1} parent=0
    #allocation2 [shape = 'u8[131072]{0}', space=vmem, size = 0x20000, scoped, tag = 'output window, operand 0']
    #allocation3 [shape = 's32[2]{0}', space=sflag, size = 0x8, scoped, tag = 'scoped memory for tpu_custom_call.1']
    %10 = vsyncpa [#allocation3], 0
    %s11 = scalar_lea.sflag [#allocation3], 1
    %12 = vsyncpa %s11, 0
    loop: start=0, step=1, limit=4
    $region2: #{tpu_custom_call.1} parent=1 // loop_pre_header
      _
    $region3: #{tpu_custom_call.1} parent=1 // loop_header
      %s14 = sphi 0, %s18
      %p15 = scmp.ge.s32.totalorder %s14, 4
      %s24 = sphi 0, %s26
      %s27 = sphi 0, %s24
      %s28 = sphi 0, %s27
      %s44 = sphi 0, %s28
      %s48 = sphi 0, %s48
      %s50 = sphi 0, %s48
      %s51 = sphi 0, %s50
      %s65 = sphi 0, %s51
      %s69 = sphi 0, %s69
      %s71 = sphi 0, %s69
      %s72 = sphi 0, %s71
      %s86 = sphi 0, %s72
      %s90 = sphi 0, %s90
      %s92 = sphi 0, %s90
      %s93 = sphi 0, %s92
      %s107 = sphi 0, %s93
      %s111 = sphi 0, %s111
      %s113 = sphi 0, %s111
      %s114 = sphi 0, %s113
      %s128 = sphi 0, %s114
      %s134 = sphi 0, %s136
      %s137 = sphi 0, %s134
      %s138 = sphi 0, %s137
      %s154 = sphi 0, %s138
    $region4: #{tpu_custom_call.1} parent=1 // loop_header_branch
      %17 = sbr.rel (%p15) target = $region8
    $region5: #{tpu_custom_call.1} parent=1 // loop_body
      %s19 = ssub.s32 %s14, 1
      %s20 = ssub.s32 %s14, 2
      %s21 = sadd.s32 %s14, 1
      %s22 = ssub.s32 %s14, %s21
      %p23 = scmp.eq.s32.totalorder %s22, 0
      %s25 = sadd.s32 %s24, 1
      %s26 = scalar_select %p23, %s24, %s25
      %p29 = pneg %p23
      %p30 = scmp.eq.s32.totalorder %s14, 1
      %p31 = por %p29, %p30
      %p32 = scmp.ne.s32.totalorder %s24, %s27
      %p33 = scmp.eq.s32.totalorder %s14, 0
      %p34 = por %p32, %p33
      %p35 = scmp.ne.s32.totalorder %s24, %s27
      %p36 = scmp.eq.s32.totalorder %s19, 1
      %p37 = por %p35, %p36
      %p38 = scmp.ne.s32.totalorder %s27, %s28
      %p39 = scmp.eq.s32.totalorder %s19, 0
      %p40 = por %p38, %p39
      %p41 = scmp.ne.s32.totalorder %s27, %s28
      %p42 = scmp.eq.s32.totalorder %s20, 1
      %p43 = por %p41, %p42
      %p45 = scmp.ne.s32.totalorder %s28, %s44
      %p46 = scmp.eq.s32.totalorder %s20, 0
      %p47 = por %p45, %p46
      %s49 = sadd.s32 %s48, 1
      %p52 = scmp.eq.s32.totalorder %s14, 1
      %p53 = scmp.ne.s32.totalorder %s48, %s50
      %p54 = scmp.eq.s32.totalorder %s14, 0
      %p55 = por %p53, %p54
      %p56 = scmp.ne.s32.totalorder %s48, %s50
      %p57 = scmp.eq.s32.totalorder %s19, 1
      %p58 = por %p56, %p57
      %p59 = scmp.ne.s32.totalorder %s50, %s51
      %p60 = scmp.eq.s32.totalorder %s19, 0
      %p61 = por %p59, %p60
      %p62 = scmp.ne.s32.totalorder %s50, %s51
      %p63 = scmp.eq.s32.totalorder %s20, 1
      %p64 = por %p62, %p63
      %p66 = scmp.ne.s32.totalorder %s51, %s65
      %p67 = scmp.eq.s32.totalorder %s20, 0
      %p68 = por %p66, %p67
      %s70 = sadd.s32 %s69, 1
      %p73 = scmp.eq.s32.totalorder %s14, 1
      %p74 = scmp.ne.s32.totalorder %s69, %s71
      %p75 = scmp.eq.s32.totalorder %s14, 0
      %p76 = por %p74, %p75
      %p77 = scmp.ne.s32.totalorder %s69, %s71
      %p78 = scmp.eq.s32.totalorder %s19, 1
      %p79 = por %p77, %p78
      %p80 = scmp.ne.s32.totalorder %s71, %s72
      %p81 = scmp.eq.s32.totalorder %s19, 0
      %p82 = por %p80, %p81
      %p83 = scmp.ne.s32.totalorder %s71, %s72
      %p84 = scmp.eq.s32.totalorder %s20, 1
      %p85 = por %p83, %p84
      %p87 = scmp.ne.s32.totalorder %s72, %s86
      %p88 = scmp.eq.s32.totalorder %s20, 0
      %p89 = por %p87, %p88
      %s91 = sadd.s32 %s90, 1
      %p94 = scmp.eq.s32.totalorder %s14, 1
      %p95 = scmp.ne.s32.totalorder %s90, %s92
      %p96 = scmp.eq.s32.totalorder %s14, 0
      %p97 = por %p95, %p96
      %p98 = scmp.ne.s32.totalorder %s90, %s92
      %p99 = scmp.eq.s32.totalorder %s19, 1
      %p100 = por %p98, %p99
      %p101 = scmp.ne.s32.totalorder %s92, %s93
      %p102 = scmp.eq.s32.totalorder %s19, 0
      %p103 = por %p101, %p102
      %p104 = scmp.ne.s32.totalorder %s92, %s93
      %p105 = scmp.eq.s32.totalorder %s20, 1
      %p106 = por %p104, %p105
      %p108 = scmp.ne.s32.totalorder %s93, %s107
      %p109 = scmp.eq.s32.totalorder %s20, 0
      %p110 = por %p108, %p109
      %s112 = sadd.s32 %s111, 1
      %p115 = scmp.eq.s32.totalorder %s14, 1
      %p116 = scmp.ne.s32.totalorder %s111, %s113
      %p117 = scmp.eq.s32.totalorder %s14, 0
      %p118 = por %p116, %p117
      %p119 = scmp.ne.s32.totalorder %s111, %s113
      %p120 = scmp.eq.s32.totalorder %s19, 1
      %p121 = por %p119, %p120
      %p122 = scmp.ne.s32.totalorder %s113, %s114
      %p123 = scmp.eq.s32.totalorder %s19, 0
      %p124 = por %p122, %p123
      %p125 = scmp.ne.s32.totalorder %s113, %s114
      %p126 = scmp.eq.s32.totalorder %s20, 1
      %p127 = por %p125, %p126
      %p129 = scmp.ne.s32.totalorder %s114, %s128
      %p130 = scmp.eq.s32.totalorder %s20, 0
      %p131 = por %p129, %p130
      %s132 = ssub.s32 %s14, %s21
      %p133 = scmp.eq.s32.totalorder %s132, 0
      %s135 = sadd.s32 %s134, 1
      %s136 = scalar_select %p133, %s134, %s135
      %p139 = pneg %p133
      %p140 = scmp.eq.s32.totalorder %s14, 1
      %p141 = por %p139, %p140
      %p142 = scmp.ne.s32.totalorder %s134, %s137
      %p143 = scmp.eq.s32.totalorder %s14, 0
      %p144 = por %p142, %p143
      %p145 = scmp.ne.s32.totalorder %s134, %s137
      %p146 = scmp.eq.s32.totalorder %s19, 1
      %p147 = por %p145, %p146
      %p148 = scmp.ne.s32.totalorder %s137, %s138
      %p149 = scmp.eq.s32.totalorder %s19, 0
      %p150 = por %p148, %p149
      %p151 = scmp.ne.s32.totalorder %s137, %s138
      %p152 = scmp.eq.s32.totalorder %s20, 1
      %p153 = por %p151, %p152
      %p155 = scmp.ne.s32.totalorder %s138, %s154
      %p156 = scmp.eq.s32.totalorder %s20, 0
      %p157 = por %p155, %p156
      %p158 = scmp.le.s32.totalorder 1, %s14
      %p159 = scmp.lt.s32.totalorder %s14, 3
      %p160 = pnand %p158, %p159
      %p161 = pneg %p160
      // Predicated region
      $region9: #{tpu_custom_call.1} parent=5 // pred_check
        _
      $region10: #{tpu_custom_call.1} parent=5 // pred_check_branch
        %163 = sbr.rel (%p160) target = $region12
      $region11: #{tpu_custom_call.1} parent=5 // pred_region
        %s164 = ssub.s32 %s14, 1
        // Predicated region
        $region13: #{tpu_custom_call.1} parent=11 // pred_check
          %p165 = pneg %p61
        $region14: #{tpu_custom_call.1} parent=11 // pred_check_branch
          %167 = sbr.rel (%p165) target = $region16
        $region15: #{tpu_custom_call.1} parent=11 // pred_region
          _
        $region16: #{tpu_custom_call.1} parent=11 // pred_fallthru
          _
        // Predicated region
        $region17: #{tpu_custom_call.1} parent=11 // pred_check
          %p168 = pneg %p82
        $region18: #{tpu_custom_call.1} parent=11 // pred_check_branch
          %170 = sbr.rel (%p168) target = $region20
        $region19: #{tpu_custom_call.1} parent=11 // pred_region
          _
        $region20: #{tpu_custom_call.1} parent=11 // pred_fallthru
          _
        // Predicated region
        $region21: #{tpu_custom_call.1} parent=11 // pred_check
          %p171 = pneg %p103
        $region22: #{tpu_custom_call.1} parent=11 // pred_check_branch
          %173 = sbr.rel (%p171) target = $region24
        $region23: #{tpu_custom_call.1} parent=11 // pred_region
          _
        $region24: #{tpu_custom_call.1} parent=11 // pred_fallthru
          _
        // Predicated region
        $region25: #{tpu_custom_call.1} parent=11 // pred_check
          %p174 = pneg %p124
        $region26: #{tpu_custom_call.1} parent=11 // pred_check_branch
          %176 = sbr.rel (%p174) target = $region28
        $region27: #{tpu_custom_call.1} parent=11 // pred_region
          _
        $region28: #{tpu_custom_call.1} parent=11 // pred_fallthru
          _
      $region12: #{tpu_custom_call.1} parent=5 // pred_fallthru
        _
      %p177 = scmp.lt.s32.totalorder %s14, 2
      // Predicated region
      $region29: #{tpu_custom_call.1} parent=5 // pred_check
        %p178 = pneg %p177
      $region30: #{tpu_custom_call.1} parent=5 // pred_check_branch
        %180 = sbr.rel (%p178) target = $region32
      $region31: #{tpu_custom_call.1} parent=5 // pred_region
        // Predicated region
        $region33: #{tpu_custom_call.1} parent=31 // pred_check
          %p181 = pneg %p34
        $region34: #{tpu_custom_call.1} parent=31 // pred_check_branch
          %183 = sbr.rel (%p181) target = $region36
        $region35: #{tpu_custom_call.1} parent=31 // pred_region
          %s184 = smul.u32 16, %s14
          %p185 = scmp.lt.s32.totalorder %s184, 31
          %s186 = scalar_select %p185, %s184, 31
          %s187 = smul.addr %s186, 8
          %s188 = scalar_lea.vmem %s0, %s187
          %s189 = smul.u32 16, %s14
        $region36: #{tpu_custom_call.1} parent=31 // pred_fallthru
          _
      $region32: #{tpu_custom_call.1} parent=5 // pred_fallthru
        _
      %p190 = scmp.le.s32.totalorder 1, %s14
      %p191 = scmp.lt.s32.totalorder %s14, 3
      %p192 = pnand %p190, %p191
      %p193 = pneg %p192
      // Predicated region
      $region37: #{tpu_custom_call.1} parent=5 // pred_check
        _
      $region38: #{tpu_custom_call.1} parent=5 // pred_check_branch
        %195 = sbr.rel (%p192) target = $region40
      $region39: #{tpu_custom_call.1} parent=5 // pred_region
        %s196 = ssub.s32 %s14, 1
        %s197 = smul.u32 16, %s19
        %p198 = scmp.lt.s32.totalorder %s197, 31
        %s199 = scalar_select %p198, %s197, 31
        %s200 = smul.addr %s199, 8
        %s201 = scalar_lea.vmem %s0, %s200
        %p202 = pneg %p40
        %p203 = pneg %p37
        %p204 = pneg %p61
        %p205 = pneg %p58
        %p206 = pneg %p82
        %p207 = pneg %p79
        %p208 = pneg %p103
        %p209 = pneg %p100
        %p210 = pneg %p124
        %p211 = pneg %p121
        %p212 = pneg %p150
        %p213 = pneg %p147
        %s214 = sand.u32 %s137, 1
        %s215 = scalar_lea.sflag [#allocation3], %s214
        %s216 = sand.u32 %s137, 1
        %s217 = smul.addr %s216, 128
        %s218 = scalar_lea.vmem [#allocation2], %s217
        %s219 = smul.u32 16, %s19
        %p220 = scmp.lt.s32.totalorder %s219, 31
        %s221 = scalar_select %p220, %s219, 31
        %s222 = smul.addr %s221, 8
        %s223 = scalar_lea.vmem %s0, %s222
        %s224 = smul.u32 16, %s19
        %s225 = smul.u32 16, %s19
        %v227 = vld [vmem:[%s223] sm:$0xff]
        %v228 = vld [vmem:[%s223 + $0x8] sm:$0xff]
        %v229 = vld [vmem:[%s223 + $0x10] sm:$0xff]
        %v230 = vld [vmem:[%s223 + $0x18] sm:$0xff]
        %v231 = vld [vmem:[%s223 + $0x20] sm:$0xff]
        %v232 = vld [vmem:[%s223 + $0x28] sm:$0xff]
        %v233 = vld [vmem:[%s223 + $0x30] sm:$0xff]
        %v234 = vld [vmem:[%s223 + $0x38] sm:$0xff]
        %v235 = vld [vmem:[%s223 + $0x40] sm:$0xff]
        %v236 = vld [vmem:[%s223 + $0x48] sm:$0xff]
        %v237 = vld [vmem:[%s223 + $0x50] sm:$0xff]
        %v238 = vld [vmem:[%s223 + $0x58] sm:$0xff]
        %v239 = vld [vmem:[%s223 + $0x60] sm:$0xff]
        %v240 = vld [vmem:[%s223 + $0x68] sm:$0xff]
        %v241 = vld [vmem:[%s223 + $0x70] sm:$0xff]
        %v242 = vld [vmem:[%s223 + $0x78] sm:$0xff]
        %v243 = vld [vmem:[%s1] ss:$0 sm:$0xff]
        %v244 = vld [vmem:[%s1 + $0x1] ss:$0 sm:$0xff]
        %vm245 = vcmask 130048
        %v246 = vsel %vm245, %v227, 0.0
        %247 = vadd.xlane.f32.xlu0 %v246
        %v248 = vpop.xlane.xlu0 %247
        %v249 = vsel %vm245, %v228, 0.0
        %250 = vadd.xlane.f32.xlu0 %v249
        %v251 = vpop.xlane.xlu0 %250
        %v252 = vsel %vm245, %v229, 0.0
        %253 = vadd.xlane.f32.xlu0 %v252
        %v254 = vpop.xlane.xlu0 %253
        %v255 = vsel %vm245, %v230, 0.0
        %256 = vadd.xlane.f32.xlu0 %v255
        %v257 = vpop.xlane.xlu0 %256
        %v258 = vsel %vm245, %v231, 0.0
        %259 = vadd.xlane.f32.xlu0 %v258
        %v260 = vpop.xlane.xlu0 %259
        %v261 = vsel %vm245, %v232, 0.0
        %262 = vadd.xlane.f32.xlu0 %v261
        %v263 = vpop.xlane.xlu0 %262
        %v264 = vsel %vm245, %v233, 0.0
        %265 = vadd.xlane.f32.xlu0 %v264
        %v266 = vpop.xlane.xlu0 %265
        %v267 = vsel %vm245, %v234, 0.0
        %268 = vadd.xlane.f32.xlu0 %v267
        %v269 = vpop.xlane.xlu0 %268
        %v270 = vsel %vm245, %v235, 0.0
        %271 = vadd.xlane.f32.xlu0 %v270
        %v272 = vpop.xlane.xlu0 %271
        %v273 = vsel %vm245, %v236, 0.0
        %274 = vadd.xlane.f32.xlu0 %v273
        %v275 = vpop.xlane.xlu0 %274
        %v276 = vsel %vm245, %v237, 0.0
        %277 = vadd.xlane.f32.xlu0 %v276
        %v278 = vpop.xlane.xlu0 %277
        %v279 = vsel %vm245, %v238, 0.0
        %280 = vadd.xlane.f32.xlu0 %v279
        %v281 = vpop.xlane.xlu0 %280
        %v282 = vsel %vm245, %v239, 0.0
        %283 = vadd.xlane.f32.xlu0 %v282
        %v284 = vpop.xlane.xlu0 %283
        %v285 = vsel %vm245, %v240, 0.0
        %286 = vadd.xlane.f32.xlu0 %v285
        %v287 = vpop.xlane.xlu0 %286
        %v288 = vsel %vm245, %v241, 0.0
        %289 = vadd.xlane.f32.xlu0 %v288
        %v290 = vpop.xlane.xlu0 %289
        %v291 = vsel %vm245, %v242, 0.0
        %292 = vadd.xlane.f32.xlu0 %v291
        %v293 = vpop.xlane.xlu0 %292
        %v294 = vrcp.pop 16.0
        %v295 = vmul.f32 %v248, %v294
        %v296 = vmul.f32 %v251, %v294
        %v297 = vmul.f32 %v254, %v294
        %v298 = vmul.f32 %v257, %v294
        %v299 = vmul.f32 %v260, %v294
        %v300 = vmul.f32 %v263, %v294
        %v301 = vmul.f32 %v266, %v294
        %v302 = vmul.f32 %v269, %v294
        %v303 = vmul.f32 %v272, %v294
        %v304 = vmul.f32 %v275, %v294
        %v305 = vmul.f32 %v278, %v294
        %v306 = vmul.f32 %v281, %v294
        %v307 = vmul.f32 %v284, %v294
        %v308 = vmul.f32 %v287, %v294
        %v309 = vmul.f32 %v290, %v294
        %v310 = vmul.f32 %v293, %v294
        %v311 = vsub.f32 %v227, %v295
        %v312 = vsub.f32 %v228, %v296
        %v313 = vsub.f32 %v229, %v297
        %v314 = vsub.f32 %v230, %v298
        %v315 = vsub.f32 %v231, %v299
        %v316 = vsub.f32 %v232, %v300
        %v317 = vsub.f32 %v233, %v301
        %v318 = vsub.f32 %v234, %v302
        %v319 = vsub.f32 %v235, %v303
        %v320 = vsub.f32 %v236, %v304
        %v321 = vsub.f32 %v237, %v305
        %v322 = vsub.f32 %v238, %v306
        %v323 = vsub.f32 %v239, %v307
        %v324 = vsub.f32 %v240, %v308
        %v325 = vsub.f32 %v241, %v309
        %v326 = vsub.f32 %v242, %v310
        %v327 = vmul.f32 %v311, %v311
        %v328 = vmul.f32 %v312, %v312
        %v329 = vmul.f32 %v313, %v313
        %v330 = vmul.f32 %v314, %v314
        %v331 = vmul.f32 %v315, %v315
        %v332 = vmul.f32 %v316, %v316
        %v333 = vmul.f32 %v317, %v317
        %v334 = vmul.f32 %v318, %v318
        %v335 = vmul.f32 %v319, %v319
        %v336 = vmul.f32 %v320, %v320
        %v337 = vmul.f32 %v321, %v321
        %v338 = vmul.f32 %v322, %v322
        %v339 = vmul.f32 %v323, %v323
        %v340 = vmul.f32 %v324, %v324
        %v341 = vmul.f32 %v325, %v325
        %v342 = vmul.f32 %v326, %v326
        %v343 = vsel %vm245, %v327, 0.0
        %344 = vadd.xlane.f32.xlu0 %v343
        %v345 = vpop.xlane.xlu0 %344
        %v346 = vsel %vm245, %v328, 0.0
        %347 = vadd.xlane.f32.xlu0 %v346
        %v348 = vpop.xlane.xlu0 %347
        %v349 = vsel %vm245, %v329, 0.0
        %350 = vadd.xlane.f32.xlu0 %v349
        %v351 = vpop.xlane.xlu0 %350
        %v352 = vsel %vm245, %v330, 0.0
        %353 = vadd.xlane.f32.xlu0 %v352
        %v354 = vpop.xlane.xlu0 %353
        %v355 = vsel %vm245, %v331, 0.0
        %356 = vadd.xlane.f32.xlu0 %v355
        %v357 = vpop.xlane.xlu0 %356
        %v358 = vsel %vm245, %v332, 0.0
        %359 = vadd.xlane.f32.xlu0 %v358
        %v360 = vpop.xlane.xlu0 %359
        %v361 = vsel %vm245, %v333, 0.0
        %362 = vadd.xlane.f32.xlu0 %v361
        %v363 = vpop.xlane.xlu0 %362
        %v364 = vsel %vm245, %v334, 0.0
        %365 = vadd.xlane.f32.xlu0 %v364
        %v366 = vpop.xlane.xlu0 %365
        %v367 = vsel %vm245, %v335, 0.0
        %368 = vadd.xlane.f32.xlu0 %v367
        %v369 = vpop.xlane.xlu0 %368
        %v370 = vsel %vm245, %v336, 0.0
        %371 = vadd.xlane.f32.xlu0 %v370
        %v372 = vpop.xlane.xlu0 %371
        %v373 = vsel %vm245, %v337, 0.0
        %374 = vadd.xlane.f32.xlu0 %v373
        %v375 = vpop.xlane.xlu0 %374
        %v376 = vsel %vm245, %v338, 0.0
        %377 = vadd.xlane.f32.xlu0 %v376
        %v378 = vpop.xlane.xlu0 %377
        %v379 = vsel %vm245, %v339, 0.0
        %380 = vadd.xlane.f32.xlu0 %v379
        %v381 = vpop.xlane.xlu0 %380
        %v382 = vsel %vm245, %v340, 0.0
        %383 = vadd.xlane.f32.xlu0 %v382
        %v384 = vpop.xlane.xlu0 %383
        %v385 = vsel %vm245, %v341, 0.0
        %386 = vadd.xlane.f32.xlu0 %v385
        %v387 = vpop.xlane.xlu0 %386
        %v388 = vsel %vm245, %v342, 0.0
        %389 = vadd.xlane.f32.xlu0 %v388
        %v390 = vpop.xlane.xlu0 %389
        %v391 = vmul.f32 %v345, %v294
        %v392 = vmul.f32 %v348, %v294
        %v393 = vmul.f32 %v351, %v294
        %v394 = vmul.f32 %v354, %v294
        %v395 = vmul.f32 %v357, %v294
        %v396 = vmul.f32 %v360, %v294
        %v397 = vmul.f32 %v363, %v294
        %v398 = vmul.f32 %v366, %v294
        %v399 = vmul.f32 %v369, %v294
        %v400 = vmul.f32 %v372, %v294
        %v401 = vmul.f32 %v375, %v294
        %v402 = vmul.f32 %v378, %v294
        %v403 = vmul.f32 %v381, %v294
        %v404 = vmul.f32 %v384, %v294
        %v405 = vmul.f32 %v387, %v294
        %v406 = vmul.f32 %v390, %v294
        %v407 = vadd.f32 %v391, 1e-05
        %v408 = vadd.f32 %v392, 1e-05
        %v409 = vadd.f32 %v393, 1e-05
        %v410 = vadd.f32 %v394, 1e-05
        %v411 = vadd.f32 %v395, 1e-05
        %v412 = vadd.f32 %v396, 1e-05
        %v413 = vadd.f32 %v397, 1e-05
        %v414 = vadd.f32 %v398, 1e-05
        %v415 = vadd.f32 %v399, 1e-05
        %v416 = vadd.f32 %v400, 1e-05
        %v417 = vadd.f32 %v401, 1e-05
        %v418 = vadd.f32 %v402, 1e-05
        %v419 = vadd.f32 %v403, 1e-05
        %v420 = vadd.f32 %v404, 1e-05
        %v421 = vadd.f32 %v405, 1e-05
        %v422 = vadd.f32 %v406, 1e-05
        %v423 = vrsqrt.pop %v407
        %v424 = vrsqrt.pop %v408
        %v425 = vrsqrt.pop %v409
        %v426 = vrsqrt.pop %v410
        %v427 = vrsqrt.pop %v411
        %v428 = vrsqrt.pop %v412
        %v429 = vrsqrt.pop %v413
        %v430 = vrsqrt.pop %v414
        %v431 = vrsqrt.pop %v415
        %v432 = vrsqrt.pop %v416
        %v433 = vrsqrt.pop %v417
        %v434 = vrsqrt.pop %v418
        %v435 = vrsqrt.pop %v419
        %v436 = vrsqrt.pop %v420
        %v437 = vrsqrt.pop %v421
        %v438 = vrsqrt.pop %v422
        %v439 = vmul.f32 %v311, %v423
        %v440 = vmul.f32 %v312, %v424
        %v441 = vmul.f32 %v313, %v425
        %v442 = vmul.f32 %v314, %v426
        %v443 = vmul.f32 %v315, %v427
        %v444 = vmul.f32 %v316, %v428
        %v445 = vmul.f32 %v317, %v429
        %v446 = vmul.f32 %v318, %v430
        %v447 = vmul.f32 %v319, %v431
        %v448 = vmul.f32 %v320, %v432
        %v449 = vmul.f32 %v321, %v433
        %v450 = vmul.f32 %v322, %v434
        %v451 = vmul.f32 %v323, %v435
        %v452 = vmul.f32 %v324, %v436
        %v453 = vmul.f32 %v325, %v437
        %v454 = vmul.f32 %v326, %v438
        %v455 = vmul.f32 %v439, %v243
        %v456 = vmul.f32 %v440, %v243
        %v457 = vmul.f32 %v441, %v243
        %v458 = vmul.f32 %v442, %v243
        %v459 = vmul.f32 %v443, %v243
        %v460 = vmul.f32 %v444, %v243
        %v461 = vmul.f32 %v445, %v243
        %v462 = vmul.f32 %v446, %v243
        %v463 = vmul.f32 %v447, %v243
        %v464 = vmul.f32 %v448, %v243
        %v465 = vmul.f32 %v449, %v243
        %v466 = vmul.f32 %v450, %v243
        %v467 = vmul.f32 %v451, %v243
        %v468 = vmul.f32 %v452, %v243
        %v469 = vmul.f32 %v453, %v243
        %v470 = vmul.f32 %v454, %v243
        %v471 = vadd.f32 %v455, %v244
        %v472 = vadd.f32 %v456, %v244
        %v473 = vadd.f32 %v457, %v244
        %v474 = vadd.f32 %v458, %v244
        %v475 = vadd.f32 %v459, %v244
        %v476 = vadd.f32 %v460, %v244
        %v477 = vadd.f32 %v461, %v244
        %v478 = vadd.f32 %v462, %v244
        %v479 = vadd.f32 %v463, %v244
        %v480 = vadd.f32 %v464, %v244
        %v481 = vadd.f32 %v465, %v244
        %v482 = vadd.f32 %v466, %v244
        %v483 = vadd.f32 %v467, %v244
        %v484 = vadd.f32 %v468, %v244
        %v485 = vadd.f32 %v469, %v244
        %v486 = vadd.f32 %v470, %v244
        %v487 = vsub.f32 0.0, %v471
        %v488 = vsub.f32 0.0, %v472
        %v489 = vsub.f32 0.0, %v473
        %v490 = vsub.f32 0.0, %v474
        %v491 = vsub.f32 0.0, %v475
        %v492 = vsub.f32 0.0, %v476
        %v493 = vsub.f32 0.0, %v477
        %v494 = vsub.f32 0.0, %v478
        %v495 = vsub.f32 0.0, %v479
        %v496 = vsub.f32 0.0, %v480
        %v497 = vsub.f32 0.0, %v481
        %v498 = vsub.f32 0.0, %v482
        %v499 = vsub.f32 0.0, %v483
        %v500 = vsub.f32 0.0, %v484
        %v501 = vsub.f32 0.0, %v485
        %v502 = vsub.f32 0.0, %v486
        %v503 = vmul.f32 %v487, 1.442695
        %v504 = vpow.pop %v503
        %v505 = vmul.f32 %v488, 1.442695
        %v506 = vpow.pop %v505
        %v507 = vmul.f32 %v489, 1.442695
        %v508 = vpow.pop %v507
        %v509 = vmul.f32 %v490, 1.442695
        %v510 = vpow.pop %v509
        %v511 = vmul.f32 %v491, 1.442695
        %v512 = vpow.pop %v511
        %v513 = vmul.f32 %v492, 1.442695
        %v514 = vpow.pop %v513
        %v515 = vmul.f32 %v493, 1.442695
        %v516 = vpow.pop %v515
        %v517 = vmul.f32 %v494, 1.442695
        %v518 = vpow.pop %v517
        %v519 = vmul.f32 %v495, 1.442695
        %v520 = vpow.pop %v519
        %v521 = vmul.f32 %v496, 1.442695
        %v522 = vpow.pop %v521
        %v523 = vmul.f32 %v497, 1.442695
        %v524 = vpow.pop %v523
        %v525 = vmul.f32 %v498, 1.442695
        %v526 = vpow.pop %v525
        %v527 = vmul.f32 %v499, 1.442695
        %v528 = vpow.pop %v527
        %v529 = vmul.f32 %v500, 1.442695
        %v530 = vpow.pop %v529
        %v531 = vmul.f32 %v501, 1.442695
        %v532 = vpow.pop %v531
        %v533 = vmul.f32 %v502, 1.442695
        %v534 = vpow.pop %v533
        %v535 = vadd.f32 %v504, 1.0
        %v536 = vadd.f32 %v506, 1.0
        %v537 = vadd.f32 %v508, 1.0
        %v538 = vadd.f32 %v510, 1.0
        %v539 = vadd.f32 %v512, 1.0
        %v540 = vadd.f32 %v514, 1.0
        %v541 = vadd.f32 %v516, 1.0
        %v542 = vadd.f32 %v518, 1.0
        %v543 = vadd.f32 %v520, 1.0
        %v544 = vadd.f32 %v522, 1.0
        %v545 = vadd.f32 %v524, 1.0
        %v546 = vadd.f32 %v526, 1.0
        %v547 = vadd.f32 %v528, 1.0
        %v548 = vadd.f32 %v530, 1.0
        %v549 = vadd.f32 %v532, 1.0
        %v550 = vadd.f32 %v534, 1.0
        %v551 = vrcp.pop %v535
        %v552 = vmul.f32 %v471, %v551
        %v553 = vrcp.pop %v536
        %v554 = vmul.f32 %v472, %v553
        %v555 = vrcp.pop %v537
        %v556 = vmul.f32 %v473, %v555
        %v557 = vrcp.pop %v538
        %v558 = vmul.f32 %v474, %v557
        %v559 = vrcp.pop %v539
        %v560 = vmul.f32 %v475, %v559
        %v561 = vrcp.pop %v540
        %v562 = vmul.f32 %v476, %v561
        %v563 = vrcp.pop %v541
        %v564 = vmul.f32 %v477, %v563
        %v565 = vrcp.pop %v542
        %v566 = vmul.f32 %v478, %v565
        %v567 = vrcp.pop %v543
        %v568 = vmul.f32 %v479, %v567
        %v569 = vrcp.pop %v544
        %v570 = vmul.f32 %v480, %v569
        %v571 = vrcp.pop %v545
        %v572 = vmul.f32 %v481, %v571
        %v573 = vrcp.pop %v546
        %v574 = vmul.f32 %v482, %v573
        %v575 = vrcp.pop %v547
        %v576 = vmul.f32 %v483, %v575
        %v577 = vrcp.pop %v548
        %v578 = vmul.f32 %v484, %v577
        %v579 = vrcp.pop %v549
        %v580 = vmul.f32 %v485, %v579
        %v581 = vrcp.pop %v550
        %v582 = vmul.f32 %v486, %v581
        %599 = vrot.lane.b32.xlu0 %v471, 16
        %v600 = vpop.permute.xlu0 %599
        %601 = vrot.lane.b32.xlu0 %v472, 16
        %v602 = vpop.permute.xlu0 %601
        %603 = vrot.lane.b32.xlu0 %v473, 16
        %v604 = vpop.permute.xlu0 %603
        %605 = vrot.lane.b32.xlu0 %v474, 16
        %v606 = vpop.permute.xlu0 %605
        %607 = vrot.lane.b32.xlu0 %v475, 16
        %v608 = vpop.permute.xlu0 %607
        %609 = vrot.lane.b32.xlu0 %v476, 16
        %v610 = vpop.permute.xlu0 %609
        %611 = vrot.lane.b32.xlu0 %v477, 16
        %v612 = vpop.permute.xlu0 %611
        %613 = vrot.lane.b32.xlu0 %v478, 16
        %v614 = vpop.permute.xlu0 %613
        %615 = vrot.lane.b32.xlu0 %v479, 16
        %v616 = vpop.permute.xlu0 %615
        %617 = vrot.lane.b32.xlu0 %v480, 16
        %v618 = vpop.permute.xlu0 %617
        %619 = vrot.lane.b32.xlu0 %v481, 16
        %v620 = vpop.permute.xlu0 %619
        %621 = vrot.lane.b32.xlu0 %v482, 16
        %v622 = vpop.permute.xlu0 %621
        %623 = vrot.lane.b32.xlu0 %v483, 16
        %v624 = vpop.permute.xlu0 %623
        %625 = vrot.lane.b32.xlu0 %v484, 16
        %v626 = vpop.permute.xlu0 %625
        %627 = vrot.lane.b32.xlu0 %v485, 16
        %v628 = vpop.permute.xlu0 %627
        %629 = vrot.lane.b32.xlu0 %v486, 16
        %v630 = vpop.permute.xlu0 %629
        %647 = vrot.lane.b32.xlu0 %v471, 32
        %v648 = vpop.permute.xlu0 %647
        %649 = vrot.lane.b32.xlu0 %v472, 32
        %v650 = vpop.permute.xlu0 %649
        %651 = vrot.lane.b32.xlu0 %v473, 32
        %v652 = vpop.permute.xlu0 %651
        %653 = vrot.lane.b32.xlu0 %v474, 32
        %v654 = vpop.permute.xlu0 %653
        %655 = vrot.lane.b32.xlu0 %v475, 32
        %v656 = vpop.permute.xlu0 %655
        %657 = vrot.lane.b32.xlu0 %v476, 32
        %v658 = vpop.permute.xlu0 %657
        %659 = vrot.lane.b32.xlu0 %v477, 32
        %v660 = vpop.permute.xlu0 %659
        %661 = vrot.lane.b32.xlu0 %v478, 32
        %v662 = vpop.permute.xlu0 %661
        %663 = vrot.lane.b32.xlu0 %v479, 32
        %v664 = vpop.permute.xlu0 %663
        %665 = vrot.lane.b32.xlu0 %v480, 32
        %v666 = vpop.permute.xlu0 %665
        %667 = vrot.lane.b32.xlu0 %v481, 32
        %v668 = vpop.permute.xlu0 %667
        %669 = vrot.lane.b32.xlu0 %v482, 32
        %v670 = vpop.permute.xlu0 %669
        %671 = vrot.lane.b32.xlu0 %v483, 32
        %v672 = vpop.permute.xlu0 %671
        %673 = vrot.lane.b32.xlu0 %v484, 32
        %v674 = vpop.permute.xlu0 %673
        %675 = vrot.lane.b32.xlu0 %v485, 32
        %v676 = vpop.permute.xlu0 %675
        %677 = vrot.lane.b32.xlu0 %v486, 32
        %v678 = vpop.permute.xlu0 %677
        %695 = vrot.lane.b32.xlu0 %v471, 48
        %v696 = vpop.permute.xlu0 %695
        %697 = vrot.lane.b32.xlu0 %v472, 48
        %v698 = vpop.permute.xlu0 %697
        %699 = vrot.lane.b32.xlu0 %v473, 48
        %v700 = vpop.permute.xlu0 %699
        %701 = vrot.lane.b32.xlu0 %v474, 48
        %v702 = vpop.permute.xlu0 %701
        %703 = vrot.lane.b32.xlu0 %v475, 48
        %v704 = vpop.permute.xlu0 %703
        %705 = vrot.lane.b32.xlu0 %v476, 48
        %v706 = vpop.permute.xlu0 %705
        %707 = vrot.lane.b32.xlu0 %v477, 48
        %v708 = vpop.permute.xlu0 %707
        %709 = vrot.lane.b32.xlu0 %v478, 48
        %v710 = vpop.permute.xlu0 %709
        %711 = vrot.lane.b32.xlu0 %v479, 48
        %v712 = vpop.permute.xlu0 %711
        %713 = vrot.lane.b32.xlu0 %v480, 48
        %v714 = vpop.permute.xlu0 %713
        %715 = vrot.lane.b32.xlu0 %v481, 48
        %v716 = vpop.permute.xlu0 %715
        %717 = vrot.lane.b32.xlu0 %v482, 48
        %v718 = vpop.permute.xlu0 %717
        %719 = vrot.lane.b32.xlu0 %v483, 48
        %v720 = vpop.permute.xlu0 %719
        %721 = vrot.lane.b32.xlu0 %v484, 48
        %v722 = vpop.permute.xlu0 %721
        %723 = vrot.lane.b32.xlu0 %v485, 48
        %v724 = vpop.permute.xlu0 %723
        %725 = vrot.lane.b32.xlu0 %v486, 48
        %v726 = vpop.permute.xlu0 %725
        %743 = vrot.lane.b32.xlu0 %v471, 64
        %v744 = vpop.permute.xlu0 %743
        %745 = vrot.lane.b32.xlu0 %v472, 64
        %v746 = vpop.permute.xlu0 %745
        %747 = vrot.lane.b32.xlu0 %v473, 64
        %v748 = vpop.permute.xlu0 %747
        %749 = vrot.lane.b32.xlu0 %v474, 64
        %v750 = vpop.permute.xlu0 %749
        %751 = vrot.lane.b32.xlu0 %v475, 64
        %v752 = vpop.permute.xlu0 %751
        %753 = vrot.lane.b32.xlu0 %v476, 64
        %v754 = vpop.permute.xlu0 %753
        %755 = vrot.lane.b32.xlu0 %v477, 64
        %v756 = vpop.permute.xlu0 %755
        %757 = vrot.lane.b32.xlu0 %v478, 64
        %v758 = vpop.permute.xlu0 %757
        %759 = vrot.lane.b32.xlu0 %v479, 64
        %v760 = vpop.permute.xlu0 %759
        %761 = vrot.lane.b32.xlu0 %v480, 64
        %v762 = vpop.permute.xlu0 %761
        %763 = vrot.lane.b32.xlu0 %v481, 64
        %v764 = vpop.permute.xlu0 %763
        %765 = vrot.lane.b32.xlu0 %v482, 64
        %v766 = vpop.permute.xlu0 %765
        %767 = vrot.lane.b32.xlu0 %v483, 64
        %v768 = vpop.permute.xlu0 %767
        %769 = vrot.lane.b32.xlu0 %v484, 64
        %v770 = vpop.permute.xlu0 %769
        %771 = vrot.lane.b32.xlu0 %v485, 64
        %v772 = vpop.permute.xlu0 %771
        %773 = vrot.lane.b32.xlu0 %v486, 64
        %v774 = vpop.permute.xlu0 %773
        %791 = vrot.lane.b32.xlu0 %v471, 80
        %v792 = vpop.permute.xlu0 %791
        %793 = vrot.lane.b32.xlu0 %v472, 80
        %v794 = vpop.permute.xlu0 %793
        %795 = vrot.lane.b32.xlu0 %v473, 80
        %v796 = vpop.permute.xlu0 %795
        %797 = vrot.lane.b32.xlu0 %v474, 80
        %v798 = vpop.permute.xlu0 %797
        %799 = vrot.lane.b32.xlu0 %v475, 80
        %v800 = vpop.permute.xlu0 %799
        %801 = vrot.lane.b32.xlu0 %v476, 80
        %v802 = vpop.permute.xlu0 %801
        %803 = vrot.lane.b32.xlu0 %v477, 80
        %v804 = vpop.permute.xlu0 %803
        %805 = vrot.lane.b32.xlu0 %v478, 80
        %v806 = vpop.permute.xlu0 %805
        %807 = vrot.lane.b32.xlu0 %v479, 80
        %v808 = vpop.permute.xlu0 %807
        %809 = vrot.lane.b32.xlu0 %v480, 80
        %v810 = vpop.permute.xlu0 %809
        %811 = vrot.lane.b32.xlu0 %v481, 80
        %v812 = vpop.permute.xlu0 %811
        %813 = vrot.lane.b32.xlu0 %v482, 80
        %v814 = vpop.permute.xlu0 %813
        %815 = vrot.lane.b32.xlu0 %v483, 80
        %v816 = vpop.permute.xlu0 %815
        %817 = vrot.lane.b32.xlu0 %v484, 80
        %v818 = vpop.permute.xlu0 %817
        %819 = vrot.lane.b32.xlu0 %v485, 80
        %v820 = vpop.permute.xlu0 %819
        %821 = vrot.lane.b32.xlu0 %v486, 80
        %v822 = vpop.permute.xlu0 %821
        %839 = vrot.lane.b32.xlu0 %v471, 96
        %v840 = vpop.permute.xlu0 %839
        %841 = vrot.lane.b32.xlu0 %v472, 96
        %v842 = vpop.permute.xlu0 %841
        %843 = vrot.lane.b32.xlu0 %v473, 96
        %v844 = vpop.permute.xlu0 %843
        %845 = vrot.lane.b32.xlu0 %v474, 96
        %v846 = vpop.permute.xlu0 %845
        %847 = vrot.lane.b32.xlu0 %v475, 96
        %v848 = vpop.permute.xlu0 %847
        %849 = vrot.lane.b32.xlu0 %v476, 96
        %v850 = vpop.permute.xlu0 %849
        %851 = vrot.lane.b32.xlu0 %v477, 96
        %v852 = vpop.permute.xlu0 %851
        %853 = vrot.lane.b32.xlu0 %v478, 96
        %v854 = vpop.permute.xlu0 %853
        %855 = vrot.lane.b32.xlu0 %v479, 96
        %v856 = vpop.permute.xlu0 %855
        %857 = vrot.lane.b32.xlu0 %v480, 96
        %v858 = vpop.permute.xlu0 %857
        %859 = vrot.lane.b32.xlu0 %v481, 96
        %v860 = vpop.permute.xlu0 %859
        %861 = vrot.lane.b32.xlu0 %v482, 96
        %v862 = vpop.permute.xlu0 %861
        %863 = vrot.lane.b32.xlu0 %v483, 96
        %v864 = vpop.permute.xlu0 %863
        %865 = vrot.lane.b32.xlu0 %v484, 96
        %v866 = vpop.permute.xlu0 %865
        %867 = vrot.lane.b32.xlu0 %v485, 96
        %v868 = vpop.permute.xlu0 %867
        %869 = vrot.lane.b32.xlu0 %v486, 96
        %v870 = vpop.permute.xlu0 %869
        %887 = vrot.lane.b32.xlu0 %v471, 112
        %v888 = vpop.permute.xlu0 %887
        %889 = vrot.lane.b32.xlu0 %v472, 112
        %v890 = vpop.permute.xlu0 %889
        %891 = vrot.lane.b32.xlu0 %v473, 112
        %v892 = vpop.permute.xlu0 %891
        %893 = vrot.lane.b32.xlu0 %v474, 112
        %v894 = vpop.permute.xlu0 %893
        %895 = vrot.lane.b32.xlu0 %v475, 112
        %v896 = vpop.permute.xlu0 %895
        %897 = vrot.lane.b32.xlu0 %v476, 112
        %v898 = vpop.permute.xlu0 %897
        %899 = vrot.lane.b32.xlu0 %v477, 112
        %v900 = vpop.permute.xlu0 %899
        %901 = vrot.lane.b32.xlu0 %v478, 112
        %v902 = vpop.permute.xlu0 %901
        %903 = vrot.lane.b32.xlu0 %v479, 112
        %v904 = vpop.permute.xlu0 %903
        %905 = vrot.lane.b32.xlu0 %v480, 112
        %v906 = vpop.permute.xlu0 %905
        %907 = vrot.lane.b32.xlu0 %v481, 112
        %v908 = vpop.permute.xlu0 %907
        %909 = vrot.lane.b32.xlu0 %v482, 112
        %v910 = vpop.permute.xlu0 %909
        %911 = vrot.lane.b32.xlu0 %v483, 112
        %v912 = vpop.permute.xlu0 %911
        %913 = vrot.lane.b32.xlu0 %v484, 112
        %v914 = vpop.permute.xlu0 %913
        %915 = vrot.lane.b32.xlu0 %v485, 112
        %v916 = vpop.permute.xlu0 %915
        %917 = vrot.lane.b32.xlu0 %v486, 112
        %v918 = vpop.permute.xlu0 %917
        %v935 = vsel %vm245, %v471, %v600
        %v936 = vsel %vm245, %v472, %v602
        %v937 = vsel %vm245, %v473, %v604
        %v938 = vsel %vm245, %v474, %v606
        %v939 = vsel %vm245, %v475, %v608
        %v940 = vsel %vm245, %v476, %v610
        %v941 = vsel %vm245, %v477, %v612
        %v942 = vsel %vm245, %v478, %v614
        %v943 = vsel %vm245, %v479, %v616
        %v944 = vsel %vm245, %v480, %v618
        %v945 = vsel %vm245, %v481, %v620
        %v946 = vsel %vm245, %v482, %v622
        %v947 = vsel %vm245, %v483, %v624
        %v948 = vsel %vm245, %v484, %v626
        %v949 = vsel %vm245, %v485, %v628
        %v950 = vsel %vm245, %v486, %v630
        %vm951 = vcmask 261120
        %v952 = vsel %vm951, %v935, %v648
        %v953 = vsel %vm951, %v936, %v650
        %v954 = vsel %vm951, %v937, %v652
        %v955 = vsel %vm951, %v938, %v654
        %v956 = vsel %vm951, %v939, %v656
        %v957 = vsel %vm951, %v940, %v658
        %v958 = vsel %vm951, %v941, %v660
        %v959 = vsel %vm951, %v942, %v662
        %v960 = vsel %vm951, %v943, %v664
        %v961 = vsel %vm951, %v944, %v666
        %v962 = vsel %vm951, %v945, %v668
        %v963 = vsel %vm951, %v946, %v670
        %v964 = vsel %vm951, %v947, %v672
        %v965 = vsel %vm951, %v948, %v674
        %v966 = vsel %vm951, %v949, %v676
        %v967 = vsel %vm951, %v950, %v678
        %vm968 = vcmask 392192
        %v969 = vsel %vm968, %v952, %v696
        %v970 = vsel %vm968, %v953, %v698
        %v971 = vsel %vm968, %v954, %v700
        %v972 = vsel %vm968, %v955, %v702
        %v973 = vsel %vm968, %v956, %v704
        %v974 = vsel %vm968, %v957, %v706
        %v975 = vsel %vm968, %v958, %v708
        %v976 = vsel %vm968, %v959, %v710
        %v977 = vsel %vm968, %v960, %v712
        %v978 = vsel %vm968, %v961, %v714
        %v979 = vsel %vm968, %v962, %v716
        %v980 = vsel %vm968, %v963, %v718
        %v981 = vsel %vm968, %v964, %v720
        %v982 = vsel %vm968, %v965, %v722
        %v983 = vsel %vm968, %v966, %v724
        %v984 = vsel %vm968, %v967, %v726
        %vm985 = vcmask 523264
        %v986 = vsel %vm985, %v969, %v744
        %v987 = vsel %vm985, %v970, %v746
        %v988 = vsel %vm985, %v971, %v748
        %v989 = vsel %vm985, %v972, %v750
        %v990 = vsel %vm985, %v973, %v752
        %v991 = vsel %vm985, %v974, %v754
        %v992 = vsel %vm985, %v975, %v756
        %v993 = vsel %vm985, %v976, %v758
        %v994 = vsel %vm985, %v977, %v760
        %v995 = vsel %vm985, %v978, %v762
        %v996 = vsel %vm985, %v979, %v764
        %v997 = vsel %vm985, %v980, %v766
        %v998 = vsel %vm985, %v981, %v768
        %v999 = vsel %vm985, %v982, %v770
        %v1000 = vsel %vm985, %v983, %v772
        %v1001 = vsel %vm985, %v984, %v774
        %vm1002 = vcmask 654336
        %v1003 = vsel %vm1002, %v986, %v792
        %v1004 = vsel %vm1002, %v987, %v794
        %v1005 = vsel %vm1002, %v988, %v796
        %v1006 = vsel %vm1002, %v989, %v798
        %v1007 = vsel %vm1002, %v990, %v800
        %v1008 = vsel %vm1002, %v991, %v802
        %v1009 = vsel %vm1002, %v992, %v804
        %v1010 = vsel %vm1002, %v993, %v806
        %v1011 = vsel %vm1002, %v994, %v808
        %v1012 = vsel %vm1002, %v995, %v810
        %v1013 = vsel %vm1002, %v996, %v812
        %v1014 = vsel %vm1002, %v997, %v814
        %v1015 = vsel %vm1002, %v998, %v816
        %v1016 = vsel %vm1002, %v999, %v818
        %v1017 = vsel %vm1002, %v1000, %v820
        %v1018 = vsel %vm1002, %v1001, %v822
        %vm1019 = vcmask 785408
        %v1020 = vsel %vm1019, %v1003, %v840
        %v1021 = vsel %vm1019, %v1004, %v842
        %v1022 = vsel %vm1019, %v1005, %v844
        %v1023 = vsel %vm1019, %v1006, %v846
        %v1024 = vsel %vm1019, %v1007, %v848
        %v1025 = vsel %vm1019, %v1008, %v850
        %v1026 = vsel %vm1019, %v1009, %v852
        %v1027 = vsel %vm1019, %v1010, %v854
        %v1028 = vsel %vm1019, %v1011, %v856
        %v1029 = vsel %vm1019, %v1012, %v858
        %v1030 = vsel %vm1019, %v1013, %v860
        %v1031 = vsel %vm1019, %v1014, %v862
        %v1032 = vsel %vm1019, %v1015, %v864
        %v1033 = vsel %vm1019, %v1016, %v866
        %v1034 = vsel %vm1019, %v1017, %v868
        %v1035 = vsel %vm1019, %v1018, %v870
        %vm1036 = vcmask 916480
        %v1037 = vsel %vm1036, %v1020, %v888
        %v1038 = vsel %vm1036, %v1021, %v890
        %v1039 = vsel %vm1036, %v1022, %v892
        %v1040 = vsel %vm1036, %v1023, %v894
        %v1041 = vsel %vm1036, %v1024, %v896
        %v1042 = vsel %vm1036, %v1025, %v898
        %v1043 = vsel %vm1036, %v1026, %v900
        %v1044 = vsel %vm1036, %v1027, %v902
        %v1045 = vsel %vm1036, %v1028, %v904
        %v1046 = vsel %vm1036, %v1029, %v906
        %v1047 = vsel %vm1036, %v1030, %v908
        %v1048 = vsel %vm1036, %v1031, %v910
        %v1049 = vsel %vm1036, %v1032, %v912
        %v1050 = vsel %vm1036, %v1033, %v914
        %v1051 = vsel %vm1036, %v1034, %v916
        %v1052 = vsel %vm1036, %v1035, %v918
        %s1053 = scalar_lea.vmem %s1, 2
        %v1054 = vld [vmem:[%s1053] ss:$8 sm:$0x3]
        %v1056 = vlaneseq
        %v1057 = vshrl.u32 %v1056, 7
        %v1058 = vsub.s32 0, %v1057
        %v1059 = vrot.slane %v1054, %v1058
        %v1060 = vlaneseq
        %v1061 = vshrl.u32 %v1060, 7
        %v1062 = vsub.s32 1, %v1061
        %v1063 = vrot.slane %v1054, %v1062
        %vm1066 = vcmp.ge.f32.partialorder %v1037, %v1059
        %vm1067 = vcmp.ge.f32.partialorder %v1037, %v1063
        %vm1068 = vcmp.ge.f32.partialorder %v1038, %v1059
        %vm1069 = vcmp.ge.f32.partialorder %v1038, %v1063
        %vm1070 = vcmp.ge.f32.partialorder %v1039, %v1059
        %vm1071 = vcmp.ge.f32.partialorder %v1039, %v1063
        %vm1072 = vcmp.ge.f32.partialorder %v1040, %v1059
        %vm1073 = vcmp.ge.f32.partialorder %v1040, %v1063
        %vm1074 = vcmp.ge.f32.partialorder %v1041, %v1059
        %vm1075 = vcmp.ge.f32.partialorder %v1041, %v1063
        %vm1076 = vcmp.ge.f32.partialorder %v1042, %v1059
        %vm1077 = vcmp.ge.f32.partialorder %v1042, %v1063
        %vm1078 = vcmp.ge.f32.partialorder %v1043, %v1059
        %vm1079 = vcmp.ge.f32.partialorder %v1043, %v1063
        %vm1080 = vcmp.ge.f32.partialorder %v1044, %v1059
        %vm1081 = vcmp.ge.f32.partialorder %v1044, %v1063
        %vm1082 = vcmp.ge.f32.partialorder %v1045, %v1059
        %vm1083 = vcmp.ge.f32.partialorder %v1045, %v1063
        %vm1084 = vcmp.ge.f32.partialorder %v1046, %v1059
        %vm1085 = vcmp.ge.f32.partialorder %v1046, %v1063
        %vm1086 = vcmp.ge.f32.partialorder %v1047, %v1059
        %vm1087 = vcmp.ge.f32.partialorder %v1047, %v1063
        %vm1088 = vcmp.ge.f32.partialorder %v1048, %v1059
        %vm1089 = vcmp.ge.f32.partialorder %v1048, %v1063
        %vm1090 = vcmp.ge.f32.partialorder %v1049, %v1059
        %vm1091 = vcmp.ge.f32.partialorder %v1049, %v1063
        %vm1092 = vcmp.ge.f32.partialorder %v1050, %v1059
        %vm1093 = vcmp.ge.f32.partialorder %v1050, %v1063
        %vm1094 = vcmp.ge.f32.partialorder %v1051, %v1059
        %vm1095 = vcmp.ge.f32.partialorder %v1051, %v1063
        %vm1096 = vcmp.ge.f32.partialorder %v1052, %v1059
        %vm1097 = vcmp.ge.f32.partialorder %v1052, %v1063
        %v1098 = vsel %vm1066, 1, 0
        %v1099 = vsel %vm1067, 1, 0
        %v1100 = vsel %vm1068, 1, 0
        %v1101 = vsel %vm1069, 1, 0
        %v1102 = vsel %vm1070, 1, 0
        %v1103 = vsel %vm1071, 1, 0
        %v1104 = vsel %vm1072, 1, 0
        %v1105 = vsel %vm1073, 1, 0
        %v1106 = vsel %vm1074, 1, 0
        %v1107 = vsel %vm1075, 1, 0
        %v1108 = vsel %vm1076, 1, 0
        %v1109 = vsel %vm1077, 1, 0
        %v1110 = vsel %vm1078, 1, 0
        %v1111 = vsel %vm1079, 1, 0
        %v1112 = vsel %vm1080, 1, 0
        %v1113 = vsel %vm1081, 1, 0
        %v1114 = vsel %vm1082, 1, 0
        %v1115 = vsel %vm1083, 1, 0
        %v1116 = vsel %vm1084, 1, 0
        %v1117 = vsel %vm1085, 1, 0
        %v1118 = vsel %vm1086, 1, 0
        %v1119 = vsel %vm1087, 1, 0
        %v1120 = vsel %vm1088, 1, 0
        %v1121 = vsel %vm1089, 1, 0
        %v1122 = vsel %vm1090, 1, 0
        %v1123 = vsel %vm1091, 1, 0
        %v1124 = vsel %vm1092, 1, 0
        %v1125 = vsel %vm1093, 1, 0
        %v1126 = vsel %vm1094, 1, 0
        %v1127 = vsel %vm1095, 1, 0
        %v1128 = vsel %vm1096, 1, 0
        %v1129 = vsel %vm1097, 1, 0
        %v1130 = vcvt.s32.f32 %v1098
        %v1131 = vcvt.s32.f32 %v1099
        %v1132 = vcvt.s32.f32 %v1100
        %v1133 = vcvt.s32.f32 %v1101
        %v1134 = vcvt.s32.f32 %v1102
        %v1135 = vcvt.s32.f32 %v1103
        %v1136 = vcvt.s32.f32 %v1104
        %v1137 = vcvt.s32.f32 %v1105
        %v1138 = vcvt.s32.f32 %v1106
        %v1139 = vcvt.s32.f32 %v1107
        %v1140 = vcvt.s32.f32 %v1108
        %v1141 = vcvt.s32.f32 %v1109
        %v1142 = vcvt.s32.f32 %v1110
        %v1143 = vcvt.s32.f32 %v1111
        %v1144 = vcvt.s32.f32 %v1112
        %v1145 = vcvt.s32.f32 %v1113
        %v1146 = vcvt.s32.f32 %v1114
        %v1147 = vcvt.s32.f32 %v1115
        %v1148 = vcvt.s32.f32 %v1116
        %v1149 = vcvt.s32.f32 %v1117
        %v1150 = vcvt.s32.f32 %v1118
        %v1151 = vcvt.s32.f32 %v1119
        %v1152 = vcvt.s32.f32 %v1120
        %v1153 = vcvt.s32.f32 %v1121
        %v1154 = vcvt.s32.f32 %v1122
        %v1155 = vcvt.s32.f32 %v1123
        %v1156 = vcvt.s32.f32 %v1124
        %v1157 = vcvt.s32.f32 %v1125
        %v1158 = vcvt.s32.f32 %v1126
        %v1159 = vcvt.s32.f32 %v1127
        %v1160 = vcvt.s32.f32 %v1128
        %v1161 = vcvt.s32.f32 %v1129
        %1162 = vrot.lane.b32.xlu0 %v1130, 112
        %v1163 = vpop.permute.xlu0 %1162
        %1164 = vrot.lane.b32.xlu0 %v1132, 112
        %v1165 = vpop.permute.xlu0 %1164
        %1166 = vrot.lane.b32.xlu0 %v1134, 112
        %v1167 = vpop.permute.xlu0 %1166
        %1168 = vrot.lane.b32.xlu0 %v1136, 112
        %v1169 = vpop.permute.xlu0 %1168
        %1170 = vrot.lane.b32.xlu0 %v1138, 112
        %v1171 = vpop.permute.xlu0 %1170
        %1172 = vrot.lane.b32.xlu0 %v1140, 112
        %v1173 = vpop.permute.xlu0 %1172
        %1174 = vrot.lane.b32.xlu0 %v1142, 112
        %v1175 = vpop.permute.xlu0 %1174
        %1176 = vrot.lane.b32.xlu0 %v1144, 112
        %v1177 = vpop.permute.xlu0 %1176
        %1178 = vrot.lane.b32.xlu0 %v1146, 112
        %v1179 = vpop.permute.xlu0 %1178
        %1180 = vrot.lane.b32.xlu0 %v1148, 112
        %v1181 = vpop.permute.xlu0 %1180
        %1182 = vrot.lane.b32.xlu0 %v1150, 112
        %v1183 = vpop.permute.xlu0 %1182
        %1184 = vrot.lane.b32.xlu0 %v1152, 112
        %v1185 = vpop.permute.xlu0 %1184
        %1186 = vrot.lane.b32.xlu0 %v1154, 112
        %v1187 = vpop.permute.xlu0 %1186
        %1188 = vrot.lane.b32.xlu0 %v1156, 112
        %v1189 = vpop.permute.xlu0 %1188
        %1190 = vrot.lane.b32.xlu0 %v1158, 112
        %v1191 = vpop.permute.xlu0 %1190
        %1192 = vrot.lane.b32.xlu0 %v1160, 112
        %v1193 = vpop.permute.xlu0 %1192
        %1194 = vrot.lane.b32.xlu0 %v1131, 112
        %v1195 = vpop.permute.xlu0 %1194
        %1196 = vrot.lane.b32.xlu0 %v1133, 112
        %v1197 = vpop.permute.xlu0 %1196
        %1198 = vrot.lane.b32.xlu0 %v1135, 112
        %v1199 = vpop.permute.xlu0 %1198
        %1200 = vrot.lane.b32.xlu0 %v1137, 112
        %v1201 = vpop.permute.xlu0 %1200
        %1202 = vrot.lane.b32.xlu0 %v1139, 112
        %v1203 = vpop.permute.xlu0 %1202
        %1204 = vrot.lane.b32.xlu0 %v1141, 112
        %v1205 = vpop.permute.xlu0 %1204
        %1206 = vrot.lane.b32.xlu0 %v1143, 112
        %v1207 = vpop.permute.xlu0 %1206
        %1208 = vrot.lane.b32.xlu0 %v1145, 112
        %v1209 = vpop.permute.xlu0 %1208
        %1210 = vrot.lane.b32.xlu0 %v1147, 112
        %v1211 = vpop.permute.xlu0 %1210
        %1212 = vrot.lane.b32.xlu0 %v1149, 112
        %v1213 = vpop.permute.xlu0 %1212
        %1214 = vrot.lane.b32.xlu0 %v1151, 112
        %v1215 = vpop.permute.xlu0 %1214
        %1216 = vrot.lane.b32.xlu0 %v1153, 112
        %v1217 = vpop.permute.xlu0 %1216
        %1218 = vrot.lane.b32.xlu0 %v1155, 112
        %v1219 = vpop.permute.xlu0 %1218
        %1220 = vrot.lane.b32.xlu0 %v1157, 112
        %v1221 = vpop.permute.xlu0 %1220
        %1222 = vrot.lane.b32.xlu0 %v1159, 112
        %v1223 = vpop.permute.xlu0 %1222
        %1224 = vrot.lane.b32.xlu0 %v1161, 112
        %v1225 = vpop.permute.xlu0 %1224
        %v1226 = vlaneseq
        %v1227 = vand.u32 %v1226, 127
        %vm1228 = vcmp.lt.s32.totalorder %v1227, 112
        %v1229 = vsel %vm1228, %v1163, %v1195
        %v1230 = vsel %vm1228, %v1165, %v1197
        %v1231 = vsel %vm1228, %v1167, %v1199
        %v1232 = vsel %vm1228, %v1169, %v1201
        %v1233 = vsel %vm1228, %v1171, %v1203
        %v1234 = vsel %vm1228, %v1173, %v1205
        %v1235 = vsel %vm1228, %v1175, %v1207
        %v1236 = vsel %vm1228, %v1177, %v1209
        %v1237 = vsel %vm1228, %v1179, %v1211
        %v1238 = vsel %vm1228, %v1181, %v1213
        %v1239 = vsel %vm1228, %v1183, %v1215
        %v1240 = vsel %vm1228, %v1185, %v1217
        %v1241 = vsel %vm1228, %v1187, %v1219
        %v1242 = vsel %vm1228, %v1189, %v1221
        %v1243 = vsel %vm1228, %v1191, %v1223
        %v1244 = vsel %vm1228, %v1193, %v1225
        %v1245 = vsel %vm1228, %v1195, %v1163
        %v1246 = vsel %vm1228, %v1197, %v1165
        %v1247 = vsel %vm1228, %v1199, %v1167
        %v1248 = vsel %vm1228, %v1201, %v1169
        %v1249 = vsel %vm1228, %v1203, %v1171
        %v1250 = vsel %vm1228, %v1205, %v1173
        %v1251 = vsel %vm1228, %v1207, %v1175
        %v1252 = vsel %vm1228, %v1209, %v1177
        %v1253 = vsel %vm1228, %v1211, %v1179
        %v1254 = vsel %vm1228, %v1213, %v1181
        %v1255 = vsel %vm1228, %v1215, %v1183
        %v1256 = vsel %vm1228, %v1217, %v1185
        %v1257 = vsel %vm1228, %v1219, %v1187
        %v1258 = vsel %vm1228, %v1221, %v1189
        %v1259 = vsel %vm1228, %v1223, %v1191
        %v1260 = vsel %vm1228, %v1225, %v1193
        %v1261 = vsub.f32 1.0, %v1229
        %v1262 = vsub.f32 1.0, %v1245
        %v1263 = vsub.f32 1.0, %v1230
        %v1264 = vsub.f32 1.0, %v1246
        %v1265 = vsub.f32 1.0, %v1231
        %v1266 = vsub.f32 1.0, %v1247
        %v1267 = vsub.f32 1.0, %v1232
        %v1268 = vsub.f32 1.0, %v1248
        %v1269 = vsub.f32 1.0, %v1233
        %v1270 = vsub.f32 1.0, %v1249
        %v1271 = vsub.f32 1.0, %v1234
        %v1272 = vsub.f32 1.0, %v1250
        %v1273 = vsub.f32 1.0, %v1235
        %v1274 = vsub.f32 1.0, %v1251
        %v1275 = vsub.f32 1.0, %v1236
        %v1276 = vsub.f32 1.0, %v1252
        %v1277 = vsub.f32 1.0, %v1237
        %v1278 = vsub.f32 1.0, %v1253
        %v1279 = vsub.f32 1.0, %v1238
        %v1280 = vsub.f32 1.0, %v1254
        %v1281 = vsub.f32 1.0, %v1239
        %v1282 = vsub.f32 1.0, %v1255
        %v1283 = vsub.f32 1.0, %v1240
        %v1284 = vsub.f32 1.0, %v1256
        %v1285 = vsub.f32 1.0, %v1241
        %v1286 = vsub.f32 1.0, %v1257
        %v1287 = vsub.f32 1.0, %v1242
        %v1288 = vsub.f32 1.0, %v1258
        %v1289 = vsub.f32 1.0, %v1243
        %v1290 = vsub.f32 1.0, %v1259
        %v1291 = vsub.f32 1.0, %v1244
        %v1292 = vsub.f32 1.0, %v1260
        %v1293 = vmul.f32 %v1130, %v1261
        %v1294 = vmul.f32 %v1131, %v1262
        %v1295 = vmul.f32 %v1132, %v1263
        %v1296 = vmul.f32 %v1133, %v1264
        %v1297 = vmul.f32 %v1134, %v1265
        %v1298 = vmul.f32 %v1135, %v1266
        %v1299 = vmul.f32 %v1136, %v1267
        %v1300 = vmul.f32 %v1137, %v1268
        %v1301 = vmul.f32 %v1138, %v1269
        %v1302 = vmul.f32 %v1139, %v1270
        %v1303 = vmul.f32 %v1140, %v1271
        %v1304 = vmul.f32 %v1141, %v1272
        %v1305 = vmul.f32 %v1142, %v1273
        %v1306 = vmul.f32 %v1143, %v1274
        %v1307 = vmul.f32 %v1144, %v1275
        %v1308 = vmul.f32 %v1145, %v1276
        %v1309 = vmul.f32 %v1146, %v1277
        %v1310 = vmul.f32 %v1147, %v1278
        %v1311 = vmul.f32 %v1148, %v1279
        %v1312 = vmul.f32 %v1149, %v1280
        %v1313 = vmul.f32 %v1150, %v1281
        %v1314 = vmul.f32 %v1151, %v1282
        %v1315 = vmul.f32 %v1152, %v1283
        %v1316 = vmul.f32 %v1153, %v1284
        %v1317 = vmul.f32 %v1154, %v1285
        %v1318 = vmul.f32 %v1155, %v1286
        %v1319 = vmul.f32 %v1156, %v1287
        %v1320 = vmul.f32 %v1157, %v1288
        %v1321 = vmul.f32 %v1158, %v1289
        %v1322 = vmul.f32 %v1159, %v1290
        %v1323 = vmul.f32 %v1160, %v1291
        %v1324 = vmul.f32 %v1161, %v1292
        %v1325 = vsub.f32 %v1037, %v1059
        %v1326 = vsub.f32 %v1037, %v1063
        %v1327 = vsub.f32 %v1038, %v1059
        %v1328 = vsub.f32 %v1038, %v1063
        %v1329 = vsub.f32 %v1039, %v1059
        %v1330 = vsub.f32 %v1039, %v1063
        %v1331 = vsub.f32 %v1040, %v1059
        %v1332 = vsub.f32 %v1040, %v1063
        %v1333 = vsub.f32 %v1041, %v1059
        %v1334 = vsub.f32 %v1041, %v1063
        %v1335 = vsub.f32 %v1042, %v1059
        %v1336 = vsub.f32 %v1042, %v1063
        %v1337 = vsub.f32 %v1043, %v1059
        %v1338 = vsub.f32 %v1043, %v1063
        %v1339 = vsub.f32 %v1044, %v1059
        %v1340 = vsub.f32 %v1044, %v1063
        %v1341 = vsub.f32 %v1045, %v1059
        %v1342 = vsub.f32 %v1045, %v1063
        %v1343 = vsub.f32 %v1046, %v1059
        %v1344 = vsub.f32 %v1046, %v1063
        %v1345 = vsub.f32 %v1047, %v1059
        %v1346 = vsub.f32 %v1047, %v1063
        %v1347 = vsub.f32 %v1048, %v1059
        %v1348 = vsub.f32 %v1048, %v1063
        %v1349 = vsub.f32 %v1049, %v1059
        %v1350 = vsub.f32 %v1049, %v1063
        %v1351 = vsub.f32 %v1050, %v1059
        %v1352 = vsub.f32 %v1050, %v1063
        %v1353 = vsub.f32 %v1051, %v1059
        %v1354 = vsub.f32 %v1051, %v1063
        %v1355 = vsub.f32 %v1052, %v1059
        %v1356 = vsub.f32 %v1052, %v1063
        %s1357 = scalar_lea.vmem %s1, 3
        %v1358 = vld [vmem:[%s1357] ss:$8 sm:$0x3]
        %s1359 = scalar_lea.vmem %s1, 4
        %v1360 = vld [vmem:[%s1359] ss:$8 sm:$0x3]
        %s1361 = scalar_lea.vmem %s1, 5
        %v1362 = vld [vmem:[%s1361] ss:$8 sm:$0x3]
        %v1364 = vlaneseq
        %v1365 = vshrl.u32 %v1364, 7
        %v1366 = vsub.s32 0, %v1365
        %v1367 = vrot.slane %v1358, %v1366
        %v1368 = vlaneseq
        %v1369 = vshrl.u32 %v1368, 7
        %v1370 = vsub.s32 1, %v1369
        %v1371 = vrot.slane %v1358, %v1370
        %v1374 = vmul.f32 %v1325, %v1367
        %v1375 = vmul.f32 %v1326, %v1371
        %v1376 = vmul.f32 %v1327, %v1367
        %v1377 = vmul.f32 %v1328, %v1371
        %v1378 = vmul.f32 %v1329, %v1367
        %v1379 = vmul.f32 %v1330, %v1371
        %v1380 = vmul.f32 %v1331, %v1367
        %v1381 = vmul.f32 %v1332, %v1371
        %v1382 = vmul.f32 %v1333, %v1367
        %v1383 = vmul.f32 %v1334, %v1371
        %v1384 = vmul.f32 %v1335, %v1367
        %v1385 = vmul.f32 %v1336, %v1371
        %v1386 = vmul.f32 %v1337, %v1367
        %v1387 = vmul.f32 %v1338, %v1371
        %v1388 = vmul.f32 %v1339, %v1367
        %v1389 = vmul.f32 %v1340, %v1371
        %v1390 = vmul.f32 %v1341, %v1367
        %v1391 = vmul.f32 %v1342, %v1371
        %v1392 = vmul.f32 %v1343, %v1367
        %v1393 = vmul.f32 %v1344, %v1371
        %v1394 = vmul.f32 %v1345, %v1367
        %v1395 = vmul.f32 %v1346, %v1371
        %v1396 = vmul.f32 %v1347, %v1367
        %v1397 = vmul.f32 %v1348, %v1371
        %v1398 = vmul.f32 %v1349, %v1367
        %v1399 = vmul.f32 %v1350, %v1371
        %v1400 = vmul.f32 %v1351, %v1367
        %v1401 = vmul.f32 %v1352, %v1371
        %v1402 = vmul.f32 %v1353, %v1367
        %v1403 = vmul.f32 %v1354, %v1371
        %v1404 = vmul.f32 %v1355, %v1367
        %v1405 = vmul.f32 %v1356, %v1371
        %v1406 = vmul.f32 %v1374, %v1293
        %v1407 = vmul.f32 %v1375, %v1294
        %v1408 = vmul.f32 %v1376, %v1295
        %v1409 = vmul.f32 %v1377, %v1296
        %v1410 = vmul.f32 %v1378, %v1297
        %v1411 = vmul.f32 %v1379, %v1298
        %v1412 = vmul.f32 %v1380, %v1299
        %v1413 = vmul.f32 %v1381, %v1300
        %v1414 = vmul.f32 %v1382, %v1301
        %v1415 = vmul.f32 %v1383, %v1302
        %v1416 = vmul.f32 %v1384, %v1303
        %v1417 = vmul.f32 %v1385, %v1304
        %v1418 = vmul.f32 %v1386, %v1305
        %v1419 = vmul.f32 %v1387, %v1306
        %v1420 = vmul.f32 %v1388, %v1307
        %v1421 = vmul.f32 %v1389, %v1308
        %v1422 = vmul.f32 %v1390, %v1309
        %v1423 = vmul.f32 %v1391, %v1310
        %v1424 = vmul.f32 %v1392, %v1311
        %v1425 = vmul.f32 %v1393, %v1312
        %v1426 = vmul.f32 %v1394, %v1313
        %v1427 = vmul.f32 %v1395, %v1314
        %v1428 = vmul.f32 %v1396, %v1315
        %v1429 = vmul.f32 %v1397, %v1316
        %v1430 = vmul.f32 %v1398, %v1317
        %v1431 = vmul.f32 %v1399, %v1318
        %v1432 = vmul.f32 %v1400, %v1319
        %v1433 = vmul.f32 %v1401, %v1320
        %v1434 = vmul.f32 %v1402, %v1321
        %v1435 = vmul.f32 %v1403, %v1322
        %v1436 = vmul.f32 %v1404, %v1323
        %v1437 = vmul.f32 %v1405, %v1324
        %v1439 = vlaneseq
        %v1440 = vshrl.u32 %v1439, 7
        %v1441 = vsub.s32 0, %v1440
        %v1442 = vrot.slane %v1360, %v1441
        %v1443 = vlaneseq
        %v1444 = vshrl.u32 %v1443, 7
        %v1445 = vsub.s32 1, %v1444
        %v1446 = vrot.slane %v1360, %v1445
        %v1449 = vsub.f32 %v1442, %v1037
        %v1450 = vsub.f32 %v1446, %v1037
        %v1451 = vsub.f32 %v1442, %v1038
        %v1452 = vsub.f32 %v1446, %v1038
        %v1453 = vsub.f32 %v1442, %v1039
        %v1454 = vsub.f32 %v1446, %v1039
        %v1455 = vsub.f32 %v1442, %v1040
        %v1456 = vsub.f32 %v1446, %v1040
        %v1457 = vsub.f32 %v1442, %v1041
        %v1458 = vsub.f32 %v1446, %v1041
        %v1459 = vsub.f32 %v1442, %v1042
        %v1460 = vsub.f32 %v1446, %v1042
        %v1461 = vsub.f32 %v1442, %v1043
        %v1462 = vsub.f32 %v1446, %v1043
        %v1463 = vsub.f32 %v1442, %v1044
        %v1464 = vsub.f32 %v1446, %v1044
        %v1465 = vsub.f32 %v1442, %v1045
        %v1466 = vsub.f32 %v1446, %v1045
        %v1467 = vsub.f32 %v1442, %v1046
        %v1468 = vsub.f32 %v1446, %v1046
        %v1469 = vsub.f32 %v1442, %v1047
        %v1470 = vsub.f32 %v1446, %v1047
        %v1471 = vsub.f32 %v1442, %v1048
        %v1472 = vsub.f32 %v1446, %v1048
        %v1473 = vsub.f32 %v1442, %v1049
        %v1474 = vsub.f32 %v1446, %v1049
        %v1475 = vsub.f32 %v1442, %v1050
        %v1476 = vsub.f32 %v1446, %v1050
        %v1477 = vsub.f32 %v1442, %v1051
        %v1478 = vsub.f32 %v1446, %v1051
        %v1479 = vsub.f32 %v1442, %v1052
        %v1480 = vsub.f32 %v1446, %v1052
        %v1482 = vlaneseq
        %v1483 = vshrl.u32 %v1482, 7
        %v1484 = vsub.s32 0, %v1483
        %v1485 = vrot.slane %v1362, %v1484
        %v1486 = vlaneseq
        %v1487 = vshrl.u32 %v1486, 7
        %v1488 = vsub.s32 1, %v1487
        %v1489 = vrot.slane %v1362, %v1488
        %v1492 = vmul.f32 %v1449, %v1485
        %v1493 = vmul.f32 %v1450, %v1489
        %v1494 = vmul.f32 %v1451, %v1485
        %v1495 = vmul.f32 %v1452, %v1489
        %v1496 = vmul.f32 %v1453, %v1485
        %v1497 = vmul.f32 %v1454, %v1489
        %v1498 = vmul.f32 %v1455, %v1485
        %v1499 = vmul.f32 %v1456, %v1489
        %v1500 = vmul.f32 %v1457, %v1485
        %v1501 = vmul.f32 %v1458, %v1489
        %v1502 = vmul.f32 %v1459, %v1485
        %v1503 = vmul.f32 %v1460, %v1489
        %v1504 = vmul.f32 %v1461, %v1485
        %v1505 = vmul.f32 %v1462, %v1489
        %v1506 = vmul.f32 %v1463, %v1485
        %v1507 = vmul.f32 %v1464, %v1489
        %v1508 = vmul.f32 %v1465, %v1485
        %v1509 = vmul.f32 %v1466, %v1489
        %v1510 = vmul.f32 %v1467, %v1485
        %v1511 = vmul.f32 %v1468, %v1489
        %v1512 = vmul.f32 %v1469, %v1485
        %v1513 = vmul.f32 %v1470, %v1489
        %v1514 = vmul.f32 %v1471, %v1485
        %v1515 = vmul.f32 %v1472, %v1489
        %v1516 = vmul.f32 %v1473, %v1485
        %v1517 = vmul.f32 %v1474, %v1489
        %v1518 = vmul.f32 %v1475, %v1485
        %v1519 = vmul.f32 %v1476, %v1489
        %v1520 = vmul.f32 %v1477, %v1485
        %v1521 = vmul.f32 %v1478, %v1489
        %v1522 = vmul.f32 %v1479, %v1485
        %v1523 = vmul.f32 %v1480, %v1489
        %1524 = vrot.lane.b32.xlu0 %v1293, 112
        %v1525 = vpop.permute.xlu0 %1524
        %1526 = vrot.lane.b32.xlu0 %v1295, 112
        %v1527 = vpop.permute.xlu0 %1526
        %1528 = vrot.lane.b32.xlu0 %v1297, 112
        %v1529 = vpop.permute.xlu0 %1528
        %1530 = vrot.lane.b32.xlu0 %v1299, 112
        %v1531 = vpop.permute.xlu0 %1530
        %1532 = vrot.lane.b32.xlu0 %v1301, 112
        %v1533 = vpop.permute.xlu0 %1532
        %1534 = vrot.lane.b32.xlu0 %v1303, 112
        %v1535 = vpop.permute.xlu0 %1534
        %1536 = vrot.lane.b32.xlu0 %v1305, 112
        %v1537 = vpop.permute.xlu0 %1536
        %1538 = vrot.lane.b32.xlu0 %v1307, 112
        %v1539 = vpop.permute.xlu0 %1538
        %1540 = vrot.lane.b32.xlu0 %v1309, 112
        %v1541 = vpop.permute.xlu0 %1540
        %1542 = vrot.lane.b32.xlu0 %v1311, 112
        %v1543 = vpop.permute.xlu0 %1542
        %1544 = vrot.lane.b32.xlu0 %v1313, 112
        %v1545 = vpop.permute.xlu0 %1544
        %1546 = vrot.lane.b32.xlu0 %v1315, 112
        %v1547 = vpop.permute.xlu0 %1546
        %1548 = vrot.lane.b32.xlu0 %v1317, 112
        %v1549 = vpop.permute.xlu0 %1548
        %1550 = vrot.lane.b32.xlu0 %v1319, 112
        %v1551 = vpop.permute.xlu0 %1550
        %1552 = vrot.lane.b32.xlu0 %v1321, 112
        %v1553 = vpop.permute.xlu0 %1552
        %1554 = vrot.lane.b32.xlu0 %v1323, 112
        %v1555 = vpop.permute.xlu0 %1554
        %1556 = vrot.lane.b32.xlu0 %v1294, 112
        %v1557 = vpop.permute.xlu0 %1556
        %1558 = vrot.lane.b32.xlu0 %v1296, 112
        %v1559 = vpop.permute.xlu0 %1558
        %1560 = vrot.lane.b32.xlu0 %v1298, 112
        %v1561 = vpop.permute.xlu0 %1560
        %1562 = vrot.lane.b32.xlu0 %v1300, 112
        %v1563 = vpop.permute.xlu0 %1562
        %1564 = vrot.lane.b32.xlu0 %v1302, 112
        %v1565 = vpop.permute.xlu0 %1564
        %1566 = vrot.lane.b32.xlu0 %v1304, 112
        %v1567 = vpop.permute.xlu0 %1566
        %1568 = vrot.lane.b32.xlu0 %v1306, 112
        %v1569 = vpop.permute.xlu0 %1568
        %1570 = vrot.lane.b32.xlu0 %v1308, 112
        %v1571 = vpop.permute.xlu0 %1570
        %1572 = vrot.lane.b32.xlu0 %v1310, 112
        %v1573 = vpop.permute.xlu0 %1572
        %1574 = vrot.lane.b32.xlu0 %v1312, 112
        %v1575 = vpop.permute.xlu0 %1574
        %1576 = vrot.lane.b32.xlu0 %v1314, 112
        %v1577 = vpop.permute.xlu0 %1576
        %1578 = vrot.lane.b32.xlu0 %v1316, 112
        %v1579 = vpop.permute.xlu0 %1578
        %1580 = vrot.lane.b32.xlu0 %v1318, 112
        %v1581 = vpop.permute.xlu0 %1580
        %1582 = vrot.lane.b32.xlu0 %v1320, 112
        %v1583 = vpop.permute.xlu0 %1582
        %1584 = vrot.lane.b32.xlu0 %v1322, 112
        %v1585 = vpop.permute.xlu0 %1584
        %1586 = vrot.lane.b32.xlu0 %v1324, 112
        %v1587 = vpop.permute.xlu0 %1586
        %v1588 = vsel %vm1228, %v1525, %v1557
        %v1589 = vsel %vm1228, %v1527, %v1559
        %v1590 = vsel %vm1228, %v1529, %v1561
        %v1591 = vsel %vm1228, %v1531, %v1563
        %v1592 = vsel %vm1228, %v1533, %v1565
        %v1593 = vsel %vm1228, %v1535, %v1567
        %v1594 = vsel %vm1228, %v1537, %v1569
        %v1595 = vsel %vm1228, %v1539, %v1571
        %v1596 = vsel %vm1228, %v1541, %v1573
        %v1597 = vsel %vm1228, %v1543, %v1575
        %v1598 = vsel %vm1228, %v1545, %v1577
        %v1599 = vsel %vm1228, %v1547, %v1579
        %v1600 = vsel %vm1228, %v1549, %v1581
        %v1601 = vsel %vm1228, %v1551, %v1583
        %v1602 = vsel %vm1228, %v1553, %v1585
        %v1603 = vsel %vm1228, %v1555, %v1587
        %v1604 = vsel %vm1228, %v1557, %v1525
        %v1605 = vsel %vm1228, %v1559, %v1527
        %v1606 = vsel %vm1228, %v1561, %v1529
        %v1607 = vsel %vm1228, %v1563, %v1531
        %v1608 = vsel %vm1228, %v1565, %v1533
        %v1609 = vsel %vm1228, %v1567, %v1535
        %v1610 = vsel %vm1228, %v1569, %v1537
        %v1611 = vsel %vm1228, %v1571, %v1539
        %v1612 = vsel %vm1228, %v1573, %v1541
        %v1613 = vsel %vm1228, %v1575, %v1543
        %v1614 = vsel %vm1228, %v1577, %v1545
        %v1615 = vsel %vm1228, %v1579, %v1547
        %v1616 = vsel %vm1228, %v1581, %v1549
        %v1617 = vsel %vm1228, %v1583, %v1551
        %v1618 = vsel %vm1228, %v1585, %v1553
        %v1619 = vsel %vm1228, %v1587, %v1555
        %v1620 = vmul.f32 %v1492, %v1588
        %v1621 = vmul.f32 %v1493, %v1604
        %v1622 = vmul.f32 %v1494, %v1589
        %v1623 = vmul.f32 %v1495, %v1605
        %v1624 = vmul.f32 %v1496, %v1590
        %v1625 = vmul.f32 %v1497, %v1606
        %v1626 = vmul.f32 %v1498, %v1591
        %v1627 = vmul.f32 %v1499, %v1607
        %v1628 = vmul.f32 %v1500, %v1592
        %v1629 = vmul.f32 %v1501, %v1608
        %v1630 = vmul.f32 %v1502, %v1593
        %v1631 = vmul.f32 %v1503, %v1609
        %v1632 = vmul.f32 %v1504, %v1594
        %v1633 = vmul.f32 %v1505, %v1610
        %v1634 = vmul.f32 %v1506, %v1595
        %v1635 = vmul.f32 %v1507, %v1611
        %v1636 = vmul.f32 %v1508, %v1596
        %v1637 = vmul.f32 %v1509, %v1612
        %v1638 = vmul.f32 %v1510, %v1597
        %v1639 = vmul.f32 %v1511, %v1613
        %v1640 = vmul.f32 %v1512, %v1598
        %v1641 = vmul.f32 %v1513, %v1614
        %v1642 = vmul.f32 %v1514, %v1599
        %v1643 = vmul.f32 %v1515, %v1615
        %v1644 = vmul.f32 %v1516, %v1600
        %v1645 = vmul.f32 %v1517, %v1616
        %v1646 = vmul.f32 %v1518, %v1601
        %v1647 = vmul.f32 %v1519, %v1617
        %v1648 = vmul.f32 %v1520, %v1602
        %v1649 = vmul.f32 %v1521, %v1618
        %v1650 = vmul.f32 %v1522, %v1603
        %v1651 = vmul.f32 %v1523, %v1619
        %v1652 = vadd.f32 %v1406, %v1620
        %v1653 = vadd.f32 %v1407, %v1621
        %v1654 = vadd.f32 %v1408, %v1622
        %v1655 = vadd.f32 %v1409, %v1623
        %v1656 = vadd.f32 %v1410, %v1624
        %v1657 = vadd.f32 %v1411, %v1625
        %v1658 = vadd.f32 %v1412, %v1626
        %v1659 = vadd.f32 %v1413, %v1627
        %v1660 = vadd.f32 %v1414, %v1628
        %v1661 = vadd.f32 %v1415, %v1629
        %v1662 = vadd.f32 %v1416, %v1630
        %v1663 = vadd.f32 %v1417, %v1631
        %v1664 = vadd.f32 %v1418, %v1632
        %v1665 = vadd.f32 %v1419, %v1633
        %v1666 = vadd.f32 %v1420, %v1634
        %v1667 = vadd.f32 %v1421, %v1635
        %v1668 = vadd.f32 %v1422, %v1636
        %v1669 = vadd.f32 %v1423, %v1637
        %v1670 = vadd.f32 %v1424, %v1638
        %v1671 = vadd.f32 %v1425, %v1639
        %v1672 = vadd.f32 %v1426, %v1640
        %v1673 = vadd.f32 %v1427, %v1641
        %v1674 = vadd.f32 %v1428, %v1642
        %v1675 = vadd.f32 %v1429, %v1643
        %v1676 = vadd.f32 %v1430, %v1644
        %v1677 = vadd.f32 %v1431, %v1645
        %v1678 = vadd.f32 %v1432, %v1646
        %v1679 = vadd.f32 %v1433, %v1647
        %v1680 = vadd.f32 %v1434, %v1648
        %v1681 = vadd.f32 %v1435, %v1649
        %v1682 = vadd.f32 %v1436, %v1650
        %v1683 = vadd.f32 %v1437, %v1651
        %s1684 = scalar_lea.vmem %s1, 6
        %v1685 = vld [vmem:[%s1684] ss:$8 sm:$0x3]
        %s1686 = scalar_lea.vmem %s1, 7
        %v1687 = vld [vmem:[%s1686] ss:$8 sm:$0x3]
        %s1688 = scalar_lea.vmem %s1, 16
        %v1689 = vld [vmem:[%s1688] ss:$8 sm:$0x3]
        %v1691 = vlaneseq
        %v1692 = vshrl.u32 %v1691, 7
        %v1693 = vsub.s32 0, %v1692
        %v1694 = vrot.slane %v1685, %v1693
        %v1695 = vlaneseq
        %v1696 = vshrl.u32 %v1695, 7
        %v1697 = vsub.s32 1, %v1696
        %v1698 = vrot.slane %v1685, %v1697
        %v1701 = vmul.f32 %v1325, %v1694
        %v1702 = vmul.f32 %v1326, %v1698
        %v1703 = vmul.f32 %v1327, %v1694
        %v1704 = vmul.f32 %v1328, %v1698
        %v1705 = vmul.f32 %v1329, %v1694
        %v1706 = vmul.f32 %v1330, %v1698
        %v1707 = vmul.f32 %v1331, %v1694
        %v1708 = vmul.f32 %v1332, %v1698
        %v1709 = vmul.f32 %v1333, %v1694
        %v1710 = vmul.f32 %v1334, %v1698
        %v1711 = vmul.f32 %v1335, %v1694
        %v1712 = vmul.f32 %v1336, %v1698
        %v1713 = vmul.f32 %v1337, %v1694
        %v1714 = vmul.f32 %v1338, %v1698
        %v1715 = vmul.f32 %v1339, %v1694
        %v1716 = vmul.f32 %v1340, %v1698
        %v1717 = vmul.f32 %v1341, %v1694
        %v1718 = vmul.f32 %v1342, %v1698
        %v1719 = vmul.f32 %v1343, %v1694
        %v1720 = vmul.f32 %v1344, %v1698
        %v1721 = vmul.f32 %v1345, %v1694
        %v1722 = vmul.f32 %v1346, %v1698
        %v1723 = vmul.f32 %v1347, %v1694
        %v1724 = vmul.f32 %v1348, %v1698
        %v1725 = vmul.f32 %v1349, %v1694
        %v1726 = vmul.f32 %v1350, %v1698
        %v1727 = vmul.f32 %v1351, %v1694
        %v1728 = vmul.f32 %v1352, %v1698
        %v1729 = vmul.f32 %v1353, %v1694
        %v1730 = vmul.f32 %v1354, %v1698
        %v1731 = vmul.f32 %v1355, %v1694
        %v1732 = vmul.f32 %v1356, %v1698
        %v1733 = vmul.f32 %v1701, %v1652
        %v1734 = vmul.f32 %v1702, %v1653
        %v1735 = vmul.f32 %v1703, %v1654
        %v1736 = vmul.f32 %v1704, %v1655
        %v1737 = vmul.f32 %v1705, %v1656
        %v1738 = vmul.f32 %v1706, %v1657
        %v1739 = vmul.f32 %v1707, %v1658
        %v1740 = vmul.f32 %v1708, %v1659
        %v1741 = vmul.f32 %v1709, %v1660
        %v1742 = vmul.f32 %v1710, %v1661
        %v1743 = vmul.f32 %v1711, %v1662
        %v1744 = vmul.f32 %v1712, %v1663
        %v1745 = vmul.f32 %v1713, %v1664
        %v1746 = vmul.f32 %v1714, %v1665
        %v1747 = vmul.f32 %v1715, %v1666
        %v1748 = vmul.f32 %v1716, %v1667
        %v1749 = vmul.f32 %v1717, %v1668
        %v1750 = vmul.f32 %v1718, %v1669
        %v1751 = vmul.f32 %v1719, %v1670
        %v1752 = vmul.f32 %v1720, %v1671
        %v1753 = vmul.f32 %v1721, %v1672
        %v1754 = vmul.f32 %v1722, %v1673
        %v1755 = vmul.f32 %v1723, %v1674
        %v1756 = vmul.f32 %v1724, %v1675
        %v1757 = vmul.f32 %v1725, %v1676
        %v1758 = vmul.f32 %v1726, %v1677
        %v1759 = vmul.f32 %v1727, %v1678
        %v1760 = vmul.f32 %v1728, %v1679
        %v1761 = vmul.f32 %v1729, %v1680
        %v1762 = vmul.f32 %v1730, %v1681
        %v1763 = vmul.f32 %v1731, %v1682
        %v1764 = vmul.f32 %v1732, %v1683
        %v1766 = vlaneseq
        %v1767 = vshrl.u32 %v1766, 7
        %v1768 = vsub.s32 0, %v1767
        %v1769 = vrot.slane %v1687, %v1768
        %v1770 = vlaneseq
        %v1771 = vshrl.u32 %v1770, 7
        %v1772 = vsub.s32 1, %v1771
        %v1773 = vrot.slane %v1687, %v1772
        %v1776 = vsub.f32 %v1769, %v1037
        %v1777 = vsub.f32 %v1773, %v1037
        %v1778 = vsub.f32 %v1769, %v1038
        %v1779 = vsub.f32 %v1773, %v1038
        %v1780 = vsub.f32 %v1769, %v1039
        %v1781 = vsub.f32 %v1773, %v1039
        %v1782 = vsub.f32 %v1769, %v1040
        %v1783 = vsub.f32 %v1773, %v1040
        %v1784 = vsub.f32 %v1769, %v1041
        %v1785 = vsub.f32 %v1773, %v1041
        %v1786 = vsub.f32 %v1769, %v1042
        %v1787 = vsub.f32 %v1773, %v1042
        %v1788 = vsub.f32 %v1769, %v1043
        %v1789 = vsub.f32 %v1773, %v1043
        %v1790 = vsub.f32 %v1769, %v1044
        %v1791 = vsub.f32 %v1773, %v1044
        %v1792 = vsub.f32 %v1769, %v1045
        %v1793 = vsub.f32 %v1773, %v1045
        %v1794 = vsub.f32 %v1769, %v1046
        %v1795 = vsub.f32 %v1773, %v1046
        %v1796 = vsub.f32 %v1769, %v1047
        %v1797 = vsub.f32 %v1773, %v1047
        %v1798 = vsub.f32 %v1769, %v1048
        %v1799 = vsub.f32 %v1773, %v1048
        %v1800 = vsub.f32 %v1769, %v1049
        %v1801 = vsub.f32 %v1773, %v1049
        %v1802 = vsub.f32 %v1769, %v1050
        %v1803 = vsub.f32 %v1773, %v1050
        %v1804 = vsub.f32 %v1769, %v1051
        %v1805 = vsub.f32 %v1773, %v1051
        %v1806 = vsub.f32 %v1769, %v1052
        %v1807 = vsub.f32 %v1773, %v1052
        %v1809 = vlaneseq
        %v1810 = vshrl.u32 %v1809, 7
        %v1811 = vsub.s32 0, %v1810
        %v1812 = vrot.slane %v1689, %v1811
        %v1813 = vlaneseq
        %v1814 = vshrl.u32 %v1813, 7
        %v1815 = vsub.s32 1, %v1814
        %v1816 = vrot.slane %v1689, %v1815
        %v1819 = vmul.f32 %v1776, %v1812
        %v1820 = vmul.f32 %v1777, %v1816
        %v1821 = vmul.f32 %v1778, %v1812
        %v1822 = vmul.f32 %v1779, %v1816
        %v1823 = vmul.f32 %v1780, %v1812
        %v1824 = vmul.f32 %v1781, %v1816
        %v1825 = vmul.f32 %v1782, %v1812
        %v1826 = vmul.f32 %v1783, %v1816
        %v1827 = vmul.f32 %v1784, %v1812
        %v1828 = vmul.f32 %v1785, %v1816
        %v1829 = vmul.f32 %v1786, %v1812
        %v1830 = vmul.f32 %v1787, %v1816
        %v1831 = vmul.f32 %v1788, %v1812
        %v1832 = vmul.f32 %v1789, %v1816
        %v1833 = vmul.f32 %v1790, %v1812
        %v1834 = vmul.f32 %v1791, %v1816
        %v1835 = vmul.f32 %v1792, %v1812
        %v1836 = vmul.f32 %v1793, %v1816
        %v1837 = vmul.f32 %v1794, %v1812
        %v1838 = vmul.f32 %v1795, %v1816
        %v1839 = vmul.f32 %v1796, %v1812
        %v1840 = vmul.f32 %v1797, %v1816
        %v1841 = vmul.f32 %v1798, %v1812
        %v1842 = vmul.f32 %v1799, %v1816
        %v1843 = vmul.f32 %v1800, %v1812
        %v1844 = vmul.f32 %v1801, %v1816
        %v1845 = vmul.f32 %v1802, %v1812
        %v1846 = vmul.f32 %v1803, %v1816
        %v1847 = vmul.f32 %v1804, %v1812
        %v1848 = vmul.f32 %v1805, %v1816
        %v1849 = vmul.f32 %v1806, %v1812
        %v1850 = vmul.f32 %v1807, %v1816
        %1851 = vrot.lane.b32.xlu0 %v1652, 112
        %v1852 = vpop.permute.xlu0 %1851
        %1853 = vrot.lane.b32.xlu0 %v1654, 112
        %v1854 = vpop.permute.xlu0 %1853
        %1855 = vrot.lane.b32.xlu0 %v1656, 112
        %v1856 = vpop.permute.xlu0 %1855
        %1857 = vrot.lane.b32.xlu0 %v1658, 112
        %v1858 = vpop.permute.xlu0 %1857
        %1859 = vrot.lane.b32.xlu0 %v1660, 112
        %v1860 = vpop.permute.xlu0 %1859
        %1861 = vrot.lane.b32.xlu0 %v1662, 112
        %v1862 = vpop.permute.xlu0 %1861
        %1863 = vrot.lane.b32.xlu0 %v1664, 112
        %v1864 = vpop.permute.xlu0 %1863
        %1865 = vrot.lane.b32.xlu0 %v1666, 112
        %v1866 = vpop.permute.xlu0 %1865
        %1867 = vrot.lane.b32.xlu0 %v1668, 112
        %v1868 = vpop.permute.xlu0 %1867
        %1869 = vrot.lane.b32.xlu0 %v1670, 112
        %v1870 = vpop.permute.xlu0 %1869
        %1871 = vrot.lane.b32.xlu0 %v1672, 112
        %v1872 = vpop.permute.xlu0 %1871
        %1873 = vrot.lane.b32.xlu0 %v1674, 112
        %v1874 = vpop.permute.xlu0 %1873
        %1875 = vrot.lane.b32.xlu0 %v1676, 112
        %v1876 = vpop.permute.xlu0 %1875
        %1877 = vrot.lane.b32.xlu0 %v1678, 112
        %v1878 = vpop.permute.xlu0 %1877
        %1879 = vrot.lane.b32.xlu0 %v1680, 112
        %v1880 = vpop.permute.xlu0 %1879
        %1881 = vrot.lane.b32.xlu0 %v1682, 112
        %v1882 = vpop.permute.xlu0 %1881
        %1883 = vrot.lane.b32.xlu0 %v1653, 112
        %v1884 = vpop.permute.xlu0 %1883
        %1885 = vrot.lane.b32.xlu0 %v1655, 112
        %v1886 = vpop.permute.xlu0 %1885
        %1887 = vrot.lane.b32.xlu0 %v1657, 112
        %v1888 = vpop.permute.xlu0 %1887
        %1889 = vrot.lane.b32.xlu0 %v1659, 112
        %v1890 = vpop.permute.xlu0 %1889
        %1891 = vrot.lane.b32.xlu0 %v1661, 112
        %v1892 = vpop.permute.xlu0 %1891
        %1893 = vrot.lane.b32.xlu0 %v1663, 112
        %v1894 = vpop.permute.xlu0 %1893
        %1895 = vrot.lane.b32.xlu0 %v1665, 112
        %v1896 = vpop.permute.xlu0 %1895
        %1897 = vrot.lane.b32.xlu0 %v1667, 112
        %v1898 = vpop.permute.xlu0 %1897
        %1899 = vrot.lane.b32.xlu0 %v1669, 112
        %v1900 = vpop.permute.xlu0 %1899
        %1901 = vrot.lane.b32.xlu0 %v1671, 112
        %v1902 = vpop.permute.xlu0 %1901
        %1903 = vrot.lane.b32.xlu0 %v1673, 112
        %v1904 = vpop.permute.xlu0 %1903
        %1905 = vrot.lane.b32.xlu0 %v1675, 112
        %v1906 = vpop.permute.xlu0 %1905
        %1907 = vrot.lane.b32.xlu0 %v1677, 112
        %v1908 = vpop.permute.xlu0 %1907
        %1909 = vrot.lane.b32.xlu0 %v1679, 112
        %v1910 = vpop.permute.xlu0 %1909
        %1911 = vrot.lane.b32.xlu0 %v1681, 112
        %v1912 = vpop.permute.xlu0 %1911
        %1913 = vrot.lane.b32.xlu0 %v1683, 112
        %v1914 = vpop.permute.xlu0 %1913
        %v1915 = vsel %vm1228, %v1852, %v1884
        %v1916 = vsel %vm1228, %v1854, %v1886
        %v1917 = vsel %vm1228, %v1856, %v1888
        %v1918 = vsel %vm1228, %v1858, %v1890
        %v1919 = vsel %vm1228, %v1860, %v1892
        %v1920 = vsel %vm1228, %v1862, %v1894
        %v1921 = vsel %vm1228, %v1864, %v1896
        %v1922 = vsel %vm1228, %v1866, %v1898
        %v1923 = vsel %vm1228, %v1868, %v1900
        %v1924 = vsel %vm1228, %v1870, %v1902
        %v1925 = vsel %vm1228, %v1872, %v1904
        %v1926 = vsel %vm1228, %v1874, %v1906
        %v1927 = vsel %vm1228, %v1876, %v1908
        %v1928 = vsel %vm1228, %v1878, %v1910
        %v1929 = vsel %vm1228, %v1880, %v1912
        %v1930 = vsel %vm1228, %v1882, %v1914
        %v1931 = vsel %vm1228, %v1884, %v1852
        %v1932 = vsel %vm1228, %v1886, %v1854
        %v1933 = vsel %vm1228, %v1888, %v1856
        %v1934 = vsel %vm1228, %v1890, %v1858
        %v1935 = vsel %vm1228, %v1892, %v1860
        %v1936 = vsel %vm1228, %v1894, %v1862
        %v1937 = vsel %vm1228, %v1896, %v1864
        %v1938 = vsel %vm1228, %v1898, %v1866
        %v1939 = vsel %vm1228, %v1900, %v1868
        %v1940 = vsel %vm1228, %v1902, %v1870
        %v1941 = vsel %vm1228, %v1904, %v1872
        %v1942 = vsel %vm1228, %v1906, %v1874
        %v1943 = vsel %vm1228, %v1908, %v1876
        %v1944 = vsel %vm1228, %v1910, %v1878
        %v1945 = vsel %vm1228, %v1912, %v1880
        %v1946 = vsel %vm1228, %v1914, %v1882
        %v1947 = vmul.f32 %v1819, %v1915
        %v1948 = vmul.f32 %v1820, %v1931
        %v1949 = vmul.f32 %v1821, %v1916
        %v1950 = vmul.f32 %v1822, %v1932
        %v1951 = vmul.f32 %v1823, %v1917
        %v1952 = vmul.f32 %v1824, %v1933
        %v1953 = vmul.f32 %v1825, %v1918
        %v1954 = vmul.f32 %v1826, %v1934
        %v1955 = vmul.f32 %v1827, %v1919
        %v1956 = vmul.f32 %v1828, %v1935
        %v1957 = vmul.f32 %v1829, %v1920
        %v1958 = vmul.f32 %v1830, %v1936
        %v1959 = vmul.f32 %v1831, %v1921
        %v1960 = vmul.f32 %v1832, %v1937
        %v1961 = vmul.f32 %v1833, %v1922
        %v1962 = vmul.f32 %v1834, %v1938
        %v1963 = vmul.f32 %v1835, %v1923
        %v1964 = vmul.f32 %v1836, %v1939
        %v1965 = vmul.f32 %v1837, %v1924
        %v1966 = vmul.f32 %v1838, %v1940
        %v1967 = vmul.f32 %v1839, %v1925
        %v1968 = vmul.f32 %v1840, %v1941
        %v1969 = vmul.f32 %v1841, %v1926
        %v1970 = vmul.f32 %v1842, %v1942
        %v1971 = vmul.f32 %v1843, %v1927
        %v1972 = vmul.f32 %v1844, %v1943
        %v1973 = vmul.f32 %v1845, %v1928
        %v1974 = vmul.f32 %v1846, %v1944
        %v1975 = vmul.f32 %v1847, %v1929
        %v1976 = vmul.f32 %v1848, %v1945
        %v1977 = vmul.f32 %v1849, %v1930
        %v1978 = vmul.f32 %v1850, %v1946
        %v1979 = vadd.f32 %v1733, %v1947
        %v1980 = vadd.f32 %v1734, %v1948
        %v1981 = vadd.f32 %v1735, %v1949
        %v1982 = vadd.f32 %v1736, %v1950
        %v1983 = vadd.f32 %v1737, %v1951
        %v1984 = vadd.f32 %v1738, %v1952
        %v1985 = vadd.f32 %v1739, %v1953
        %v1986 = vadd.f32 %v1740, %v1954
        %v1987 = vadd.f32 %v1741, %v1955
        %v1988 = vadd.f32 %v1742, %v1956
        %v1989 = vadd.f32 %v1743, %v1957
        %v1990 = vadd.f32 %v1744, %v1958
        %v1991 = vadd.f32 %v1745, %v1959
        %v1992 = vadd.f32 %v1746, %v1960
        %v1993 = vadd.f32 %v1747, %v1961
        %v1994 = vadd.f32 %v1748, %v1962
        %v1995 = vadd.f32 %v1749, %v1963
        %v1996 = vadd.f32 %v1750, %v1964
        %v1997 = vadd.f32 %v1751, %v1965
        %v1998 = vadd.f32 %v1752, %v1966
        %v1999 = vadd.f32 %v1753, %v1967
        %v2000 = vadd.f32 %v1754, %v1968
        %v2001 = vadd.f32 %v1755, %v1969
        %v2002 = vadd.f32 %v1756, %v1970
        %v2003 = vadd.f32 %v1757, %v1971
        %v2004 = vadd.f32 %v1758, %v1972
        %v2005 = vadd.f32 %v1759, %v1973
        %v2006 = vadd.f32 %v1760, %v1974
        %v2007 = vadd.f32 %v1761, %v1975
        %v2008 = vadd.f32 %v1762, %v1976
        %v2009 = vadd.f32 %v1763, %v1977
        %v2010 = vadd.f32 %v1764, %v1978
        %s2011 = scalar_lea.vmem %s1, 17
        %v2012 = vld [vmem:[%s2011] ss:$8 sm:$0x3]
        %s2013 = scalar_lea.vmem %s1, 18
        %v2014 = vld [vmem:[%s2013] ss:$8 sm:$0x3]
        %s2015 = scalar_lea.vmem %s1, 19
        %v2016 = vld [vmem:[%s2015] ss:$8 sm:$0x3]
        %v2018 = vlaneseq
        %v2019 = vshrl.u32 %v2018, 7
        %v2020 = vsub.s32 0, %v2019
        %v2021 = vrot.slane %v2012, %v2020
        %v2023 = vmul.f32 %v1325, %v2021
        %v2024 = vmul.f32 %v1327, %v2021
        %v2025 = vmul.f32 %v1329, %v2021
        %v2026 = vmul.f32 %v1331, %v2021
        %v2027 = vmul.f32 %v1333, %v2021
        %v2028 = vmul.f32 %v1335, %v2021
        %v2029 = vmul.f32 %v1337, %v2021
        %v2030 = vmul.f32 %v1339, %v2021
        %v2031 = vmul.f32 %v1341, %v2021
        %v2032 = vmul.f32 %v1343, %v2021
        %v2033 = vmul.f32 %v1345, %v2021
        %v2034 = vmul.f32 %v1347, %v2021
        %v2035 = vmul.f32 %v1349, %v2021
        %v2036 = vmul.f32 %v1351, %v2021
        %v2037 = vmul.f32 %v1353, %v2021
        %v2038 = vmul.f32 %v1355, %v2021
        %v2039 = vmul.f32 %v2023, %v1979
        %v2040 = vmul.f32 %v2024, %v1981
        %v2041 = vmul.f32 %v2025, %v1983
        %v2042 = vmul.f32 %v2026, %v1985
        %v2043 = vmul.f32 %v2027, %v1987
        %v2044 = vmul.f32 %v2028, %v1989
        %v2045 = vmul.f32 %v2029, %v1991
        %v2046 = vmul.f32 %v2030, %v1993
        %v2047 = vmul.f32 %v2031, %v1995
        %v2048 = vmul.f32 %v2032, %v1997
        %v2049 = vmul.f32 %v2033, %v1999
        %v2050 = vmul.f32 %v2034, %v2001
        %v2051 = vmul.f32 %v2035, %v2003
        %v2052 = vmul.f32 %v2036, %v2005
        %v2053 = vmul.f32 %v2037, %v2007
        %v2054 = vmul.f32 %v2038, %v2009
        %v2056 = vlaneseq
        %v2057 = vshrl.u32 %v2056, 7
        %v2058 = vsub.s32 0, %v2057
        %v2059 = vrot.slane %v2014, %v2058
        %v2061 = vsub.f32 %v2059, %v1037
        %v2062 = vsub.f32 %v2059, %v1038
        %v2063 = vsub.f32 %v2059, %v1039
        %v2064 = vsub.f32 %v2059, %v1040
        %v2065 = vsub.f32 %v2059, %v1041
        %v2066 = vsub.f32 %v2059, %v1042
        %v2067 = vsub.f32 %v2059, %v1043
        %v2068 = vsub.f32 %v2059, %v1044
        %v2069 = vsub.f32 %v2059, %v1045
        %v2070 = vsub.f32 %v2059, %v1046
        %v2071 = vsub.f32 %v2059, %v1047
        %v2072 = vsub.f32 %v2059, %v1048
        %v2073 = vsub.f32 %v2059, %v1049
        %v2074 = vsub.f32 %v2059, %v1050
        %v2075 = vsub.f32 %v2059, %v1051
        %v2076 = vsub.f32 %v2059, %v1052
        %v2078 = vlaneseq
        %v2079 = vshrl.u32 %v2078, 7
        %v2080 = vsub.s32 0, %v2079
        %v2081 = vrot.slane %v2016, %v2080
        %v2083 = vmul.f32 %v2061, %v2081
        %v2084 = vmul.f32 %v2062, %v2081
        %v2085 = vmul.f32 %v2063, %v2081
        %v2086 = vmul.f32 %v2064, %v2081
        %v2087 = vmul.f32 %v2065, %v2081
        %v2088 = vmul.f32 %v2066, %v2081
        %v2089 = vmul.f32 %v2067, %v2081
        %v2090 = vmul.f32 %v2068, %v2081
        %v2091 = vmul.f32 %v2069, %v2081
        %v2092 = vmul.f32 %v2070, %v2081
        %v2093 = vmul.f32 %v2071, %v2081
        %v2094 = vmul.f32 %v2072, %v2081
        %v2095 = vmul.f32 %v2073, %v2081
        %v2096 = vmul.f32 %v2074, %v2081
        %v2097 = vmul.f32 %v2075, %v2081
        %v2098 = vmul.f32 %v2076, %v2081
        %2099 = vrot.lane.b32.xlu0 %v1979, 112
        %v2100 = vpop.permute.xlu0 %2099
        %2101 = vrot.lane.b32.xlu0 %v1981, 112
        %v2102 = vpop.permute.xlu0 %2101
        %2103 = vrot.lane.b32.xlu0 %v1983, 112
        %v2104 = vpop.permute.xlu0 %2103
        %2105 = vrot.lane.b32.xlu0 %v1985, 112
        %v2106 = vpop.permute.xlu0 %2105
        %2107 = vrot.lane.b32.xlu0 %v1987, 112
        %v2108 = vpop.permute.xlu0 %2107
        %2109 = vrot.lane.b32.xlu0 %v1989, 112
        %v2110 = vpop.permute.xlu0 %2109
        %2111 = vrot.lane.b32.xlu0 %v1991, 112
        %v2112 = vpop.permute.xlu0 %2111
        %2113 = vrot.lane.b32.xlu0 %v1993, 112
        %v2114 = vpop.permute.xlu0 %2113
        %2115 = vrot.lane.b32.xlu0 %v1995, 112
        %v2116 = vpop.permute.xlu0 %2115
        %2117 = vrot.lane.b32.xlu0 %v1997, 112
        %v2118 = vpop.permute.xlu0 %2117
        %2119 = vrot.lane.b32.xlu0 %v1999, 112
        %v2120 = vpop.permute.xlu0 %2119
        %2121 = vrot.lane.b32.xlu0 %v2001, 112
        %v2122 = vpop.permute.xlu0 %2121
        %2123 = vrot.lane.b32.xlu0 %v2003, 112
        %v2124 = vpop.permute.xlu0 %2123
        %2125 = vrot.lane.b32.xlu0 %v2005, 112
        %v2126 = vpop.permute.xlu0 %2125
        %2127 = vrot.lane.b32.xlu0 %v2007, 112
        %v2128 = vpop.permute.xlu0 %2127
        %2129 = vrot.lane.b32.xlu0 %v2009, 112
        %v2130 = vpop.permute.xlu0 %2129
        %2131 = vrot.lane.b32.xlu0 %v1980, 112
        %v2132 = vpop.permute.xlu0 %2131
        %2133 = vrot.lane.b32.xlu0 %v1982, 112
        %v2134 = vpop.permute.xlu0 %2133
        %2135 = vrot.lane.b32.xlu0 %v1984, 112
        %v2136 = vpop.permute.xlu0 %2135
        %2137 = vrot.lane.b32.xlu0 %v1986, 112
        %v2138 = vpop.permute.xlu0 %2137
        %2139 = vrot.lane.b32.xlu0 %v1988, 112
        %v2140 = vpop.permute.xlu0 %2139
        %2141 = vrot.lane.b32.xlu0 %v1990, 112
        %v2142 = vpop.permute.xlu0 %2141
        %2143 = vrot.lane.b32.xlu0 %v1992, 112
        %v2144 = vpop.permute.xlu0 %2143
        %2145 = vrot.lane.b32.xlu0 %v1994, 112
        %v2146 = vpop.permute.xlu0 %2145
        %2147 = vrot.lane.b32.xlu0 %v1996, 112
        %v2148 = vpop.permute.xlu0 %2147
        %2149 = vrot.lane.b32.xlu0 %v1998, 112
        %v2150 = vpop.permute.xlu0 %2149
        %2151 = vrot.lane.b32.xlu0 %v2000, 112
        %v2152 = vpop.permute.xlu0 %2151
        %2153 = vrot.lane.b32.xlu0 %v2002, 112
        %v2154 = vpop.permute.xlu0 %2153
        %2155 = vrot.lane.b32.xlu0 %v2004, 112
        %v2156 = vpop.permute.xlu0 %2155
        %2157 = vrot.lane.b32.xlu0 %v2006, 112
        %v2158 = vpop.permute.xlu0 %2157
        %2159 = vrot.lane.b32.xlu0 %v2008, 112
        %v2160 = vpop.permute.xlu0 %2159
        %2161 = vrot.lane.b32.xlu0 %v2010, 112
        %v2162 = vpop.permute.xlu0 %2161
        %v2163 = vsel %vm1228, %v2100, %v2132
        %v2164 = vsel %vm1228, %v2102, %v2134
        %v2165 = vsel %vm1228, %v2104, %v2136
        %v2166 = vsel %vm1228, %v2106, %v2138
        %v2167 = vsel %vm1228, %v2108, %v2140
        %v2168 = vsel %vm1228, %v2110, %v2142
        %v2169 = vsel %vm1228, %v2112, %v2144
        %v2170 = vsel %vm1228, %v2114, %v2146
        %v2171 = vsel %vm1228, %v2116, %v2148
        %v2172 = vsel %vm1228, %v2118, %v2150
        %v2173 = vsel %vm1228, %v2120, %v2152
        %v2174 = vsel %vm1228, %v2122, %v2154
        %v2175 = vsel %vm1228, %v2124, %v2156
        %v2176 = vsel %vm1228, %v2126, %v2158
        %v2177 = vsel %vm1228, %v2128, %v2160
        %v2178 = vsel %vm1228, %v2130, %v2162
        %v2179 = vmul.f32 %v2083, %v2163
        %v2180 = vmul.f32 %v2084, %v2164
        %v2181 = vmul.f32 %v2085, %v2165
        %v2182 = vmul.f32 %v2086, %v2166
        %v2183 = vmul.f32 %v2087, %v2167
        %v2184 = vmul.f32 %v2088, %v2168
        %v2185 = vmul.f32 %v2089, %v2169
        %v2186 = vmul.f32 %v2090, %v2170
        %v2187 = vmul.f32 %v2091, %v2171
        %v2188 = vmul.f32 %v2092, %v2172
        %v2189 = vmul.f32 %v2093, %v2173
        %v2190 = vmul.f32 %v2094, %v2174
        %v2191 = vmul.f32 %v2095, %v2175
        %v2192 = vmul.f32 %v2096, %v2176
        %v2193 = vmul.f32 %v2097, %v2177
        %v2194 = vmul.f32 %v2098, %v2178
        %v2195 = vadd.f32 %v2039, %v2179
        %v2196 = vadd.f32 %v2040, %v2180
        %v2197 = vadd.f32 %v2041, %v2181
        %v2198 = vadd.f32 %v2042, %v2182
        %v2199 = vadd.f32 %v2043, %v2183
        %v2200 = vadd.f32 %v2044, %v2184
        %v2201 = vadd.f32 %v2045, %v2185
        %v2202 = vadd.f32 %v2046, %v2186
        %v2203 = vadd.f32 %v2047, %v2187
        %v2204 = vadd.f32 %v2048, %v2188
        %v2205 = vadd.f32 %v2049, %v2189
        %v2206 = vadd.f32 %v2050, %v2190
        %v2207 = vadd.f32 %v2051, %v2191
        %v2208 = vadd.f32 %v2052, %v2192
        %v2209 = vadd.f32 %v2053, %v2193
        %v2210 = vadd.f32 %v2054, %v2194
        %v2211 = vld [vmem:[%s1 + $0x14] ss:$0 sm:$0xff]
        %v2212 = vsub.f32 %v1037, %v2211
        %v2213 = vsub.f32 %v1038, %v2211
        %v2214 = vsub.f32 %v1039, %v2211
        %v2215 = vsub.f32 %v1040, %v2211
        %v2216 = vsub.f32 %v1041, %v2211
        %v2217 = vsub.f32 %v1042, %v2211
        %v2218 = vsub.f32 %v1043, %v2211
        %v2219 = vsub.f32 %v1044, %v2211
        %v2220 = vsub.f32 %v1045, %v2211
        %v2221 = vsub.f32 %v1046, %v2211
        %v2222 = vsub.f32 %v1047, %v2211
        %v2223 = vsub.f32 %v1048, %v2211
        %v2224 = vsub.f32 %v1049, %v2211
        %v2225 = vsub.f32 %v1050, %v2211
        %v2226 = vsub.f32 %v1051, %v2211
        %v2227 = vsub.f32 %v1052, %v2211
        %v2228 = vmul.f32 %v2212, 2.3333333
        %v2229 = vmul.f32 %v2213, 2.3333333
        %v2230 = vmul.f32 %v2214, 2.3333333
        %v2231 = vmul.f32 %v2215, 2.3333333
        %v2232 = vmul.f32 %v2216, 2.3333333
        %v2233 = vmul.f32 %v2217, 2.3333333
        %v2234 = vmul.f32 %v2218, 2.3333333
        %v2235 = vmul.f32 %v2219, 2.3333333
        %v2236 = vmul.f32 %v2220, 2.3333333
        %v2237 = vmul.f32 %v2221, 2.3333333
        %v2238 = vmul.f32 %v2222, 2.3333333
        %v2239 = vmul.f32 %v2223, 2.3333333
        %v2240 = vmul.f32 %v2224, 2.3333333
        %v2241 = vmul.f32 %v2225, 2.3333333
        %v2242 = vmul.f32 %v2226, 2.3333333
        %v2243 = vmul.f32 %v2227, 2.3333333
        %v2244 = vmul.f32 %v2228, %v2228
        %v2245 = vmul.f32 %v2229, %v2229
        %v2246 = vmul.f32 %v2230, %v2230
        %v2247 = vmul.f32 %v2231, %v2231
        %v2248 = vmul.f32 %v2232, %v2232
        %v2249 = vmul.f32 %v2233, %v2233
        %v2250 = vmul.f32 %v2234, %v2234
        %v2251 = vmul.f32 %v2235, %v2235
        %v2252 = vmul.f32 %v2236, %v2236
        %v2253 = vmul.f32 %v2237, %v2237
        %v2254 = vmul.f32 %v2238, %v2238
        %v2255 = vmul.f32 %v2239, %v2239
        %v2256 = vmul.f32 %v2240, %v2240
        %v2257 = vmul.f32 %v2241, %v2241
        %v2258 = vmul.f32 %v2242, %v2242
        %v2259 = vmul.f32 %v2243, %v2243
        %v2260 = vsub.f32 0.0, %v2244
        %v2261 = vsub.f32 0.0, %v2245
        %v2262 = vsub.f32 0.0, %v2246
        %v2263 = vsub.f32 0.0, %v2247
        %v2264 = vsub.f32 0.0, %v2248
        %v2265 = vsub.f32 0.0, %v2249
        %v2266 = vsub.f32 0.0, %v2250
        %v2267 = vsub.f32 0.0, %v2251
        %v2268 = vsub.f32 0.0, %v2252
        %v2269 = vsub.f32 0.0, %v2253
        %v2270 = vsub.f32 0.0, %v2254
        %v2271 = vsub.f32 0.0, %v2255
        %v2272 = vsub.f32 0.0, %v2256
        %v2273 = vsub.f32 0.0, %v2257
        %v2274 = vsub.f32 0.0, %v2258
        %v2275 = vsub.f32 0.0, %v2259
        %v2276 = vmul.f32 %v2260, 1.442695
        %v2277 = vpow.pop %v2276
        %v2278 = vmul.f32 %v2261, 1.442695
        %v2279 = vpow.pop %v2278
        %v2280 = vmul.f32 %v2262, 1.442695
        %v2281 = vpow.pop %v2280
        %v2282 = vmul.f32 %v2263, 1.442695
        %v2283 = vpow.pop %v2282
        %v2284 = vmul.f32 %v2264, 1.442695
        %v2285 = vpow.pop %v2284
        %v2286 = vmul.f32 %v2265, 1.442695
        %v2287 = vpow.pop %v2286
        %v2288 = vmul.f32 %v2266, 1.442695
        %v2289 = vpow.pop %v2288
        %v2290 = vmul.f32 %v2267, 1.442695
        %v2291 = vpow.pop %v2290
        %v2292 = vmul.f32 %v2268, 1.442695
        %v2293 = vpow.pop %v2292
        %v2294 = vmul.f32 %v2269, 1.442695
        %v2295 = vpow.pop %v2294
        %v2296 = vmul.f32 %v2270, 1.442695
        %v2297 = vpow.pop %v2296
        %v2298 = vmul.f32 %v2271, 1.442695
        %v2299 = vpow.pop %v2298
        %v2300 = vmul.f32 %v2272, 1.442695
        %v2301 = vpow.pop %v2300
        %v2302 = vmul.f32 %v2273, 1.442695
        %v2303 = vpow.pop %v2302
        %v2304 = vmul.f32 %v2274, 1.442695
        %v2305 = vpow.pop %v2304
        %v2306 = vmul.f32 %v2275, 1.442695
        %v2307 = vpow.pop %v2306
        %v2308 = vadd.f32 %v2195, %v2277
        %v2309 = vadd.f32 %v2196, %v2279
        %v2310 = vadd.f32 %v2197, %v2281
        %v2311 = vadd.f32 %v2198, %v2283
        %v2312 = vadd.f32 %v2199, %v2285
        %v2313 = vadd.f32 %v2200, %v2287
        %v2314 = vadd.f32 %v2201, %v2289
        %v2315 = vadd.f32 %v2202, %v2291
        %v2316 = vadd.f32 %v2203, %v2293
        %v2317 = vadd.f32 %v2204, %v2295
        %v2318 = vadd.f32 %v2205, %v2297
        %v2319 = vadd.f32 %v2206, %v2299
        %v2320 = vadd.f32 %v2207, %v2301
        %v2321 = vadd.f32 %v2208, %v2303
        %v2322 = vadd.f32 %v2209, %v2305
        %v2323 = vadd.f32 %v2210, %v2307
        %v2324 = vpack.c.bf16 %v2309, %v2308
        %v2325 = vpack.c.bf16 %v554, %v552
        %v2326 = vpack.c.bf16 %v2311, %v2310
        %v2327 = vpack.c.bf16 %v558, %v556
        %v2328 = vpack.c.bf16 %v2313, %v2312
        %v2329 = vpack.c.bf16 %v562, %v560
        %v2330 = vpack.c.bf16 %v2315, %v2314
        %v2331 = vpack.c.bf16 %v566, %v564
        %v2332 = vpack.c.bf16 %v2317, %v2316
        %v2333 = vpack.c.bf16 %v570, %v568
        %v2334 = vpack.c.bf16 %v2319, %v2318
        %v2335 = vpack.c.bf16 %v574, %v572
        %v2336 = vpack.c.bf16 %v2321, %v2320
        %v2337 = vpack.c.bf16 %v578, %v576
        %v2338 = vpack.c.bf16 %v2323, %v2322
        %v2339 = vpack.c.bf16 %v582, %v580
        %v2340 = vld [vmem:[%s2] sm:$0xf]
        %v2341 = vld [vmem:[%s2 + $0x4] sm:$0xf]
        %v2342 = vld [vmem:[%s2 + $0x8] sm:$0xf]
        %v2343 = vld [vmem:[%s2 + $0xc] sm:$0xf]
        %v2344 = vld [vmem:[%s2 + $0x10] sm:$0xf]
        %v2345 = vld [vmem:[%s2 + $0x14] sm:$0xf]
        %v2346 = vld [vmem:[%s2 + $0x18] sm:$0xf]
        %v2347 = vld [vmem:[%s2 + $0x1c] sm:$0xf]
        %v2348 = vld [vmem:[%s2 + $0x20] sm:$0xf]
        %v2349 = vld [vmem:[%s2 + $0x24] sm:$0xf]
        %v2350 = vld [vmem:[%s2 + $0x28] sm:$0xf]
        %v2351 = vld [vmem:[%s2 + $0x2c] sm:$0xf]
        %v2352 = vld [vmem:[%s2 + $0x30] sm:$0xf]
        %v2353 = vld [vmem:[%s2 + $0x34] sm:$0xf]
        %v2354 = vld [vmem:[%s2 + $0x38] sm:$0xf]
        %v2355 = vld [vmem:[%s2 + $0x3c] sm:$0xf]
        %v2356 = vld [vmem:[%s2 + $0x40] sm:$0xf]
        %v2357 = vld [vmem:[%s2 + $0x44] sm:$0xf]
        %v2376 = vunpack.c.l.b16 %v2340
        %v2377 = vunpack.c.l.b16 %v2341
        %v2378 = vunpack.c.l.b16 %v2342
        %v2379 = vunpack.c.l.b16 %v2343
        %v2380 = vunpack.c.l.b16 %v2344
        %v2381 = vunpack.c.l.b16 %v2345
        %v2382 = vunpack.c.l.b16 %v2346
        %v2383 = vunpack.c.l.b16 %v2347
        %v2384 = vunpack.c.l.b16 %v2348
        %v2385 = vunpack.c.l.b16 %v2349
        %v2386 = vunpack.c.l.b16 %v2350
        %v2387 = vunpack.c.l.b16 %v2351
        %v2388 = vunpack.c.l.b16 %v2352
        %v2389 = vunpack.c.l.b16 %v2353
        %v2390 = vunpack.c.l.b16 %v2354
        %v2391 = vunpack.c.l.b16 %v2355
        %v2392 = vunpack.c.l.b16 %v2356
        %v2393 = vunpack.c.l.b16 %v2357
        %v2394 = vpack.c.b16 %v2377, %v2376
        %v2395 = vpack.c.b16 %v2379, %v2378
        %v2396 = vpack.c.b16 %v2381, %v2380
        %v2397 = vpack.c.b16 %v2383, %v2382
        %v2398 = vpack.c.b16 %v2385, %v2384
        %v2399 = vpack.c.b16 %v2387, %v2386
        %v2400 = vpack.c.b16 %v2389, %v2388
        %v2401 = vpack.c.b16 %v2391, %v2390
        %v2402 = vpack.c.b16 %v2393, %v2392
        %v2413 = vsel %vm245, %v2325, 0
        %v2416 = vsel %vm245, %v2327, 0
        %v2419 = vsel %vm245, %v2329, 0
        %v2422 = vsel %vm245, %v2331, 0
        %v2425 = vsel %vm245, %v2333, 0
        %v2428 = vsel %vm245, %v2335, 0
        %v2431 = vsel %vm245, %v2337, 0
        %v2434 = vsel %vm245, %v2339, 0
        %2436 = vmatprep.subr.bf16.mxu0 0
        %2437 = vmatpush1.bf16.msra.mxu0 %v2394
        %2438 = vmatprep.subr.bf16.mxu0 0
        %2439 = vmatpush1.bf16.msra.mxu0 %v2395
        %2440 = vmatprep.subr.bf16.mxu0 0
        %2441 = vmatpush1.bf16.msra.mxu0 %v2396
        %2442 = vmatprep.subr.bf16.mxu0 0
        %2443 = vmatpush1.bf16.msra.mxu0 %v2397
        %2444 = vmatprep.subr.bf16.mxu0 0
        %2445 = vmatpush1.bf16.msra.mxu0 %v2398
        %2446 = vmatprep.subr.bf16.mxu0 0
        %2447 = vmatpush1.bf16.msra.mxu0 %v2399
        %2448 = vmatprep.subr.bf16.mxu0 0
        %2449 = vmatpush1.bf16.msra.mxu0 %v2400
        %2450 = vmatprep.subr.bf16.mxu0 0
        %2451 = vmatpush1.bf16.msra.mxu0 %v2401
        %2452 = vmatprep.subr.bf16.mxu0 0
        %2453 = vmatpush1.bf16.msra.mxu0 %v2402
        %2454 = vmatprep.subr.bf16.mxu0 0
        %2455 = vmatpush1.bf16.msra.mxu0 0
        %2456 = vmatprep.subr.bf16.mxu0 0
        %2457 = vmatpush1.bf16.msra.mxu0 0
        %2458 = vmatprep.subr.bf16.mxu0 0
        %2459 = vmatpush1.bf16.msra.mxu0 0
        %2460 = vmatprep.subr.bf16.mxu0 0
        %2461 = vmatpush1.bf16.msra.mxu0 0
        %2462 = vmatprep.subr.bf16.mxu0 0
        %2463 = vmatpush1.bf16.msra.mxu0 0
        %2464 = vmatprep.subr.bf16.mxu0 0
        %2465 = vmatpush1.bf16.msra.mxu0 0
        %2466 = vmatprep.subr.bf16.mxu0 0
        %2467 = vmatpush1.bf16.msra.mxu0 0
        %2468 = vmatprep.mubr.bf16.mxu0 %v2413
        %2469 = vmatmul.mubr.bf16.gmra.mrb[0].mxu0 %v2324
        %v2470 = vpop.f32.mrb[0].mxu0
        %v2471 = vadd.f32 0.0, %v2470
        %v2472 = vpop.f32.mrb[0].mxu0
        %v2473 = vpop.f32.mrb[0].mxu0
        %v2474 = vadd.f32 0.0, %v2473
        %v2475 = vpop.f32.mrb[0].mxu0
        %2476 = vmatprep.mubr.bf16.mxu0 %v2416
        %2477 = vmatmul.mubr.bf16.gmra.mrb[0].mxu0 %v2326
        %v2478 = vpop.f32.mrb[0].mxu0
        %v2479 = vadd.f32 0.0, %v2478
        %v2480 = vpop.f32.mrb[0].mxu0
        %v2481 = vpop.f32.mrb[0].mxu0
        %v2482 = vadd.f32 0.0, %v2481
        %v2483 = vpop.f32.mrb[0].mxu0
        %2484 = vmatprep.mubr.bf16.mxu0 %v2419
        %2485 = vmatmul.mubr.bf16.gmra.mrb[0].mxu0 %v2328
        %v2486 = vpop.f32.mrb[0].mxu0
        %v2487 = vadd.f32 0.0, %v2486
        %v2488 = vpop.f32.mrb[0].mxu0
        %v2489 = vpop.f32.mrb[0].mxu0
        %v2490 = vadd.f32 0.0, %v2489
        %v2491 = vpop.f32.mrb[0].mxu0
        %2492 = vmatprep.mubr.bf16.mxu0 %v2422
        %2493 = vmatmul.mubr.bf16.gmra.mrb[0].mxu0 %v2330
        %v2494 = vpop.f32.mrb[0].mxu0
        %v2495 = vadd.f32 0.0, %v2494
        %v2496 = vpop.f32.mrb[0].mxu0
        %v2497 = vpop.f32.mrb[0].mxu0
        %v2498 = vadd.f32 0.0, %v2497
        %v2499 = vpop.f32.mrb[0].mxu0
        %2500 = vmatprep.mubr.bf16.mxu0 %v2425
        %2501 = vmatmul.mubr.bf16.gmra.mrb[0].mxu0 %v2332
        %v2502 = vpop.f32.mrb[0].mxu0
        %v2503 = vadd.f32 0.0, %v2502
        %v2504 = vpop.f32.mrb[0].mxu0
        %v2505 = vpop.f32.mrb[0].mxu0
        %v2506 = vadd.f32 0.0, %v2505
        %v2507 = vpop.f32.mrb[0].mxu0
        %2508 = vmatprep.mubr.bf16.mxu0 %v2428
        %2509 = vmatmul.mubr.bf16.gmra.mrb[0].mxu0 %v2334
        %v2510 = vpop.f32.mrb[0].mxu0
        %v2511 = vadd.f32 0.0, %v2510
        %v2512 = vpop.f32.mrb[0].mxu0
        %v2513 = vpop.f32.mrb[0].mxu0
        %v2514 = vadd.f32 0.0, %v2513
        %v2515 = vpop.f32.mrb[0].mxu0
        %2516 = vmatprep.mubr.bf16.mxu0 %v2431
        %2517 = vmatmul.mubr.bf16.gmra.mrb[0].mxu0 %v2336
        %v2518 = vpop.f32.mrb[0].mxu0
        %v2519 = vadd.f32 0.0, %v2518
        %v2520 = vpop.f32.mrb[0].mxu0
        %v2521 = vpop.f32.mrb[0].mxu0
        %v2522 = vadd.f32 0.0, %v2521
        %v2523 = vpop.f32.mrb[0].mxu0
        %2524 = vmatprep.mubr.bf16.mxu0 %v2434
        %2525 = vmatmul.mubr.bf16.gmra.mrb[0].mxu0 %v2338
        %v2526 = vpop.f32.mrb[0].mxu0
        %v2527 = vadd.f32 0.0, %v2526
        %v2528 = vpop.f32.mrb[0].mxu0
        %v2529 = vpop.f32.mrb[0].mxu0
        %v2530 = vadd.f32 0.0, %v2529
        %v2531 = vpop.f32.mrb[0].mxu0
        %2532 = vdwg.mxu0
        %v2533 = vld [vmem:[%s3] ss:$0 sm:$0xff]
        %v2534 = vld [vmem:[%s3 + $0x1] ss:$0 sm:$0xff]
        %v2535 = vsel %vm951, %v2471, 0.0
        %2536 = vadd.xlane.f32.xlu0 %v2535
        %v2537 = vpop.xlane.xlu0 %2536
        %v2538 = vsel %vm951, %v2474, 0.0
        %2539 = vadd.xlane.f32.xlu0 %v2538
        %v2540 = vpop.xlane.xlu0 %2539
        %v2541 = vsel %vm951, %v2479, 0.0
        %2542 = vadd.xlane.f32.xlu0 %v2541
        %v2543 = vpop.xlane.xlu0 %2542
        %v2544 = vsel %vm951, %v2482, 0.0
        %2545 = vadd.xlane.f32.xlu0 %v2544
        %v2546 = vpop.xlane.xlu0 %2545
        %v2547 = vsel %vm951, %v2487, 0.0
        %2548 = vadd.xlane.f32.xlu0 %v2547
        %v2549 = vpop.xlane.xlu0 %2548
        %v2550 = vsel %vm951, %v2490, 0.0
        %2551 = vadd.xlane.f32.xlu0 %v2550
        %v2552 = vpop.xlane.xlu0 %2551
        %v2553 = vsel %vm951, %v2495, 0.0
        %2554 = vadd.xlane.f32.xlu0 %v2553
        %v2555 = vpop.xlane.xlu0 %2554
        %v2556 = vsel %vm951, %v2498, 0.0
        %2557 = vadd.xlane.f32.xlu0 %v2556
        %v2558 = vpop.xlane.xlu0 %2557
        %v2559 = vsel %vm951, %v2503, 0.0
        %2560 = vadd.xlane.f32.xlu0 %v2559
        %v2561 = vpop.xlane.xlu0 %2560
        %v2562 = vsel %vm951, %v2506, 0.0
        %2563 = vadd.xlane.f32.xlu0 %v2562
        %v2564 = vpop.xlane.xlu0 %2563
        %v2565 = vsel %vm951, %v2511, 0.0
        %2566 = vadd.xlane.f32.xlu0 %v2565
        %v2567 = vpop.xlane.xlu0 %2566
        %v2568 = vsel %vm951, %v2514, 0.0
        %2569 = vadd.xlane.f32.xlu0 %v2568
        %v2570 = vpop.xlane.xlu0 %2569
        %v2571 = vsel %vm951, %v2519, 0.0
        %2572 = vadd.xlane.f32.xlu0 %v2571
        %v2573 = vpop.xlane.xlu0 %2572
        %v2574 = vsel %vm951, %v2522, 0.0
        %2575 = vadd.xlane.f32.xlu0 %v2574
        %v2576 = vpop.xlane.xlu0 %2575
        %v2577 = vsel %vm951, %v2527, 0.0
        %2578 = vadd.xlane.f32.xlu0 %v2577
        %v2579 = vpop.xlane.xlu0 %2578
        %v2580 = vsel %vm951, %v2530, 0.0
        %2581 = vadd.xlane.f32.xlu0 %v2580
        %v2582 = vpop.xlane.xlu0 %2581
        %v2583 = vrcp.pop 32.0
        %v2584 = vmul.f32 %v2537, %v2583
        %v2585 = vmul.f32 %v2540, %v2583
        %v2586 = vmul.f32 %v2543, %v2583
        %v2587 = vmul.f32 %v2546, %v2583
        %v2588 = vmul.f32 %v2549, %v2583
        %v2589 = vmul.f32 %v2552, %v2583
        %v2590 = vmul.f32 %v2555, %v2583
        %v2591 = vmul.f32 %v2558, %v2583
        %v2592 = vmul.f32 %v2561, %v2583
        %v2593 = vmul.f32 %v2564, %v2583
        %v2594 = vmul.f32 %v2567, %v2583
        %v2595 = vmul.f32 %v2570, %v2583
        %v2596 = vmul.f32 %v2573, %v2583
        %v2597 = vmul.f32 %v2576, %v2583
        %v2598 = vmul.f32 %v2579, %v2583
        %v2599 = vmul.f32 %v2582, %v2583
        %v2600 = vsub.f32 %v2471, %v2584
        %v2601 = vsub.f32 %v2474, %v2585
        %v2602 = vsub.f32 %v2479, %v2586
        %v2603 = vsub.f32 %v2482, %v2587
        %v2604 = vsub.f32 %v2487, %v2588
        %v2605 = vsub.f32 %v2490, %v2589
        %v2606 = vsub.f32 %v2495, %v2590
        %v2607 = vsub.f32 %v2498, %v2591
        %v2608 = vsub.f32 %v2503, %v2592
        %v2609 = vsub.f32 %v2506, %v2593
        %v2610 = vsub.f32 %v2511, %v2594
        %v2611 = vsub.f32 %v2514, %v2595
        %v2612 = vsub.f32 %v2519, %v2596
        %v2613 = vsub.f32 %v2522, %v2597
        %v2614 = vsub.f32 %v2527, %v2598
        %v2615 = vsub.f32 %v2530, %v2599
        %v2616 = vmul.f32 %v2600, %v2600
        %v2617 = vmul.f32 %v2601, %v2601
        %v2618 = vmul.f32 %v2602, %v2602
        %v2619 = vmul.f32 %v2603, %v2603
        %v2620 = vmul.f32 %v2604, %v2604
        %v2621 = vmul.f32 %v2605, %v2605
        %v2622 = vmul.f32 %v2606, %v2606
        %v2623 = vmul.f32 %v2607, %v2607
        %v2624 = vmul.f32 %v2608, %v2608
        %v2625 = vmul.f32 %v2609, %v2609
        %v2626 = vmul.f32 %v2610, %v2610
        %v2627 = vmul.f32 %v2611, %v2611
        %v2628 = vmul.f32 %v2612, %v2612
        %v2629 = vmul.f32 %v2613, %v2613
        %v2630 = vmul.f32 %v2614, %v2614
        %v2631 = vmul.f32 %v2615, %v2615
        %v2632 = vsel %vm951, %v2616, 0.0
        %2633 = vadd.xlane.f32.xlu0 %v2632
        %v2634 = vpop.xlane.xlu0 %2633
        %v2635 = vsel %vm951, %v2617, 0.0
        %2636 = vadd.xlane.f32.xlu0 %v2635
        %v2637 = vpop.xlane.xlu0 %2636
        %v2638 = vsel %vm951, %v2618, 0.0
        %2639 = vadd.xlane.f32.xlu0 %v2638
        %v2640 = vpop.xlane.xlu0 %2639
        %v2641 = vsel %vm951, %v2619, 0.0
        %2642 = vadd.xlane.f32.xlu0 %v2641
        %v2643 = vpop.xlane.xlu0 %2642
        %v2644 = vsel %vm951, %v2620, 0.0
        %2645 = vadd.xlane.f32.xlu0 %v2644
        %v2646 = vpop.xlane.xlu0 %2645
        %v2647 = vsel %vm951, %v2621, 0.0
        %2648 = vadd.xlane.f32.xlu0 %v2647
        %v2649 = vpop.xlane.xlu0 %2648
        %v2650 = vsel %vm951, %v2622, 0.0
        %2651 = vadd.xlane.f32.xlu0 %v2650
        %v2652 = vpop.xlane.xlu0 %2651
        %v2653 = vsel %vm951, %v2623, 0.0
        %2654 = vadd.xlane.f32.xlu0 %v2653
        %v2655 = vpop.xlane.xlu0 %2654
        %v2656 = vsel %vm951, %v2624, 0.0
        %2657 = vadd.xlane.f32.xlu0 %v2656
        %v2658 = vpop.xlane.xlu0 %2657
        %v2659 = vsel %vm951, %v2625, 0.0
        %2660 = vadd.xlane.f32.xlu0 %v2659
        %v2661 = vpop.xlane.xlu0 %2660
        %v2662 = vsel %vm951, %v2626, 0.0
        %2663 = vadd.xlane.f32.xlu0 %v2662
        %v2664 = vpop.xlane.xlu0 %2663
        %v2665 = vsel %vm951, %v2627, 0.0
        %2666 = vadd.xlane.f32.xlu0 %v2665
        %v2667 = vpop.xlane.xlu0 %2666
        %v2668 = vsel %vm951, %v2628, 0.0
        %2669 = vadd.xlane.f32.xlu0 %v2668
        %v2670 = vpop.xlane.xlu0 %2669
        %v2671 = vsel %vm951, %v2629, 0.0
        %2672 = vadd.xlane.f32.xlu0 %v2671
        %v2673 = vpop.xlane.xlu0 %2672
        %v2674 = vsel %vm951, %v2630, 0.0
        %2675 = vadd.xlane.f32.xlu0 %v2674
        %v2676 = vpop.xlane.xlu0 %2675
        %v2677 = vsel %vm951, %v2631, 0.0
        %2678 = vadd.xlane.f32.xlu0 %v2677
        %v2679 = vpop.xlane.xlu0 %2678
        %v2680 = vmul.f32 %v2634, %v2583
        %v2681 = vmul.f32 %v2637, %v2583
        %v2682 = vmul.f32 %v2640, %v2583
        %v2683 = vmul.f32 %v2643, %v2583
        %v2684 = vmul.f32 %v2646, %v2583
        %v2685 = vmul.f32 %v2649, %v2583
        %v2686 = vmul.f32 %v2652, %v2583
        %v2687 = vmul.f32 %v2655, %v2583
        %v2688 = vmul.f32 %v2658, %v2583
        %v2689 = vmul.f32 %v2661, %v2583
        %v2690 = vmul.f32 %v2664, %v2583
        %v2691 = vmul.f32 %v2667, %v2583
        %v2692 = vmul.f32 %v2670, %v2583
        %v2693 = vmul.f32 %v2673, %v2583
        %v2694 = vmul.f32 %v2676, %v2583
        %v2695 = vmul.f32 %v2679, %v2583
        %v2696 = vadd.f32 %v2680, 1e-05
        %v2697 = vadd.f32 %v2681, 1e-05
        %v2698 = vadd.f32 %v2682, 1e-05
        %v2699 = vadd.f32 %v2683, 1e-05
        %v2700 = vadd.f32 %v2684, 1e-05
        %v2701 = vadd.f32 %v2685, 1e-05
        %v2702 = vadd.f32 %v2686, 1e-05
        %v2703 = vadd.f32 %v2687, 1e-05
        %v2704 = vadd.f32 %v2688, 1e-05
        %v2705 = vadd.f32 %v2689, 1e-05
        %v2706 = vadd.f32 %v2690, 1e-05
        %v2707 = vadd.f32 %v2691, 1e-05
        %v2708 = vadd.f32 %v2692, 1e-05
        %v2709 = vadd.f32 %v2693, 1e-05
        %v2710 = vadd.f32 %v2694, 1e-05
        %v2711 = vadd.f32 %v2695, 1e-05
        %v2712 = vrsqrt.pop %v2696
        %v2713 = vrsqrt.pop %v2697
        %v2714 = vrsqrt.pop %v2698
        %v2715 = vrsqrt.pop %v2699
        %v2716 = vrsqrt.pop %v2700
        %v2717 = vrsqrt.pop %v2701
        %v2718 = vrsqrt.pop %v2702
        %v2719 = vrsqrt.pop %v2703
        %v2720 = vrsqrt.pop %v2704
        %v2721 = vrsqrt.pop %v2705
        %v2722 = vrsqrt.pop %v2706
        %v2723 = vrsqrt.pop %v2707
        %v2724 = vrsqrt.pop %v2708
        %v2725 = vrsqrt.pop %v2709
        %v2726 = vrsqrt.pop %v2710
        %v2727 = vrsqrt.pop %v2711
        %v2728 = vmul.f32 %v2600, %v2712
        %v2729 = vmul.f32 %v2601, %v2713
        %v2730 = vmul.f32 %v2602, %v2714
        %v2731 = vmul.f32 %v2603, %v2715
        %v2732 = vmul.f32 %v2604, %v2716
        %v2733 = vmul.f32 %v2605, %v2717
        %v2734 = vmul.f32 %v2606, %v2718
        %v2735 = vmul.f32 %v2607, %v2719
        %v2736 = vmul.f32 %v2608, %v2720
        %v2737 = vmul.f32 %v2609, %v2721
        %v2738 = vmul.f32 %v2610, %v2722
        %v2739 = vmul.f32 %v2611, %v2723
        %v2740 = vmul.f32 %v2612, %v2724
        %v2741 = vmul.f32 %v2613, %v2725
        %v2742 = vmul.f32 %v2614, %v2726
        %v2743 = vmul.f32 %v2615, %v2727
        %v2744 = vmul.f32 %v2728, %v2533
        %v2745 = vmul.f32 %v2729, %v2533
        %v2746 = vmul.f32 %v2730, %v2533
        %v2747 = vmul.f32 %v2731, %v2533
        %v2748 = vmul.f32 %v2732, %v2533
        %v2749 = vmul.f32 %v2733, %v2533
        %v2750 = vmul.f32 %v2734, %v2533
        %v2751 = vmul.f32 %v2735, %v2533
        %v2752 = vmul.f32 %v2736, %v2533
        %v2753 = vmul.f32 %v2737, %v2533
        %v2754 = vmul.f32 %v2738, %v2533
        %v2755 = vmul.f32 %v2739, %v2533
        %v2756 = vmul.f32 %v2740, %v2533
        %v2757 = vmul.f32 %v2741, %v2533
        %v2758 = vmul.f32 %v2742, %v2533
        %v2759 = vmul.f32 %v2743, %v2533
        %v2760 = vadd.f32 %v2744, %v2534
        %v2761 = vadd.f32 %v2745, %v2534
        %v2762 = vadd.f32 %v2746, %v2534
        %v2763 = vadd.f32 %v2747, %v2534
        %v2764 = vadd.f32 %v2748, %v2534
        %v2765 = vadd.f32 %v2749, %v2534
        %v2766 = vadd.f32 %v2750, %v2534
        %v2767 = vadd.f32 %v2751, %v2534
        %v2768 = vadd.f32 %v2752, %v2534
        %v2769 = vadd.f32 %v2753, %v2534
        %v2770 = vadd.f32 %v2754, %v2534
        %v2771 = vadd.f32 %v2755, %v2534
        %v2772 = vadd.f32 %v2756, %v2534
        %v2773 = vadd.f32 %v2757, %v2534
        %v2774 = vadd.f32 %v2758, %v2534
        %v2775 = vadd.f32 %v2759, %v2534
        %v2776 = vsub.f32 0.0, %v2760
        %v2777 = vsub.f32 0.0, %v2761
        %v2778 = vsub.f32 0.0, %v2762
        %v2779 = vsub.f32 0.0, %v2763
        %v2780 = vsub.f32 0.0, %v2764
        %v2781 = vsub.f32 0.0, %v2765
        %v2782 = vsub.f32 0.0, %v2766
        %v2783 = vsub.f32 0.0, %v2767
        %v2784 = vsub.f32 0.0, %v2768
        %v2785 = vsub.f32 0.0, %v2769
        %v2786 = vsub.f32 0.0, %v2770
        %v2787 = vsub.f32 0.0, %v2771
        %v2788 = vsub.f32 0.0, %v2772
        %v2789 = vsub.f32 0.0, %v2773
        %v2790 = vsub.f32 0.0, %v2774
        %v2791 = vsub.f32 0.0, %v2775
        %v2792 = vmul.f32 %v2776, 1.442695
        %v2793 = vpow.pop %v2792
        %v2794 = vmul.f32 %v2777, 1.442695
        %v2795 = vpow.pop %v2794
        %v2796 = vmul.f32 %v2778, 1.442695
        %v2797 = vpow.pop %v2796
        %v2798 = vmul.f32 %v2779, 1.442695
        %v2799 = vpow.pop %v2798
        %v2800 = vmul.f32 %v2780, 1.442695
        %v2801 = vpow.pop %v2800
        %v2802 = vmul.f32 %v2781, 1.442695
        %v2803 = vpow.pop %v2802
        %v2804 = vmul.f32 %v2782, 1.442695
        %v2805 = vpow.pop %v2804
        %v2806 = vmul.f32 %v2783, 1.442695
        %v2807 = vpow.pop %v2806
        %v2808 = vmul.f32 %v2784, 1.442695
        %v2809 = vpow.pop %v2808
        %v2810 = vmul.f32 %v2785, 1.442695
        %v2811 = vpow.pop %v2810
        %v2812 = vmul.f32 %v2786, 1.442695
        %v2813 = vpow.pop %v2812
        %v2814 = vmul.f32 %v2787, 1.442695
        %v2815 = vpow.pop %v2814
        %v2816 = vmul.f32 %v2788, 1.442695
        %v2817 = vpow.pop %v2816
        %v2818 = vmul.f32 %v2789, 1.442695
        %v2819 = vpow.pop %v2818
        %v2820 = vmul.f32 %v2790, 1.442695
        %v2821 = vpow.pop %v2820
        %v2822 = vmul.f32 %v2791, 1.442695
        %v2823 = vpow.pop %v2822
        %v2824 = vadd.f32 %v2793, 1.0
        %v2825 = vadd.f32 %v2795, 1.0
        %v2826 = vadd.f32 %v2797, 1.0
        %v2827 = vadd.f32 %v2799, 1.0
        %v2828 = vadd.f32 %v2801, 1.0
        %v2829 = vadd.f32 %v2803, 1.0
        %v2830 = vadd.f32 %v2805, 1.0
        %v2831 = vadd.f32 %v2807, 1.0
        %v2832 = vadd.f32 %v2809, 1.0
        %v2833 = vadd.f32 %v2811, 1.0
        %v2834 = vadd.f32 %v2813, 1.0
        %v2835 = vadd.f32 %v2815, 1.0
        %v2836 = vadd.f32 %v2817, 1.0
        %v2837 = vadd.f32 %v2819, 1.0
        %v2838 = vadd.f32 %v2821, 1.0
        %v2839 = vadd.f32 %v2823, 1.0
        %v2840 = vrcp.pop %v2824
        %v2841 = vmul.f32 %v2760, %v2840
        %v2842 = vrcp.pop %v2825
        %v2843 = vmul.f32 %v2761, %v2842
        %v2844 = vrcp.pop %v2826
        %v2845 = vmul.f32 %v2762, %v2844
        %v2846 = vrcp.pop %v2827
        %v2847 = vmul.f32 %v2763, %v2846
        %v2848 = vrcp.pop %v2828
        %v2849 = vmul.f32 %v2764, %v2848
        %v2850 = vrcp.pop %v2829
        %v2851 = vmul.f32 %v2765, %v2850
        %v2852 = vrcp.pop %v2830
        %v2853 = vmul.f32 %v2766, %v2852
        %v2854 = vrcp.pop %v2831
        %v2855 = vmul.f32 %v2767, %v2854
        %v2856 = vrcp.pop %v2832
        %v2857 = vmul.f32 %v2768, %v2856
        %v2858 = vrcp.pop %v2833
        %v2859 = vmul.f32 %v2769, %v2858
        %v2860 = vrcp.pop %v2834
        %v2861 = vmul.f32 %v2770, %v2860
        %v2862 = vrcp.pop %v2835
        %v2863 = vmul.f32 %v2771, %v2862
        %v2864 = vrcp.pop %v2836
        %v2865 = vmul.f32 %v2772, %v2864
        %v2866 = vrcp.pop %v2837
        %v2867 = vmul.f32 %v2773, %v2866
        %v2868 = vrcp.pop %v2838
        %v2869 = vmul.f32 %v2774, %v2868
        %v2870 = vrcp.pop %v2839
        %v2871 = vmul.f32 %v2775, %v2870
        %2888 = vrot.lane.b32.xlu0 %v2760, 32
        %v2889 = vpop.permute.xlu0 %2888
        %2890 = vrot.lane.b32.xlu0 %v2761, 32
        %v2891 = vpop.permute.xlu0 %2890
        %2892 = vrot.lane.b32.xlu0 %v2762, 32
        %v2893 = vpop.permute.xlu0 %2892
        %2894 = vrot.lane.b32.xlu0 %v2763, 32
        %v2895 = vpop.permute.xlu0 %2894
        %2896 = vrot.lane.b32.xlu0 %v2764, 32
        %v2897 = vpop.permute.xlu0 %2896
        %2898 = vrot.lane.b32.xlu0 %v2765, 32
        %v2899 = vpop.permute.xlu0 %2898
        %2900 = vrot.lane.b32.xlu0 %v2766, 32
        %v2901 = vpop.permute.xlu0 %2900
        %2902 = vrot.lane.b32.xlu0 %v2767, 32
        %v2903 = vpop.permute.xlu0 %2902
        %2904 = vrot.lane.b32.xlu0 %v2768, 32
        %v2905 = vpop.permute.xlu0 %2904
        %2906 = vrot.lane.b32.xlu0 %v2769, 32
        %v2907 = vpop.permute.xlu0 %2906
        %2908 = vrot.lane.b32.xlu0 %v2770, 32
        %v2909 = vpop.permute.xlu0 %2908
        %2910 = vrot.lane.b32.xlu0 %v2771, 32
        %v2911 = vpop.permute.xlu0 %2910
        %2912 = vrot.lane.b32.xlu0 %v2772, 32
        %v2913 = vpop.permute.xlu0 %2912
        %2914 = vrot.lane.b32.xlu0 %v2773, 32
        %v2915 = vpop.permute.xlu0 %2914
        %2916 = vrot.lane.b32.xlu0 %v2774, 32
        %v2917 = vpop.permute.xlu0 %2916
        %2918 = vrot.lane.b32.xlu0 %v2775, 32
        %v2919 = vpop.permute.xlu0 %2918
        %2936 = vrot.lane.b32.xlu0 %v2760, 64
        %v2937 = vpop.permute.xlu0 %2936
        %2938 = vrot.lane.b32.xlu0 %v2761, 64
        %v2939 = vpop.permute.xlu0 %2938
        %2940 = vrot.lane.b32.xlu0 %v2762, 64
        %v2941 = vpop.permute.xlu0 %2940
        %2942 = vrot.lane.b32.xlu0 %v2763, 64
        %v2943 = vpop.permute.xlu0 %2942
        %2944 = vrot.lane.b32.xlu0 %v2764, 64
        %v2945 = vpop.permute.xlu0 %2944
        %2946 = vrot.lane.b32.xlu0 %v2765, 64
        %v2947 = vpop.permute.xlu0 %2946
        %2948 = vrot.lane.b32.xlu0 %v2766, 64
        %v2949 = vpop.permute.xlu0 %2948
        %2950 = vrot.lane.b32.xlu0 %v2767, 64
        %v2951 = vpop.permute.xlu0 %2950
        %2952 = vrot.lane.b32.xlu0 %v2768, 64
        %v2953 = vpop.permute.xlu0 %2952
        %2954 = vrot.lane.b32.xlu0 %v2769, 64
        %v2955 = vpop.permute.xlu0 %2954
        %2956 = vrot.lane.b32.xlu0 %v2770, 64
        %v2957 = vpop.permute.xlu0 %2956
        %2958 = vrot.lane.b32.xlu0 %v2771, 64
        %v2959 = vpop.permute.xlu0 %2958
        %2960 = vrot.lane.b32.xlu0 %v2772, 64
        %v2961 = vpop.permute.xlu0 %2960
        %2962 = vrot.lane.b32.xlu0 %v2773, 64
        %v2963 = vpop.permute.xlu0 %2962
        %2964 = vrot.lane.b32.xlu0 %v2774, 64
        %v2965 = vpop.permute.xlu0 %2964
        %2966 = vrot.lane.b32.xlu0 %v2775, 64
        %v2967 = vpop.permute.xlu0 %2966
        %2984 = vrot.lane.b32.xlu0 %v2760, 96
        %v2985 = vpop.permute.xlu0 %2984
        %2986 = vrot.lane.b32.xlu0 %v2761, 96
        %v2987 = vpop.permute.xlu0 %2986
        %2988 = vrot.lane.b32.xlu0 %v2762, 96
        %v2989 = vpop.permute.xlu0 %2988
        %2990 = vrot.lane.b32.xlu0 %v2763, 96
        %v2991 = vpop.permute.xlu0 %2990
        %2992 = vrot.lane.b32.xlu0 %v2764, 96
        %v2993 = vpop.permute.xlu0 %2992
        %2994 = vrot.lane.b32.xlu0 %v2765, 96
        %v2995 = vpop.permute.xlu0 %2994
        %2996 = vrot.lane.b32.xlu0 %v2766, 96
        %v2997 = vpop.permute.xlu0 %2996
        %2998 = vrot.lane.b32.xlu0 %v2767, 96
        %v2999 = vpop.permute.xlu0 %2998
        %3000 = vrot.lane.b32.xlu0 %v2768, 96
        %v3001 = vpop.permute.xlu0 %3000
        %3002 = vrot.lane.b32.xlu0 %v2769, 96
        %v3003 = vpop.permute.xlu0 %3002
        %3004 = vrot.lane.b32.xlu0 %v2770, 96
        %v3005 = vpop.permute.xlu0 %3004
        %3006 = vrot.lane.b32.xlu0 %v2771, 96
        %v3007 = vpop.permute.xlu0 %3006
        %3008 = vrot.lane.b32.xlu0 %v2772, 96
        %v3009 = vpop.permute.xlu0 %3008
        %3010 = vrot.lane.b32.xlu0 %v2773, 96
        %v3011 = vpop.permute.xlu0 %3010
        %3012 = vrot.lane.b32.xlu0 %v2774, 96
        %v3013 = vpop.permute.xlu0 %3012
        %3014 = vrot.lane.b32.xlu0 %v2775, 96
        %v3015 = vpop.permute.xlu0 %3014
        %v3032 = vsel %vm951, %v2760, %v2889
        %v3033 = vsel %vm951, %v2761, %v2891
        %v3034 = vsel %vm951, %v2762, %v2893
        %v3035 = vsel %vm951, %v2763, %v2895
        %v3036 = vsel %vm951, %v2764, %v2897
        %v3037 = vsel %vm951, %v2765, %v2899
        %v3038 = vsel %vm951, %v2766, %v2901
        %v3039 = vsel %vm951, %v2767, %v2903
        %v3040 = vsel %vm951, %v2768, %v2905
        %v3041 = vsel %vm951, %v2769, %v2907
        %v3042 = vsel %vm951, %v2770, %v2909
        %v3043 = vsel %vm951, %v2771, %v2911
        %v3044 = vsel %vm951, %v2772, %v2913
        %v3045 = vsel %vm951, %v2773, %v2915
        %v3046 = vsel %vm951, %v2774, %v2917
        %v3047 = vsel %vm951, %v2775, %v2919
        %v3048 = vsel %vm985, %v3032, %v2937
        %v3049 = vsel %vm985, %v3033, %v2939
        %v3050 = vsel %vm985, %v3034, %v2941
        %v3051 = vsel %vm985, %v3035, %v2943
        %v3052 = vsel %vm985, %v3036, %v2945
        %v3053 = vsel %vm985, %v3037, %v2947
        %v3054 = vsel %vm985, %v3038, %v2949
        %v3055 = vsel %vm985, %v3039, %v2951
        %v3056 = vsel %vm985, %v3040, %v2953
        %v3057 = vsel %vm985, %v3041, %v2955
        %v3058 = vsel %vm985, %v3042, %v2957
        %v3059 = vsel %vm985, %v3043, %v2959
        %v3060 = vsel %vm985, %v3044, %v2961
        %v3061 = vsel %vm985, %v3045, %v2963
        %v3062 = vsel %vm985, %v3046, %v2965
        %v3063 = vsel %vm985, %v3047, %v2967
        %v3064 = vsel %vm1019, %v3048, %v2985
        %v3065 = vsel %vm1019, %v3049, %v2987
        %v3066 = vsel %vm1019, %v3050, %v2989
        %v3067 = vsel %vm1019, %v3051, %v2991
        %v3068 = vsel %vm1019, %v3052, %v2993
        %v3069 = vsel %vm1019, %v3053, %v2995
        %v3070 = vsel %vm1019, %v3054, %v2997
        %v3071 = vsel %vm1019, %v3055, %v2999
        %v3072 = vsel %vm1019, %v3056, %v3001
        %v3073 = vsel %vm1019, %v3057, %v3003
        %v3074 = vsel %vm1019, %v3058, %v3005
        %v3075 = vsel %vm1019, %v3059, %v3007
        %v3076 = vsel %vm1019, %v3060, %v3009
        %v3077 = vsel %vm1019, %v3061, %v3011
        %v3078 = vsel %vm1019, %v3062, %v3013
        %v3079 = vsel %vm1019, %v3063, %v3015
        %s3080 = scalar_lea.vmem %s3, 2
        %v3081 = vld [vmem:[%s3080] ss:$8 sm:$0x7]
        %v3083 = vlaneseq
        %v3084 = vshrl.u32 %v3083, 7
        %v3085 = vsub.s32 0, %v3084
        %v3086 = vrot.slane %v3081, %v3085
        %v3087 = vlaneseq
        %v3088 = vshrl.u32 %v3087, 7
        %v3089 = vsub.s32 1, %v3088
        %v3090 = vrot.slane %v3081, %v3089
        %v3091 = vlaneseq
        %v3092 = vshrl.u32 %v3091, 7
        %v3093 = vsub.s32 2, %v3092
        %v3094 = vrot.slane %v3081, %v3093
        %vm3098 = vcmp.ge.f32.partialorder %v3064, %v3086
        %vm3099 = vcmp.ge.f32.partialorder %v3064, %v3090
        %vm3100 = vcmp.ge.f32.partialorder %v3064, %v3094
        %vm3101 = vcmp.ge.f32.partialorder %v3065, %v3086
        %vm3102 = vcmp.ge.f32.partialorder %v3065, %v3090
        %vm3103 = vcmp.ge.f32.partialorder %v3065, %v3094
        %vm3104 = vcmp.ge.f32.partialorder %v3066, %v3086
        %vm3105 = vcmp.ge.f32.partialorder %v3066, %v3090
        %vm3106 = vcmp.ge.f32.partialorder %v3066, %v3094
        %vm3107 = vcmp.ge.f32.partialorder %v3067, %v3086
        %vm3108 = vcmp.ge.f32.partialorder %v3067, %v3090
        %vm3109 = vcmp.ge.f32.partialorder %v3067, %v3094
        %vm3110 = vcmp.ge.f32.partialorder %v3068, %v3086
        %vm3111 = vcmp.ge.f32.partialorder %v3068, %v3090
        %vm3112 = vcmp.ge.f32.partialorder %v3068, %v3094
        %vm3113 = vcmp.ge.f32.partialorder %v3069, %v3086
        %vm3114 = vcmp.ge.f32.partialorder %v3069, %v3090
        %vm3115 = vcmp.ge.f32.partialorder %v3069, %v3094
        %vm3116 = vcmp.ge.f32.partialorder %v3070, %v3086
        %vm3117 = vcmp.ge.f32.partialorder %v3070, %v3090
        %vm3118 = vcmp.ge.f32.partialorder %v3070, %v3094
        %vm3119 = vcmp.ge.f32.partialorder %v3071, %v3086
        %vm3120 = vcmp.ge.f32.partialorder %v3071, %v3090
        %vm3121 = vcmp.ge.f32.partialorder %v3071, %v3094
        %vm3122 = vcmp.ge.f32.partialorder %v3072, %v3086
        %vm3123 = vcmp.ge.f32.partialorder %v3072, %v3090
        %vm3124 = vcmp.ge.f32.partialorder %v3072, %v3094
        %vm3125 = vcmp.ge.f32.partialorder %v3073, %v3086
        %vm3126 = vcmp.ge.f32.partialorder %v3073, %v3090
        %vm3127 = vcmp.ge.f32.partialorder %v3073, %v3094
        %vm3128 = vcmp.ge.f32.partialorder %v3074, %v3086
        %vm3129 = vcmp.ge.f32.partialorder %v3074, %v3090
        %vm3130 = vcmp.ge.f32.partialorder %v3074, %v3094
        %vm3131 = vcmp.ge.f32.partialorder %v3075, %v3086
        %vm3132 = vcmp.ge.f32.partialorder %v3075, %v3090
        %vm3133 = vcmp.ge.f32.partialorder %v3075, %v3094
        %vm3134 = vcmp.ge.f32.partialorder %v3076, %v3086
        %vm3135 = vcmp.ge.f32.partialorder %v3076, %v3090
        %vm3136 = vcmp.ge.f32.partialorder %v3076, %v3094
        %vm3137 = vcmp.ge.f32.partialorder %v3077, %v3086
        %vm3138 = vcmp.ge.f32.partialorder %v3077, %v3090
        %vm3139 = vcmp.ge.f32.partialorder %v3077, %v3094
        %vm3140 = vcmp.ge.f32.partialorder %v3078, %v3086
        %vm3141 = vcmp.ge.f32.partialorder %v3078, %v3090
        %vm3142 = vcmp.ge.f32.partialorder %v3078, %v3094
        %vm3143 = vcmp.ge.f32.partialorder %v3079, %v3086
        %vm3144 = vcmp.ge.f32.partialorder %v3079, %v3090
        %vm3145 = vcmp.ge.f32.partialorder %v3079, %v3094
        %v3146 = vsel %vm3098, 1, 0
        %v3147 = vsel %vm3099, 1, 0
        %v3148 = vsel %vm3100, 1, 0
        %v3149 = vsel %vm3101, 1, 0
        %v3150 = vsel %vm3102, 1, 0
        %v3151 = vsel %vm3103, 1, 0
        %v3152 = vsel %vm3104, 1, 0
        %v3153 = vsel %vm3105, 1, 0
        %v3154 = vsel %vm3106, 1, 0
        %v3155 = vsel %vm3107, 1, 0
        %v3156 = vsel %vm3108, 1, 0
        %v3157 = vsel %vm3109, 1, 0
        %v3158 = vsel %vm3110, 1, 0
        %v3159 = vsel %vm3111, 1, 0
        %v3160 = vsel %vm3112, 1, 0
        %v3161 = vsel %vm3113, 1, 0
        %v3162 = vsel %vm3114, 1, 0
        %v3163 = vsel %vm3115, 1, 0
        %v3164 = vsel %vm3116, 1, 0
        %v3165 = vsel %vm3117, 1, 0
        %v3166 = vsel %vm3118, 1, 0
        %v3167 = vsel %vm3119, 1, 0
        %v3168 = vsel %vm3120, 1, 0
        %v3169 = vsel %vm3121, 1, 0
        %v3170 = vsel %vm3122, 1, 0
        %v3171 = vsel %vm3123, 1, 0
        %v3172 = vsel %vm3124, 1, 0
        %v3173 = vsel %vm3125, 1, 0
        %v3174 = vsel %vm3126, 1, 0
        %v3175 = vsel %vm3127, 1, 0
        %v3176 = vsel %vm3128, 1, 0
        %v3177 = vsel %vm3129, 1, 0
        %v3178 = vsel %vm3130, 1, 0
        %v3179 = vsel %vm3131, 1, 0
        %v3180 = vsel %vm3132, 1, 0
        %v3181 = vsel %vm3133, 1, 0
        %v3182 = vsel %vm3134, 1, 0
        %v3183 = vsel %vm3135, 1, 0
        %v3184 = vsel %vm3136, 1, 0
        %v3185 = vsel %vm3137, 1, 0
        %v3186 = vsel %vm3138, 1, 0
        %v3187 = vsel %vm3139, 1, 0
        %v3188 = vsel %vm3140, 1, 0
        %v3189 = vsel %vm3141, 1, 0
        %v3190 = vsel %vm3142, 1, 0
        %v3191 = vsel %vm3143, 1, 0
        %v3192 = vsel %vm3144, 1, 0
        %v3193 = vsel %vm3145, 1, 0
        %v3194 = vcvt.s32.f32 %v3146
        %v3195 = vcvt.s32.f32 %v3147
        %v3196 = vcvt.s32.f32 %v3148
        %v3197 = vcvt.s32.f32 %v3149
        %v3198 = vcvt.s32.f32 %v3150
        %v3199 = vcvt.s32.f32 %v3151
        %v3200 = vcvt.s32.f32 %v3152
        %v3201 = vcvt.s32.f32 %v3153
        %v3202 = vcvt.s32.f32 %v3154
        %v3203 = vcvt.s32.f32 %v3155
        %v3204 = vcvt.s32.f32 %v3156
        %v3205 = vcvt.s32.f32 %v3157
        %v3206 = vcvt.s32.f32 %v3158
        %v3207 = vcvt.s32.f32 %v3159
        %v3208 = vcvt.s32.f32 %v3160
        %v3209 = vcvt.s32.f32 %v3161
        %v3210 = vcvt.s32.f32 %v3162
        %v3211 = vcvt.s32.f32 %v3163
        %v3212 = vcvt.s32.f32 %v3164
        %v3213 = vcvt.s32.f32 %v3165
        %v3214 = vcvt.s32.f32 %v3166
        %v3215 = vcvt.s32.f32 %v3167
        %v3216 = vcvt.s32.f32 %v3168
        %v3217 = vcvt.s32.f32 %v3169
        %v3218 = vcvt.s32.f32 %v3170
        %v3219 = vcvt.s32.f32 %v3171
        %v3220 = vcvt.s32.f32 %v3172
        %v3221 = vcvt.s32.f32 %v3173
        %v3222 = vcvt.s32.f32 %v3174
        %v3223 = vcvt.s32.f32 %v3175
        %v3224 = vcvt.s32.f32 %v3176
        %v3225 = vcvt.s32.f32 %v3177
        %v3226 = vcvt.s32.f32 %v3178
        %v3227 = vcvt.s32.f32 %v3179
        %v3228 = vcvt.s32.f32 %v3180
        %v3229 = vcvt.s32.f32 %v3181
        %v3230 = vcvt.s32.f32 %v3182
        %v3231 = vcvt.s32.f32 %v3183
        %v3232 = vcvt.s32.f32 %v3184
        %v3233 = vcvt.s32.f32 %v3185
        %v3234 = vcvt.s32.f32 %v3186
        %v3235 = vcvt.s32.f32 %v3187
        %v3236 = vcvt.s32.f32 %v3188
        %v3237 = vcvt.s32.f32 %v3189
        %v3238 = vcvt.s32.f32 %v3190
        %v3239 = vcvt.s32.f32 %v3191
        %v3240 = vcvt.s32.f32 %v3192
        %v3241 = vcvt.s32.f32 %v3193
        %3242 = vrot.lane.b32.xlu0 %v3194, 96
        %v3243 = vpop.permute.xlu0 %3242
        %3244 = vrot.lane.b32.xlu0 %v3197, 96
        %v3245 = vpop.permute.xlu0 %3244
        %3246 = vrot.lane.b32.xlu0 %v3200, 96
        %v3247 = vpop.permute.xlu0 %3246
        %3248 = vrot.lane.b32.xlu0 %v3203, 96
        %v3249 = vpop.permute.xlu0 %3248
        %3250 = vrot.lane.b32.xlu0 %v3206, 96
        %v3251 = vpop.permute.xlu0 %3250
        %3252 = vrot.lane.b32.xlu0 %v3209, 96
        %v3253 = vpop.permute.xlu0 %3252
        %3254 = vrot.lane.b32.xlu0 %v3212, 96
        %v3255 = vpop.permute.xlu0 %3254
        %3256 = vrot.lane.b32.xlu0 %v3215, 96
        %v3257 = vpop.permute.xlu0 %3256
        %3258 = vrot.lane.b32.xlu0 %v3218, 96
        %v3259 = vpop.permute.xlu0 %3258
        %3260 = vrot.lane.b32.xlu0 %v3221, 96
        %v3261 = vpop.permute.xlu0 %3260
        %3262 = vrot.lane.b32.xlu0 %v3224, 96
        %v3263 = vpop.permute.xlu0 %3262
        %3264 = vrot.lane.b32.xlu0 %v3227, 96
        %v3265 = vpop.permute.xlu0 %3264
        %3266 = vrot.lane.b32.xlu0 %v3230, 96
        %v3267 = vpop.permute.xlu0 %3266
        %3268 = vrot.lane.b32.xlu0 %v3233, 96
        %v3269 = vpop.permute.xlu0 %3268
        %3270 = vrot.lane.b32.xlu0 %v3236, 96
        %v3271 = vpop.permute.xlu0 %3270
        %3272 = vrot.lane.b32.xlu0 %v3239, 96
        %v3273 = vpop.permute.xlu0 %3272
        %3274 = vrot.lane.b32.xlu0 %v3195, 96
        %v3275 = vpop.permute.xlu0 %3274
        %3276 = vrot.lane.b32.xlu0 %v3198, 96
        %v3277 = vpop.permute.xlu0 %3276
        %3278 = vrot.lane.b32.xlu0 %v3201, 96
        %v3279 = vpop.permute.xlu0 %3278
        %3280 = vrot.lane.b32.xlu0 %v3204, 96
        %v3281 = vpop.permute.xlu0 %3280
        %3282 = vrot.lane.b32.xlu0 %v3207, 96
        %v3283 = vpop.permute.xlu0 %3282
        %3284 = vrot.lane.b32.xlu0 %v3210, 96
        %v3285 = vpop.permute.xlu0 %3284
        %3286 = vrot.lane.b32.xlu0 %v3213, 96
        %v3287 = vpop.permute.xlu0 %3286
        %3288 = vrot.lane.b32.xlu0 %v3216, 96
        %v3289 = vpop.permute.xlu0 %3288
        %3290 = vrot.lane.b32.xlu0 %v3219, 96
        %v3291 = vpop.permute.xlu0 %3290
        %3292 = vrot.lane.b32.xlu0 %v3222, 96
        %v3293 = vpop.permute.xlu0 %3292
        %3294 = vrot.lane.b32.xlu0 %v3225, 96
        %v3295 = vpop.permute.xlu0 %3294
        %3296 = vrot.lane.b32.xlu0 %v3228, 96
        %v3297 = vpop.permute.xlu0 %3296
        %3298 = vrot.lane.b32.xlu0 %v3231, 96
        %v3299 = vpop.permute.xlu0 %3298
        %3300 = vrot.lane.b32.xlu0 %v3234, 96
        %v3301 = vpop.permute.xlu0 %3300
        %3302 = vrot.lane.b32.xlu0 %v3237, 96
        %v3303 = vpop.permute.xlu0 %3302
        %3304 = vrot.lane.b32.xlu0 %v3240, 96
        %v3305 = vpop.permute.xlu0 %3304
        %3306 = vrot.lane.b32.xlu0 %v3196, 96
        %v3307 = vpop.permute.xlu0 %3306
        %3308 = vrot.lane.b32.xlu0 %v3199, 96
        %v3309 = vpop.permute.xlu0 %3308
        %3310 = vrot.lane.b32.xlu0 %v3202, 96
        %v3311 = vpop.permute.xlu0 %3310
        %3312 = vrot.lane.b32.xlu0 %v3205, 96
        %v3313 = vpop.permute.xlu0 %3312
        %3314 = vrot.lane.b32.xlu0 %v3208, 96
        %v3315 = vpop.permute.xlu0 %3314
        %3316 = vrot.lane.b32.xlu0 %v3211, 96
        %v3317 = vpop.permute.xlu0 %3316
        %3318 = vrot.lane.b32.xlu0 %v3214, 96
        %v3319 = vpop.permute.xlu0 %3318
        %3320 = vrot.lane.b32.xlu0 %v3217, 96
        %v3321 = vpop.permute.xlu0 %3320
        %3322 = vrot.lane.b32.xlu0 %v3220, 96
        %v3323 = vpop.permute.xlu0 %3322
        %3324 = vrot.lane.b32.xlu0 %v3223, 96
        %v3325 = vpop.permute.xlu0 %3324
        %3326 = vrot.lane.b32.xlu0 %v3226, 96
        %v3327 = vpop.permute.xlu0 %3326
        %3328 = vrot.lane.b32.xlu0 %v3229, 96
        %v3329 = vpop.permute.xlu0 %3328
        %3330 = vrot.lane.b32.xlu0 %v3232, 96
        %v3331 = vpop.permute.xlu0 %3330
        %3332 = vrot.lane.b32.xlu0 %v3235, 96
        %v3333 = vpop.permute.xlu0 %3332
        %3334 = vrot.lane.b32.xlu0 %v3238, 96
        %v3335 = vpop.permute.xlu0 %3334
        %3336 = vrot.lane.b32.xlu0 %v3241, 96
        %v3337 = vpop.permute.xlu0 %3336
        %vm3338 = vcmp.lt.s32.totalorder %v1227, 96
        %v3339 = vsel %vm3338, %v3275, %v3307
        %v3340 = vsel %vm3338, %v3277, %v3309
        %v3341 = vsel %vm3338, %v3279, %v3311
        %v3342 = vsel %vm3338, %v3281, %v3313
        %v3343 = vsel %vm3338, %v3283, %v3315
        %v3344 = vsel %vm3338, %v3285, %v3317
        %v3345 = vsel %vm3338, %v3287, %v3319
        %v3346 = vsel %vm3338, %v3289, %v3321
        %v3347 = vsel %vm3338, %v3291, %v3323
        %v3348 = vsel %vm3338, %v3293, %v3325
        %v3349 = vsel %vm3338, %v3295, %v3327
        %v3350 = vsel %vm3338, %v3297, %v3329
        %v3351 = vsel %vm3338, %v3299, %v3331
        %v3352 = vsel %vm3338, %v3301, %v3333
        %v3353 = vsel %vm3338, %v3303, %v3335
        %v3354 = vsel %vm3338, %v3305, %v3337
        %v3355 = vsel %vm3338, %v3243, %v3275
        %v3356 = vsel %vm3338, %v3245, %v3277
        %v3357 = vsel %vm3338, %v3247, %v3279
        %v3358 = vsel %vm3338, %v3249, %v3281
        %v3359 = vsel %vm3338, %v3251, %v3283
        %v3360 = vsel %vm3338, %v3253, %v3285
        %v3361 = vsel %vm3338, %v3255, %v3287
        %v3362 = vsel %vm3338, %v3257, %v3289
        %v3363 = vsel %vm3338, %v3259, %v3291
        %v3364 = vsel %vm3338, %v3261, %v3293
        %v3365 = vsel %vm3338, %v3263, %v3295
        %v3366 = vsel %vm3338, %v3265, %v3297
        %v3367 = vsel %vm3338, %v3267, %v3299
        %v3368 = vsel %vm3338, %v3269, %v3301
        %v3369 = vsel %vm3338, %v3271, %v3303
        %v3370 = vsel %vm3338, %v3273, %v3305
        %v3371 = vsel %vm3338, %v3307, %v3243
        %v3372 = vsel %vm3338, %v3309, %v3245
        %v3373 = vsel %vm3338, %v3311, %v3247
        %v3374 = vsel %vm3338, %v3313, %v3249
        %v3375 = vsel %vm3338, %v3315, %v3251
        %v3376 = vsel %vm3338, %v3317, %v3253
        %v3377 = vsel %vm3338, %v3319, %v3255
        %v3378 = vsel %vm3338, %v3321, %v3257
        %v3379 = vsel %vm3338, %v3323, %v3259
        %v3380 = vsel %vm3338, %v3325, %v3261
        %v3381 = vsel %vm3338, %v3327, %v3263
        %v3382 = vsel %vm3338, %v3329, %v3265
        %v3383 = vsel %vm3338, %v3331, %v3267
        %v3384 = vsel %vm3338, %v3333, %v3269
        %v3385 = vsel %vm3338, %v3335, %v3271
        %v3386 = vsel %vm3338, %v3337, %v3273
        %v3387 = vsub.f32 1.0, %v3355
        %v3388 = vsub.f32 1.0, %v3339
        %v3389 = vsub.f32 1.0, %v3371
        %v3390 = vsub.f32 1.0, %v3356
        %v3391 = vsub.f32 1.0, %v3340
        %v3392 = vsub.f32 1.0, %v3372
        %v3393 = vsub.f32 1.0, %v3357
        %v3394 = vsub.f32 1.0, %v3341
        %v3395 = vsub.f32 1.0, %v3373
        %v3396 = vsub.f32 1.0, %v3358
        %v3397 = vsub.f32 1.0, %v3342
        %v3398 = vsub.f32 1.0, %v3374
        %v3399 = vsub.f32 1.0, %v3359
        %v3400 = vsub.f32 1.0, %v3343
        %v3401 = vsub.f32 1.0, %v3375
        %v3402 = vsub.f32 1.0, %v3360
        %v3403 = vsub.f32 1.0, %v3344
        %v3404 = vsub.f32 1.0, %v3376
        %v3405 = vsub.f32 1.0, %v3361
        %v3406 = vsub.f32 1.0, %v3345
        %v3407 = vsub.f32 1.0, %v3377
        %v3408 = vsub.f32 1.0, %v3362
        %v3409 = vsub.f32 1.0, %v3346
        %v3410 = vsub.f32 1.0, %v3378
        %v3411 = vsub.f32 1.0, %v3363
        %v3412 = vsub.f32 1.0, %v3347
        %v3413 = vsub.f32 1.0, %v3379
        %v3414 = vsub.f32 1.0, %v3364
        %v3415 = vsub.f32 1.0, %v3348
        %v3416 = vsub.f32 1.0, %v3380
        %v3417 = vsub.f32 1.0, %v3365
        %v3418 = vsub.f32 1.0, %v3349
        %v3419 = vsub.f32 1.0, %v3381
        %v3420 = vsub.f32 1.0, %v3366
        %v3421 = vsub.f32 1.0, %v3350
        %v3422 = vsub.f32 1.0, %v3382
        %v3423 = vsub.f32 1.0, %v3367
        %v3424 = vsub.f32 1.0, %v3351
        %v3425 = vsub.f32 1.0, %v3383
        %v3426 = vsub.f32 1.0, %v3368
        %v3427 = vsub.f32 1.0, %v3352
        %v3428 = vsub.f32 1.0, %v3384
        %v3429 = vsub.f32 1.0, %v3369
        %v3430 = vsub.f32 1.0, %v3353
        %v3431 = vsub.f32 1.0, %v3385
        %v3432 = vsub.f32 1.0, %v3370
        %v3433 = vsub.f32 1.0, %v3354
        %v3434 = vsub.f32 1.0, %v3386
        %v3435 = vmul.f32 %v3194, %v3387
        %v3436 = vmul.f32 %v3195, %v3388
        %v3437 = vmul.f32 %v3196, %v3389
        %v3438 = vmul.f32 %v3197, %v3390
        %v3439 = vmul.f32 %v3198, %v3391
        %v3440 = vmul.f32 %v3199, %v3392
        %v3441 = vmul.f32 %v3200, %v3393
        %v3442 = vmul.f32 %v3201, %v3394
        %v3443 = vmul.f32 %v3202, %v3395
        %v3444 = vmul.f32 %v3203, %v3396
        %v3445 = vmul.f32 %v3204, %v3397
        %v3446 = vmul.f32 %v3205, %v3398
        %v3447 = vmul.f32 %v3206, %v3399
        %v3448 = vmul.f32 %v3207, %v3400
        %v3449 = vmul.f32 %v3208, %v3401
        %v3450 = vmul.f32 %v3209, %v3402
        %v3451 = vmul.f32 %v3210, %v3403
        %v3452 = vmul.f32 %v3211, %v3404
        %v3453 = vmul.f32 %v3212, %v3405
        %v3454 = vmul.f32 %v3213, %v3406
        %v3455 = vmul.f32 %v3214, %v3407
        %v3456 = vmul.f32 %v3215, %v3408
        %v3457 = vmul.f32 %v3216, %v3409
        %v3458 = vmul.f32 %v3217, %v3410
        %v3459 = vmul.f32 %v3218, %v3411
        %v3460 = vmul.f32 %v3219, %v3412
        %v3461 = vmul.f32 %v3220, %v3413
        %v3462 = vmul.f32 %v3221, %v3414
        %v3463 = vmul.f32 %v3222, %v3415
        %v3464 = vmul.f32 %v3223, %v3416
        %v3465 = vmul.f32 %v3224, %v3417
        %v3466 = vmul.f32 %v3225, %v3418
        %v3467 = vmul.f32 %v3226, %v3419
        %v3468 = vmul.f32 %v3227, %v3420
        %v3469 = vmul.f32 %v3228, %v3421
        %v3470 = vmul.f32 %v3229, %v3422
        %v3471 = vmul.f32 %v3230, %v3423
        %v3472 = vmul.f32 %v3231, %v3424
        %v3473 = vmul.f32 %v3232, %v3425
        %v3474 = vmul.f32 %v3233, %v3426
        %v3475 = vmul.f32 %v3234, %v3427
        %v3476 = vmul.f32 %v3235, %v3428
        %v3477 = vmul.f32 %v3236, %v3429
        %v3478 = vmul.f32 %v3237, %v3430
        %v3479 = vmul.f32 %v3238, %v3431
        %v3480 = vmul.f32 %v3239, %v3432
        %v3481 = vmul.f32 %v3240, %v3433
        %v3482 = vmul.f32 %v3241, %v3434
        %v3483 = vsub.f32 %v3064, %v3086
        %v3484 = vsub.f32 %v3064, %v3090
        %v3485 = vsub.f32 %v3064, %v3094
        %v3486 = vsub.f32 %v3065, %v3086
        %v3487 = vsub.f32 %v3065, %v3090
        %v3488 = vsub.f32 %v3065, %v3094
        %v3489 = vsub.f32 %v3066, %v3086
        %v3490 = vsub.f32 %v3066, %v3090
        %v3491 = vsub.f32 %v3066, %v3094
        %v3492 = vsub.f32 %v3067, %v3086
        %v3493 = vsub.f32 %v3067, %v3090
        %v3494 = vsub.f32 %v3067, %v3094
        %v3495 = vsub.f32 %v3068, %v3086
        %v3496 = vsub.f32 %v3068, %v3090
        %v3497 = vsub.f32 %v3068, %v3094
        %v3498 = vsub.f32 %v3069, %v3086
        %v3499 = vsub.f32 %v3069, %v3090
        %v3500 = vsub.f32 %v3069, %v3094
        %v3501 = vsub.f32 %v3070, %v3086
        %v3502 = vsub.f32 %v3070, %v3090
        %v3503 = vsub.f32 %v3070, %v3094
        %v3504 = vsub.f32 %v3071, %v3086
        %v3505 = vsub.f32 %v3071, %v3090
        %v3506 = vsub.f32 %v3071, %v3094
        %v3507 = vsub.f32 %v3072, %v3086
        %v3508 = vsub.f32 %v3072, %v3090
        %v3509 = vsub.f32 %v3072, %v3094
        %v3510 = vsub.f32 %v3073, %v3086
        %v3511 = vsub.f32 %v3073, %v3090
        %v3512 = vsub.f32 %v3073, %v3094
        %v3513 = vsub.f32 %v3074, %v3086
        %v3514 = vsub.f32 %v3074, %v3090
        %v3515 = vsub.f32 %v3074, %v3094
        %v3516 = vsub.f32 %v3075, %v3086
        %v3517 = vsub.f32 %v3075, %v3090
        %v3518 = vsub.f32 %v3075, %v3094
        %v3519 = vsub.f32 %v3076, %v3086
        %v3520 = vsub.f32 %v3076, %v3090
        %v3521 = vsub.f32 %v3076, %v3094
        %v3522 = vsub.f32 %v3077, %v3086
        %v3523 = vsub.f32 %v3077, %v3090
        %v3524 = vsub.f32 %v3077, %v3094
        %v3525 = vsub.f32 %v3078, %v3086
        %v3526 = vsub.f32 %v3078, %v3090
        %v3527 = vsub.f32 %v3078, %v3094
        %v3528 = vsub.f32 %v3079, %v3086
        %v3529 = vsub.f32 %v3079, %v3090
        %v3530 = vsub.f32 %v3079, %v3094
        %s3531 = scalar_lea.vmem %s3, 3
        %v3532 = vld [vmem:[%s3531] ss:$8 sm:$0x7]
        %s3533 = scalar_lea.vmem %s3, 4
        %v3534 = vld [vmem:[%s3533] ss:$8 sm:$0x7]
        %s3535 = scalar_lea.vmem %s3, 5
        %v3536 = vld [vmem:[%s3535] ss:$8 sm:$0x7]
        %v3538 = vlaneseq
        %v3539 = vshrl.u32 %v3538, 7
        %v3540 = vsub.s32 0, %v3539
        %v3541 = vrot.slane %v3532, %v3540
        %v3542 = vlaneseq
        %v3543 = vshrl.u32 %v3542, 7
        %v3544 = vsub.s32 1, %v3543
        %v3545 = vrot.slane %v3532, %v3544
        %v3546 = vlaneseq
        %v3547 = vshrl.u32 %v3546, 7
        %v3548 = vsub.s32 2, %v3547
        %v3549 = vrot.slane %v3532, %v3548
        %v3553 = vmul.f32 %v3483, %v3541
        %v3554 = vmul.f32 %v3484, %v3545
        %v3555 = vmul.f32 %v3485, %v3549
        %v3556 = vmul.f32 %v3486, %v3541
        %v3557 = vmul.f32 %v3487, %v3545
        %v3558 = vmul.f32 %v3488, %v3549
        %v3559 = vmul.f32 %v3489, %v3541
        %v3560 = vmul.f32 %v3490, %v3545
        %v3561 = vmul.f32 %v3491, %v3549
        %v3562 = vmul.f32 %v3492, %v3541
        %v3563 = vmul.f32 %v3493, %v3545
        %v3564 = vmul.f32 %v3494, %v3549
        %v3565 = vmul.f32 %v3495, %v3541
        %v3566 = vmul.f32 %v3496, %v3545
        %v3567 = vmul.f32 %v3497, %v3549
        %v3568 = vmul.f32 %v3498, %v3541
        %v3569 = vmul.f32 %v3499, %v3545
        %v3570 = vmul.f32 %v3500, %v3549
        %v3571 = vmul.f32 %v3501, %v3541
        %v3572 = vmul.f32 %v3502, %v3545
        %v3573 = vmul.f32 %v3503, %v3549
        %v3574 = vmul.f32 %v3504, %v3541
        %v3575 = vmul.f32 %v3505, %v3545
        %v3576 = vmul.f32 %v3506, %v3549
        %v3577 = vmul.f32 %v3507, %v3541
        %v3578 = vmul.f32 %v3508, %v3545
        %v3579 = vmul.f32 %v3509, %v3549
        %v3580 = vmul.f32 %v3510, %v3541
        %v3581 = vmul.f32 %v3511, %v3545
        %v3582 = vmul.f32 %v3512, %v3549
        %v3583 = vmul.f32 %v3513, %v3541
        %v3584 = vmul.f32 %v3514, %v3545
        %v3585 = vmul.f32 %v3515, %v3549
        %v3586 = vmul.f32 %v3516, %v3541
        %v3587 = vmul.f32 %v3517, %v3545
        %v3588 = vmul.f32 %v3518, %v3549
        %v3589 = vmul.f32 %v3519, %v3541
        %v3590 = vmul.f32 %v3520, %v3545
        %v3591 = vmul.f32 %v3521, %v3549
        %v3592 = vmul.f32 %v3522, %v3541
        %v3593 = vmul.f32 %v3523, %v3545
        %v3594 = vmul.f32 %v3524, %v3549
        %v3595 = vmul.f32 %v3525, %v3541
        %v3596 = vmul.f32 %v3526, %v3545
        %v3597 = vmul.f32 %v3527, %v3549
        %v3598 = vmul.f32 %v3528, %v3541
        %v3599 = vmul.f32 %v3529, %v3545
        %v3600 = vmul.f32 %v3530, %v3549
        %v3601 = vmul.f32 %v3553, %v3435
        %v3602 = vmul.f32 %v3554, %v3436
        %v3603 = vmul.f32 %v3555, %v3437
        %v3604 = vmul.f32 %v3556, %v3438
        %v3605 = vmul.f32 %v3557, %v3439
        %v3606 = vmul.f32 %v3558, %v3440
        %v3607 = vmul.f32 %v3559, %v3441
        %v3608 = vmul.f32 %v3560, %v3442
        %v3609 = vmul.f32 %v3561, %v3443
        %v3610 = vmul.f32 %v3562, %v3444
        %v3611 = vmul.f32 %v3563, %v3445
        %v3612 = vmul.f32 %v3564, %v3446
        %v3613 = vmul.f32 %v3565, %v3447
        %v3614 = vmul.f32 %v3566, %v3448
        %v3615 = vmul.f32 %v3567, %v3449
        %v3616 = vmul.f32 %v3568, %v3450
        %v3617 = vmul.f32 %v3569, %v3451
        %v3618 = vmul.f32 %v3570, %v3452
        %v3619 = vmul.f32 %v3571, %v3453
        %v3620 = vmul.f32 %v3572, %v3454
        %v3621 = vmul.f32 %v3573, %v3455
        %v3622 = vmul.f32 %v3574, %v3456
        %v3623 = vmul.f32 %v3575, %v3457
        %v3624 = vmul.f32 %v3576, %v3458
        %v3625 = vmul.f32 %v3577, %v3459
        %v3626 = vmul.f32 %v3578, %v3460
        %v3627 = vmul.f32 %v3579, %v3461
        %v3628 = vmul.f32 %v3580, %v3462
        %v3629 = vmul.f32 %v3581, %v3463
        %v3630 = vmul.f32 %v3582, %v3464
        %v3631 = vmul.f32 %v3583, %v3465
        %v3632 = vmul.f32 %v3584, %v3466
        %v3633 = vmul.f32 %v3585, %v3467
        %v3634 = vmul.f32 %v3586, %v3468
        %v3635 = vmul.f32 %v3587, %v3469
        %v3636 = vmul.f32 %v3588, %v3470
        %v3637 = vmul.f32 %v3589, %v3471
        %v3638 = vmul.f32 %v3590, %v3472
        %v3639 = vmul.f32 %v3591, %v3473
        %v3640 = vmul.f32 %v3592, %v3474
        %v3641 = vmul.f32 %v3593, %v3475
        %v3642 = vmul.f32 %v3594, %v3476
        %v3643 = vmul.f32 %v3595, %v3477
        %v3644 = vmul.f32 %v3596, %v3478
        %v3645 = vmul.f32 %v3597, %v3479
        %v3646 = vmul.f32 %v3598, %v3480
        %v3647 = vmul.f32 %v3599, %v3481
        %v3648 = vmul.f32 %v3600, %v3482
        %v3650 = vlaneseq
        %v3651 = vshrl.u32 %v3650, 7
        %v3652 = vsub.s32 0, %v3651
        %v3653 = vrot.slane %v3534, %v3652
        %v3654 = vlaneseq
        %v3655 = vshrl.u32 %v3654, 7
        %v3656 = vsub.s32 1, %v3655
        %v3657 = vrot.slane %v3534, %v3656
        %v3658 = vlaneseq
        %v3659 = vshrl.u32 %v3658, 7
        %v3660 = vsub.s32 2, %v3659
        %v3661 = vrot.slane %v3534, %v3660
        %v3665 = vsub.f32 %v3653, %v3064
        %v3666 = vsub.f32 %v3657, %v3064
        %v3667 = vsub.f32 %v3661, %v3064
        %v3668 = vsub.f32 %v3653, %v3065
        %v3669 = vsub.f32 %v3657, %v3065
        %v3670 = vsub.f32 %v3661, %v3065
        %v3671 = vsub.f32 %v3653, %v3066
        %v3672 = vsub.f32 %v3657, %v3066
        %v3673 = vsub.f32 %v3661, %v3066
        %v3674 = vsub.f32 %v3653, %v3067
        %v3675 = vsub.f32 %v3657, %v3067
        %v3676 = vsub.f32 %v3661, %v3067
        %v3677 = vsub.f32 %v3653, %v3068
        %v3678 = vsub.f32 %v3657, %v3068
        %v3679 = vsub.f32 %v3661, %v3068
        %v3680 = vsub.f32 %v3653, %v3069
        %v3681 = vsub.f32 %v3657, %v3069
        %v3682 = vsub.f32 %v3661, %v3069
        %v3683 = vsub.f32 %v3653, %v3070
        %v3684 = vsub.f32 %v3657, %v3070
        %v3685 = vsub.f32 %v3661, %v3070
        %v3686 = vsub.f32 %v3653, %v3071
        %v3687 = vsub.f32 %v3657, %v3071
        %v3688 = vsub.f32 %v3661, %v3071
        %v3689 = vsub.f32 %v3653, %v3072
        %v3690 = vsub.f32 %v3657, %v3072
        %v3691 = vsub.f32 %v3661, %v3072
        %v3692 = vsub.f32 %v3653, %v3073
        %v3693 = vsub.f32 %v3657, %v3073
        %v3694 = vsub.f32 %v3661, %v3073
        %v3695 = vsub.f32 %v3653, %v3074
        %v3696 = vsub.f32 %v3657, %v3074
        %v3697 = vsub.f32 %v3661, %v3074
        %v3698 = vsub.f32 %v3653, %v3075
        %v3699 = vsub.f32 %v3657, %v3075
        %v3700 = vsub.f32 %v3661, %v3075
        %v3701 = vsub.f32 %v3653, %v3076
        %v3702 = vsub.f32 %v3657, %v3076
        %v3703 = vsub.f32 %v3661, %v3076
        %v3704 = vsub.f32 %v3653, %v3077
        %v3705 = vsub.f32 %v3657, %v3077
        %v3706 = vsub.f32 %v3661, %v3077
        %v3707 = vsub.f32 %v3653, %v3078
        %v3708 = vsub.f32 %v3657, %v3078
        %v3709 = vsub.f32 %v3661, %v3078
        %v3710 = vsub.f32 %v3653, %v3079
        %v3711 = vsub.f32 %v3657, %v3079
        %v3712 = vsub.f32 %v3661, %v3079
        %v3714 = vlaneseq
        %v3715 = vshrl.u32 %v3714, 7
        %v3716 = vsub.s32 0, %v3715
        %v3717 = vrot.slane %v3536, %v3716
        %v3718 = vlaneseq
        %v3719 = vshrl.u32 %v3718, 7
        %v3720 = vsub.s32 1, %v3719
        %v3721 = vrot.slane %v3536, %v3720
        %v3722 = vlaneseq
        %v3723 = vshrl.u32 %v3722, 7
        %v3724 = vsub.s32 2, %v3723
        %v3725 = vrot.slane %v3536, %v3724
        %v3729 = vmul.f32 %v3665, %v3717
        %v3730 = vmul.f32 %v3666, %v3721
        %v3731 = vmul.f32 %v3667, %v3725
        %v3732 = vmul.f32 %v3668, %v3717
        %v3733 = vmul.f32 %v3669, %v3721
        %v3734 = vmul.f32 %v3670, %v3725
        %v3735 = vmul.f32 %v3671, %v3717
        %v3736 = vmul.f32 %v3672, %v3721
        %v3737 = vmul.f32 %v3673, %v3725
        %v3738 = vmul.f32 %v3674, %v3717
        %v3739 = vmul.f32 %v3675, %v3721
        %v3740 = vmul.f32 %v3676, %v3725
        %v3741 = vmul.f32 %v3677, %v3717
        %v3742 = vmul.f32 %v3678, %v3721
        %v3743 = vmul.f32 %v3679, %v3725
        %v3744 = vmul.f32 %v3680, %v3717
        %v3745 = vmul.f32 %v3681, %v3721
        %v3746 = vmul.f32 %v3682, %v3725
        %v3747 = vmul.f32 %v3683, %v3717
        %v3748 = vmul.f32 %v3684, %v3721
        %v3749 = vmul.f32 %v3685, %v3725
        %v3750 = vmul.f32 %v3686, %v3717
        %v3751 = vmul.f32 %v3687, %v3721
        %v3752 = vmul.f32 %v3688, %v3725
        %v3753 = vmul.f32 %v3689, %v3717
        %v3754 = vmul.f32 %v3690, %v3721
        %v3755 = vmul.f32 %v3691, %v3725
        %v3756 = vmul.f32 %v3692, %v3717
        %v3757 = vmul.f32 %v3693, %v3721
        %v3758 = vmul.f32 %v3694, %v3725
        %v3759 = vmul.f32 %v3695, %v3717
        %v3760 = vmul.f32 %v3696, %v3721
        %v3761 = vmul.f32 %v3697, %v3725
        %v3762 = vmul.f32 %v3698, %v3717
        %v3763 = vmul.f32 %v3699, %v3721
        %v3764 = vmul.f32 %v3700, %v3725
        %v3765 = vmul.f32 %v3701, %v3717
        %v3766 = vmul.f32 %v3702, %v3721
        %v3767 = vmul.f32 %v3703, %v3725
        %v3768 = vmul.f32 %v3704, %v3717
        %v3769 = vmul.f32 %v3705, %v3721
        %v3770 = vmul.f32 %v3706, %v3725
        %v3771 = vmul.f32 %v3707, %v3717
        %v3772 = vmul.f32 %v3708, %v3721
        %v3773 = vmul.f32 %v3709, %v3725
        %v3774 = vmul.f32 %v3710, %v3717
        %v3775 = vmul.f32 %v3711, %v3721
        %v3776 = vmul.f32 %v3712, %v3725
        %3777 = vrot.lane.b32.xlu0 %v3435, 96
        %v3778 = vpop.permute.xlu0 %3777
        %3779 = vrot.lane.b32.xlu0 %v3438, 96
        %v3780 = vpop.permute.xlu0 %3779
        %3781 = vrot.lane.b32.xlu0 %v3441, 96
        %v3782 = vpop.permute.xlu0 %3781
        %3783 = vrot.lane.b32.xlu0 %v3444, 96
        %v3784 = vpop.permute.xlu0 %3783
        %3785 = vrot.lane.b32.xlu0 %v3447, 96
        %v3786 = vpop.permute.xlu0 %3785
        %3787 = vrot.lane.b32.xlu0 %v3450, 96
        %v3788 = vpop.permute.xlu0 %3787
        %3789 = vrot.lane.b32.xlu0 %v3453, 96
        %v3790 = vpop.permute.xlu0 %3789
        %3791 = vrot.lane.b32.xlu0 %v3456, 96
        %v3792 = vpop.permute.xlu0 %3791
        %3793 = vrot.lane.b32.xlu0 %v3459, 96
        %v3794 = vpop.permute.xlu0 %3793
        %3795 = vrot.lane.b32.xlu0 %v3462, 96
        %v3796 = vpop.permute.xlu0 %3795
        %3797 = vrot.lane.b32.xlu0 %v3465, 96
        %v3798 = vpop.permute.xlu0 %3797
        %3799 = vrot.lane.b32.xlu0 %v3468, 96
        %v3800 = vpop.permute.xlu0 %3799
        %3801 = vrot.lane.b32.xlu0 %v3471, 96
        %v3802 = vpop.permute.xlu0 %3801
        %3803 = vrot.lane.b32.xlu0 %v3474, 96
        %v3804 = vpop.permute.xlu0 %3803
        %3805 = vrot.lane.b32.xlu0 %v3477, 96
        %v3806 = vpop.permute.xlu0 %3805
        %3807 = vrot.lane.b32.xlu0 %v3480, 96
        %v3808 = vpop.permute.xlu0 %3807
        %3809 = vrot.lane.b32.xlu0 %v3436, 96
        %v3810 = vpop.permute.xlu0 %3809
        %3811 = vrot.lane.b32.xlu0 %v3439, 96
        %v3812 = vpop.permute.xlu0 %3811
        %3813 = vrot.lane.b32.xlu0 %v3442, 96
        %v3814 = vpop.permute.xlu0 %3813
        %3815 = vrot.lane.b32.xlu0 %v3445, 96
        %v3816 = vpop.permute.xlu0 %3815
        %3817 = vrot.lane.b32.xlu0 %v3448, 96
        %v3818 = vpop.permute.xlu0 %3817
        %3819 = vrot.lane.b32.xlu0 %v3451, 96
        %v3820 = vpop.permute.xlu0 %3819
        %3821 = vrot.lane.b32.xlu0 %v3454, 96
        %v3822 = vpop.permute.xlu0 %3821
        %3823 = vrot.lane.b32.xlu0 %v3457, 96
        %v3824 = vpop.permute.xlu0 %3823
        %3825 = vrot.lane.b32.xlu0 %v3460, 96
        %v3826 = vpop.permute.xlu0 %3825
        %3827 = vrot.lane.b32.xlu0 %v3463, 96
        %v3828 = vpop.permute.xlu0 %3827
        %3829 = vrot.lane.b32.xlu0 %v3466, 96
        %v3830 = vpop.permute.xlu0 %3829
        %3831 = vrot.lane.b32.xlu0 %v3469, 96
        %v3832 = vpop.permute.xlu0 %3831
        %3833 = vrot.lane.b32.xlu0 %v3472, 96
        %v3834 = vpop.permute.xlu0 %3833
        %3835 = vrot.lane.b32.xlu0 %v3475, 96
        %v3836 = vpop.permute.xlu0 %3835
        %3837 = vrot.lane.b32.xlu0 %v3478, 96
        %v3838 = vpop.permute.xlu0 %3837
        %3839 = vrot.lane.b32.xlu0 %v3481, 96
        %v3840 = vpop.permute.xlu0 %3839
        %3841 = vrot.lane.b32.xlu0 %v3437, 96
        %v3842 = vpop.permute.xlu0 %3841
        %3843 = vrot.lane.b32.xlu0 %v3440, 96
        %v3844 = vpop.permute.xlu0 %3843
        %3845 = vrot.lane.b32.xlu0 %v3443, 96
        %v3846 = vpop.permute.xlu0 %3845
        %3847 = vrot.lane.b32.xlu0 %v3446, 96
        %v3848 = vpop.permute.xlu0 %3847
        %3849 = vrot.lane.b32.xlu0 %v3449, 96
        %v3850 = vpop.permute.xlu0 %3849
        %3851 = vrot.lane.b32.xlu0 %v3452, 96
        %v3852 = vpop.permute.xlu0 %3851
        %3853 = vrot.lane.b32.xlu0 %v3455, 96
        %v3854 = vpop.permute.xlu0 %3853
        %3855 = vrot.lane.b32.xlu0 %v3458, 96
        %v3856 = vpop.permute.xlu0 %3855
        %3857 = vrot.lane.b32.xlu0 %v3461, 96
        %v3858 = vpop.permute.xlu0 %3857
        %3859 = vrot.lane.b32.xlu0 %v3464, 96
        %v3860 = vpop.permute.xlu0 %3859
        %3861 = vrot.lane.b32.xlu0 %v3467, 96
        %v3862 = vpop.permute.xlu0 %3861
        %3863 = vrot.lane.b32.xlu0 %v3470, 96
        %v3864 = vpop.permute.xlu0 %3863
        %3865 = vrot.lane.b32.xlu0 %v3473, 96
        %v3866 = vpop.permute.xlu0 %3865
        %3867 = vrot.lane.b32.xlu0 %v3476, 96
        %v3868 = vpop.permute.xlu0 %3867
        %3869 = vrot.lane.b32.xlu0 %v3479, 96
        %v3870 = vpop.permute.xlu0 %3869
        %3871 = vrot.lane.b32.xlu0 %v3482, 96
        %v3872 = vpop.permute.xlu0 %3871
        %v3873 = vsel %vm3338, %v3810, %v3842
        %v3874 = vsel %vm3338, %v3812, %v3844
        %v3875 = vsel %vm3338, %v3814, %v3846
        %v3876 = vsel %vm3338, %v3816, %v3848
        %v3877 = vsel %vm3338, %v3818, %v3850
        %v3878 = vsel %vm3338, %v3820, %v3852
        %v3879 = vsel %vm3338, %v3822, %v3854
        %v3880 = vsel %vm3338, %v3824, %v3856
        %v3881 = vsel %vm3338, %v3826, %v3858
        %v3882 = vsel %vm3338, %v3828, %v3860
        %v3883 = vsel %vm3338, %v3830, %v3862
        %v3884 = vsel %vm3338, %v3832, %v3864
        %v3885 = vsel %vm3338, %v3834, %v3866
        %v3886 = vsel %vm3338, %v3836, %v3868
        %v3887 = vsel %vm3338, %v3838, %v3870
        %v3888 = vsel %vm3338, %v3840, %v3872
        %v3889 = vsel %vm3338, %v3778, %v3810
        %v3890 = vsel %vm3338, %v3780, %v3812
        %v3891 = vsel %vm3338, %v3782, %v3814
        %v3892 = vsel %vm3338, %v3784, %v3816
        %v3893 = vsel %vm3338, %v3786, %v3818
        %v3894 = vsel %vm3338, %v3788, %v3820
        %v3895 = vsel %vm3338, %v3790, %v3822
        %v3896 = vsel %vm3338, %v3792, %v3824
        %v3897 = vsel %vm3338, %v3794, %v3826
        %v3898 = vsel %vm3338, %v3796, %v3828
        %v3899 = vsel %vm3338, %v3798, %v3830
        %v3900 = vsel %vm3338, %v3800, %v3832
        %v3901 = vsel %vm3338, %v3802, %v3834
        %v3902 = vsel %vm3338, %v3804, %v3836
        %v3903 = vsel %vm3338, %v3806, %v3838
        %v3904 = vsel %vm3338, %v3808, %v3840
        %v3905 = vsel %vm3338, %v3842, %v3778
        %v3906 = vsel %vm3338, %v3844, %v3780
        %v3907 = vsel %vm3338, %v3846, %v3782
        %v3908 = vsel %vm3338, %v3848, %v3784
        %v3909 = vsel %vm3338, %v3850, %v3786
        %v3910 = vsel %vm3338, %v3852, %v3788
        %v3911 = vsel %vm3338, %v3854, %v3790
        %v3912 = vsel %vm3338, %v3856, %v3792
        %v3913 = vsel %vm3338, %v3858, %v3794
        %v3914 = vsel %vm3338, %v3860, %v3796
        %v3915 = vsel %vm3338, %v3862, %v3798
        %v3916 = vsel %vm3338, %v3864, %v3800
        %v3917 = vsel %vm3338, %v3866, %v3802
        %v3918 = vsel %vm3338, %v3868, %v3804
        %v3919 = vsel %vm3338, %v3870, %v3806
        %v3920 = vsel %vm3338, %v3872, %v3808
        %v3921 = vmul.f32 %v3729, %v3889
        %v3922 = vmul.f32 %v3730, %v3873
        %v3923 = vmul.f32 %v3731, %v3905
        %v3924 = vmul.f32 %v3732, %v3890
        %v3925 = vmul.f32 %v3733, %v3874
        %v3926 = vmul.f32 %v3734, %v3906
        %v3927 = vmul.f32 %v3735, %v3891
        %v3928 = vmul.f32 %v3736, %v3875
        %v3929 = vmul.f32 %v3737, %v3907
        %v3930 = vmul.f32 %v3738, %v3892
        %v3931 = vmul.f32 %v3739, %v3876
        %v3932 = vmul.f32 %v3740, %v3908
        %v3933 = vmul.f32 %v3741, %v3893
        %v3934 = vmul.f32 %v3742, %v3877
        %v3935 = vmul.f32 %v3743, %v3909
        %v3936 = vmul.f32 %v3744, %v3894
        %v3937 = vmul.f32 %v3745, %v3878
        %v3938 = vmul.f32 %v3746, %v3910
        %v3939 = vmul.f32 %v3747, %v3895
        %v3940 = vmul.f32 %v3748, %v3879
        %v3941 = vmul.f32 %v3749, %v3911
        %v3942 = vmul.f32 %v3750, %v3896
        %v3943 = vmul.f32 %v3751, %v3880
        %v3944 = vmul.f32 %v3752, %v3912
        %v3945 = vmul.f32 %v3753, %v3897
        %v3946 = vmul.f32 %v3754, %v3881
        %v3947 = vmul.f32 %v3755, %v3913
        %v3948 = vmul.f32 %v3756, %v3898
        %v3949 = vmul.f32 %v3757, %v3882
        %v3950 = vmul.f32 %v3758, %v3914
        %v3951 = vmul.f32 %v3759, %v3899
        %v3952 = vmul.f32 %v3760, %v3883
        %v3953 = vmul.f32 %v3761, %v3915
        %v3954 = vmul.f32 %v3762, %v3900
        %v3955 = vmul.f32 %v3763, %v3884
        %v3956 = vmul.f32 %v3764, %v3916
        %v3957 = vmul.f32 %v3765, %v3901
        %v3958 = vmul.f32 %v3766, %v3885
        %v3959 = vmul.f32 %v3767, %v3917
        %v3960 = vmul.f32 %v3768, %v3902
        %v3961 = vmul.f32 %v3769, %v3886
        %v3962 = vmul.f32 %v3770, %v3918
        %v3963 = vmul.f32 %v3771, %v3903
        %v3964 = vmul.f32 %v3772, %v3887
        %v3965 = vmul.f32 %v3773, %v3919
        %v3966 = vmul.f32 %v3774, %v3904
        %v3967 = vmul.f32 %v3775, %v3888
        %v3968 = vmul.f32 %v3776, %v3920
        %v3969 = vadd.f32 %v3601, %v3921
        %v3970 = vadd.f32 %v3602, %v3922
        %v3971 = vadd.f32 %v3603, %v3923
        %v3972 = vadd.f32 %v3604, %v3924
        %v3973 = vadd.f32 %v3605, %v3925
        %v3974 = vadd.f32 %v3606, %v3926
        %v3975 = vadd.f32 %v3607, %v3927
        %v3976 = vadd.f32 %v3608, %v3928
        %v3977 = vadd.f32 %v3609, %v3929
        %v3978 = vadd.f32 %v3610, %v3930
        %v3979 = vadd.f32 %v3611, %v3931
        %v3980 = vadd.f32 %v3612, %v3932
        %v3981 = vadd.f32 %v3613, %v3933
        %v3982 = vadd.f32 %v3614, %v3934
        %v3983 = vadd.f32 %v3615, %v3935
        %v3984 = vadd.f32 %v3616, %v3936
        %v3985 = vadd.f32 %v3617, %v3937
        %v3986 = vadd.f32 %v3618, %v3938
        %v3987 = vadd.f32 %v3619, %v3939
        %v3988 = vadd.f32 %v3620, %v3940
        %v3989 = vadd.f32 %v3621, %v3941
        %v3990 = vadd.f32 %v3622, %v3942
        %v3991 = vadd.f32 %v3623, %v3943
        %v3992 = vadd.f32 %v3624, %v3944
        %v3993 = vadd.f32 %v3625, %v3945
        %v3994 = vadd.f32 %v3626, %v3946
        %v3995 = vadd.f32 %v3627, %v3947
        %v3996 = vadd.f32 %v3628, %v3948
        %v3997 = vadd.f32 %v3629, %v3949
        %v3998 = vadd.f32 %v3630, %v3950
        %v3999 = vadd.f32 %v3631, %v3951
        %v4000 = vadd.f32 %v3632, %v3952
        %v4001 = vadd.f32 %v3633, %v3953
        %v4002 = vadd.f32 %v3634, %v3954
        %v4003 = vadd.f32 %v3635, %v3955
        %v4004 = vadd.f32 %v3636, %v3956
        %v4005 = vadd.f32 %v3637, %v3957
        %v4006 = vadd.f32 %v3638, %v3958
        %v4007 = vadd.f32 %v3639, %v3959
        %v4008 = vadd.f32 %v3640, %v3960
        %v4009 = vadd.f32 %v3641, %v3961
        %v4010 = vadd.f32 %v3642, %v3962
        %v4011 = vadd.f32 %v3643, %v3963
        %v4012 = vadd.f32 %v3644, %v3964
        %v4013 = vadd.f32 %v3645, %v3965
        %v4014 = vadd.f32 %v3646, %v3966
        %v4015 = vadd.f32 %v3647, %v3967
        %v4016 = vadd.f32 %v3648, %v3968
        %s4017 = scalar_lea.vmem %s3, 6
        %v4018 = vld [vmem:[%s4017] ss:$8 sm:$0x7]
        %s4019 = scalar_lea.vmem %s3, 7
        %v4020 = vld [vmem:[%s4019] ss:$8 sm:$0x7]
        %s4021 = scalar_lea.vmem %s3, 24
        %v4022 = vld [vmem:[%s4021] ss:$8 sm:$0x7]
        %v4024 = vlaneseq
        %v4025 = vshrl.u32 %v4024, 7
        %v4026 = vsub.s32 0, %v4025
        %v4027 = vrot.slane %v4018, %v4026
        %v4028 = vlaneseq
        %v4029 = vshrl.u32 %v4028, 7
        %v4030 = vsub.s32 1, %v4029
        %v4031 = vrot.slane %v4018, %v4030
        %v4032 = vlaneseq
        %v4033 = vshrl.u32 %v4032, 7
        %v4034 = vsub.s32 2, %v4033
        %v4035 = vrot.slane %v4018, %v4034
        %v4039 = vmul.f32 %v3483, %v4027
        %v4040 = vmul.f32 %v3484, %v4031
        %v4041 = vmul.f32 %v3485, %v4035
        %v4042 = vmul.f32 %v3486, %v4027
        %v4043 = vmul.f32 %v3487, %v4031
        %v4044 = vmul.f32 %v3488, %v4035
        %v4045 = vmul.f32 %v3489, %v4027
        %v4046 = vmul.f32 %v3490, %v4031
        %v4047 = vmul.f32 %v3491, %v4035
        %v4048 = vmul.f32 %v3492, %v4027
        %v4049 = vmul.f32 %v3493, %v4031
        %v4050 = vmul.f32 %v3494, %v4035
        %v4051 = vmul.f32 %v3495, %v4027
        %v4052 = vmul.f32 %v3496, %v4031
        %v4053 = vmul.f32 %v3497, %v4035
        %v4054 = vmul.f32 %v3498, %v4027
        %v4055 = vmul.f32 %v3499, %v4031
        %v4056 = vmul.f32 %v3500, %v4035
        %v4057 = vmul.f32 %v3501, %v4027
        %v4058 = vmul.f32 %v3502, %v4031
        %v4059 = vmul.f32 %v3503, %v4035
        %v4060 = vmul.f32 %v3504, %v4027
        %v4061 = vmul.f32 %v3505, %v4031
        %v4062 = vmul.f32 %v3506, %v4035
        %v4063 = vmul.f32 %v3507, %v4027
        %v4064 = vmul.f32 %v3508, %v4031
        %v4065 = vmul.f32 %v3509, %v4035
        %v4066 = vmul.f32 %v3510, %v4027
        %v4067 = vmul.f32 %v3511, %v4031
        %v4068 = vmul.f32 %v3512, %v4035
        %v4069 = vmul.f32 %v3513, %v4027
        %v4070 = vmul.f32 %v3514, %v4031
        %v4071 = vmul.f32 %v3515, %v4035
        %v4072 = vmul.f32 %v3516, %v4027
        %v4073 = vmul.f32 %v3517, %v4031
        %v4074 = vmul.f32 %v3518, %v4035
        %v4075 = vmul.f32 %v3519, %v4027
        %v4076 = vmul.f32 %v3520, %v4031
        %v4077 = vmul.f32 %v3521, %v4035
        %v4078 = vmul.f32 %v3522, %v4027
        %v4079 = vmul.f32 %v3523, %v4031
        %v4080 = vmul.f32 %v3524, %v4035
        %v4081 = vmul.f32 %v3525, %v4027
        %v4082 = vmul.f32 %v3526, %v4031
        %v4083 = vmul.f32 %v3527, %v4035
        %v4084 = vmul.f32 %v3528, %v4027
        %v4085 = vmul.f32 %v3529, %v4031
        %v4086 = vmul.f32 %v3530, %v4035
        %v4087 = vmul.f32 %v4039, %v3969
        %v4088 = vmul.f32 %v4040, %v3970
        %v4089 = vmul.f32 %v4041, %v3971
        %v4090 = vmul.f32 %v4042, %v3972
        %v4091 = vmul.f32 %v4043, %v3973
        %v4092 = vmul.f32 %v4044, %v3974
        %v4093 = vmul.f32 %v4045, %v3975
        %v4094 = vmul.f32 %v4046, %v3976
        %v4095 = vmul.f32 %v4047, %v3977
        %v4096 = vmul.f32 %v4048, %v3978
        %v4097 = vmul.f32 %v4049, %v3979
        %v4098 = vmul.f32 %v4050, %v3980
        %v4099 = vmul.f32 %v4051, %v3981
        %v4100 = vmul.f32 %v4052, %v3982
        %v4101 = vmul.f32 %v4053, %v3983
        %v4102 = vmul.f32 %v4054, %v3984
        %v4103 = vmul.f32 %v4055, %v3985
        %v4104 = vmul.f32 %v4056, %v3986
        %v4105 = vmul.f32 %v4057, %v3987
        %v4106 = vmul.f32 %v4058, %v3988
        %v4107 = vmul.f32 %v4059, %v3989
        %v4108 = vmul.f32 %v4060, %v3990
        %v4109 = vmul.f32 %v4061, %v3991
        %v4110 = vmul.f32 %v4062, %v3992
        %v4111 = vmul.f32 %v4063, %v3993
        %v4112 = vmul.f32 %v4064, %v3994
        %v4113 = vmul.f32 %v4065, %v3995
        %v4114 = vmul.f32 %v4066, %v3996
        %v4115 = vmul.f32 %v4067, %v3997
        %v4116 = vmul.f32 %v4068, %v3998
        %v4117 = vmul.f32 %v4069, %v3999
        %v4118 = vmul.f32 %v4070, %v4000
        %v4119 = vmul.f32 %v4071, %v4001
        %v4120 = vmul.f32 %v4072, %v4002
        %v4121 = vmul.f32 %v4073, %v4003
        %v4122 = vmul.f32 %v4074, %v4004
        %v4123 = vmul.f32 %v4075, %v4005
        %v4124 = vmul.f32 %v4076, %v4006
        %v4125 = vmul.f32 %v4077, %v4007
        %v4126 = vmul.f32 %v4078, %v4008
        %v4127 = vmul.f32 %v4079, %v4009
        %v4128 = vmul.f32 %v4080, %v4010
        %v4129 = vmul.f32 %v4081, %v4011
        %v4130 = vmul.f32 %v4082, %v4012
        %v4131 = vmul.f32 %v4083, %v4013
        %v4132 = vmul.f32 %v4084, %v4014
        %v4133 = vmul.f32 %v4085, %v4015
        %v4134 = vmul.f32 %v4086, %v4016
        %v4136 = vlaneseq
        %v4137 = vshrl.u32 %v4136, 7
        %v4138 = vsub.s32 0, %v4137
        %v4139 = vrot.slane %v4020, %v4138
        %v4140 = vlaneseq
        %v4141 = vshrl.u32 %v4140, 7
        %v4142 = vsub.s32 1, %v4141
        %v4143 = vrot.slane %v4020, %v4142
        %v4144 = vlaneseq
        %v4145 = vshrl.u32 %v4144, 7
        %v4146 = vsub.s32 2, %v4145
        %v4147 = vrot.slane %v4020, %v4146
        %v4151 = vsub.f32 %v4139, %v3064
        %v4152 = vsub.f32 %v4143, %v3064
        %v4153 = vsub.f32 %v4147, %v3064
        %v4154 = vsub.f32 %v4139, %v3065
        %v4155 = vsub.f32 %v4143, %v3065
        %v4156 = vsub.f32 %v4147, %v3065
        %v4157 = vsub.f32 %v4139, %v3066
        %v4158 = vsub.f32 %v4143, %v3066
        %v4159 = vsub.f32 %v4147, %v3066
        %v4160 = vsub.f32 %v4139, %v3067
        %v4161 = vsub.f32 %v4143, %v3067
        %v4162 = vsub.f32 %v4147, %v3067
        %v4163 = vsub.f32 %v4139, %v3068
        %v4164 = vsub.f32 %v4143, %v3068
        %v4165 = vsub.f32 %v4147, %v3068
        %v4166 = vsub.f32 %v4139, %v3069
        %v4167 = vsub.f32 %v4143, %v3069
        %v4168 = vsub.f32 %v4147, %v3069
        %v4169 = vsub.f32 %v4139, %v3070
        %v4170 = vsub.f32 %v4143, %v3070
        %v4171 = vsub.f32 %v4147, %v3070
        %v4172 = vsub.f32 %v4139, %v3071
        %v4173 = vsub.f32 %v4143, %v3071
        %v4174 = vsub.f32 %v4147, %v3071
        %v4175 = vsub.f32 %v4139, %v3072
        %v4176 = vsub.f32 %v4143, %v3072
        %v4177 = vsub.f32 %v4147, %v3072
        %v4178 = vsub.f32 %v4139, %v3073
        %v4179 = vsub.f32 %v4143, %v3073
        %v4180 = vsub.f32 %v4147, %v3073
        %v4181 = vsub.f32 %v4139, %v3074
        %v4182 = vsub.f32 %v4143, %v3074
        %v4183 = vsub.f32 %v4147, %v3074
        %v4184 = vsub.f32 %v4139, %v3075
        %v4185 = vsub.f32 %v4143, %v3075
        %v4186 = vsub.f32 %v4147, %v3075
        %v4187 = vsub.f32 %v4139, %v3076
        %v4188 = vsub.f32 %v4143, %v3076
        %v4189 = vsub.f32 %v4147, %v3076
        %v4190 = vsub.f32 %v4139, %v3077
        %v4191 = vsub.f32 %v4143, %v3077
        %v4192 = vsub.f32 %v4147, %v3077
        %v4193 = vsub.f32 %v4139, %v3078
        %v4194 = vsub.f32 %v4143, %v3078
        %v4195 = vsub.f32 %v4147, %v3078
        %v4196 = vsub.f32 %v4139, %v3079
        %v4197 = vsub.f32 %v4143, %v3079
        %v4198 = vsub.f32 %v4147, %v3079
        %v4200 = vlaneseq
        %v4201 = vshrl.u32 %v4200, 7
        %v4202 = vsub.s32 0, %v4201
        %v4203 = vrot.slane %v4022, %v4202
        %v4204 = vlaneseq
        %v4205 = vshrl.u32 %v4204, 7
        %v4206 = vsub.s32 1, %v4205
        %v4207 = vrot.slane %v4022, %v4206
        %v4208 = vlaneseq
        %v4209 = vshrl.u32 %v4208, 7
        %v4210 = vsub.s32 2, %v4209
        %v4211 = vrot.slane %v4022, %v4210
        %v4215 = vmul.f32 %v4151, %v4203
        %v4216 = vmul.f32 %v4152, %v4207
        %v4217 = vmul.f32 %v4153, %v4211
        %v4218 = vmul.f32 %v4154, %v4203
        %v4219 = vmul.f32 %v4155, %v4207
        %v4220 = vmul.f32 %v4156, %v4211
        %v4221 = vmul.f32 %v4157, %v4203
        %v4222 = vmul.f32 %v4158, %v4207
        %v4223 = vmul.f32 %v4159, %v4211
        %v4224 = vmul.f32 %v4160, %v4203
        %v4225 = vmul.f32 %v4161, %v4207
        %v4226 = vmul.f32 %v4162, %v4211
        %v4227 = vmul.f32 %v4163, %v4203
        %v4228 = vmul.f32 %v4164, %v4207
        %v4229 = vmul.f32 %v4165, %v4211
        %v4230 = vmul.f32 %v4166, %v4203
        %v4231 = vmul.f32 %v4167, %v4207
        %v4232 = vmul.f32 %v4168, %v4211
        %v4233 = vmul.f32 %v4169, %v4203
        %v4234 = vmul.f32 %v4170, %v4207
        %v4235 = vmul.f32 %v4171, %v4211
        %v4236 = vmul.f32 %v4172, %v4203
        %v4237 = vmul.f32 %v4173, %v4207
        %v4238 = vmul.f32 %v4174, %v4211
        %v4239 = vmul.f32 %v4175, %v4203
        %v4240 = vmul.f32 %v4176, %v4207
        %v4241 = vmul.f32 %v4177, %v4211
        %v4242 = vmul.f32 %v4178, %v4203
        %v4243 = vmul.f32 %v4179, %v4207
        %v4244 = vmul.f32 %v4180, %v4211
        %v4245 = vmul.f32 %v4181, %v4203
        %v4246 = vmul.f32 %v4182, %v4207
        %v4247 = vmul.f32 %v4183, %v4211
        %v4248 = vmul.f32 %v4184, %v4203
        %v4249 = vmul.f32 %v4185, %v4207
        %v4250 = vmul.f32 %v4186, %v4211
        %v4251 = vmul.f32 %v4187, %v4203
        %v4252 = vmul.f32 %v4188, %v4207
        %v4253 = vmul.f32 %v4189, %v4211
        %v4254 = vmul.f32 %v4190, %v4203
        %v4255 = vmul.f32 %v4191, %v4207
        %v4256 = vmul.f32 %v4192, %v4211
        %v4257 = vmul.f32 %v4193, %v4203
        %v4258 = vmul.f32 %v4194, %v4207
        %v4259 = vmul.f32 %v4195, %v4211
        %v4260 = vmul.f32 %v4196, %v4203
        %v4261 = vmul.f32 %v4197, %v4207
        %v4262 = vmul.f32 %v4198, %v4211
        %4263 = vrot.lane.b32.xlu0 %v3969, 96
        %v4264 = vpop.permute.xlu0 %4263
        %4265 = vrot.lane.b32.xlu0 %v3972, 96
        %v4266 = vpop.permute.xlu0 %4265
        %4267 = vrot.lane.b32.xlu0 %v3975, 96
        %v4268 = vpop.permute.xlu0 %4267
        %4269 = vrot.lane.b32.xlu0 %v3978, 96
        %v4270 = vpop.permute.xlu0 %4269
        %4271 = vrot.lane.b32.xlu0 %v3981, 96
        %v4272 = vpop.permute.xlu0 %4271
        %4273 = vrot.lane.b32.xlu0 %v3984, 96
        %v4274 = vpop.permute.xlu0 %4273
        %4275 = vrot.lane.b32.xlu0 %v3987, 96
        %v4276 = vpop.permute.xlu0 %4275
        %4277 = vrot.lane.b32.xlu0 %v3990, 96
        %v4278 = vpop.permute.xlu0 %4277
        %4279 = vrot.lane.b32.xlu0 %v3993, 96
        %v4280 = vpop.permute.xlu0 %4279
        %4281 = vrot.lane.b32.xlu0 %v3996, 96
        %v4282 = vpop.permute.xlu0 %4281
        %4283 = vrot.lane.b32.xlu0 %v3999, 96
        %v4284 = vpop.permute.xlu0 %4283
        %4285 = vrot.lane.b32.xlu0 %v4002, 96
        %v4286 = vpop.permute.xlu0 %4285
        %4287 = vrot.lane.b32.xlu0 %v4005, 96
        %v4288 = vpop.permute.xlu0 %4287
        %4289 = vrot.lane.b32.xlu0 %v4008, 96
        %v4290 = vpop.permute.xlu0 %4289
        %4291 = vrot.lane.b32.xlu0 %v4011, 96
        %v4292 = vpop.permute.xlu0 %4291
        %4293 = vrot.lane.b32.xlu0 %v4014, 96
        %v4294 = vpop.permute.xlu0 %4293
        %4295 = vrot.lane.b32.xlu0 %v3970, 96
        %v4296 = vpop.permute.xlu0 %4295
        %4297 = vrot.lane.b32.xlu0 %v3973, 96
        %v4298 = vpop.permute.xlu0 %4297
        %4299 = vrot.lane.b32.xlu0 %v3976, 96
        %v4300 = vpop.permute.xlu0 %4299
        %4301 = vrot.lane.b32.xlu0 %v3979, 96
        %v4302 = vpop.permute.xlu0 %4301
        %4303 = vrot.lane.b32.xlu0 %v3982, 96
        %v4304 = vpop.permute.xlu0 %4303
        %4305 = vrot.lane.b32.xlu0 %v3985, 96
        %v4306 = vpop.permute.xlu0 %4305
        %4307 = vrot.lane.b32.xlu0 %v3988, 96
        %v4308 = vpop.permute.xlu0 %4307
        %4309 = vrot.lane.b32.xlu0 %v3991, 96
        %v4310 = vpop.permute.xlu0 %4309
        %4311 = vrot.lane.b32.xlu0 %v3994, 96
        %v4312 = vpop.permute.xlu0 %4311
        %4313 = vrot.lane.b32.xlu0 %v3997, 96
        %v4314 = vpop.permute.xlu0 %4313
        %4315 = vrot.lane.b32.xlu0 %v4000, 96
        %v4316 = vpop.permute.xlu0 %4315
        %4317 = vrot.lane.b32.xlu0 %v4003, 96
        %v4318 = vpop.permute.xlu0 %4317
        %4319 = vrot.lane.b32.xlu0 %v4006, 96
        %v4320 = vpop.permute.xlu0 %4319
        %4321 = vrot.lane.b32.xlu0 %v4009, 96
        %v4322 = vpop.permute.xlu0 %4321
        %4323 = vrot.lane.b32.xlu0 %v4012, 96
        %v4324 = vpop.permute.xlu0 %4323
        %4325 = vrot.lane.b32.xlu0 %v4015, 96
        %v4326 = vpop.permute.xlu0 %4325
        %4327 = vrot.lane.b32.xlu0 %v3971, 96
        %v4328 = vpop.permute.xlu0 %4327
        %4329 = vrot.lane.b32.xlu0 %v3974, 96
        %v4330 = vpop.permute.xlu0 %4329
        %4331 = vrot.lane.b32.xlu0 %v3977, 96
        %v4332 = vpop.permute.xlu0 %4331
        %4333 = vrot.lane.b32.xlu0 %v3980, 96
        %v4334 = vpop.permute.xlu0 %4333
        %4335 = vrot.lane.b32.xlu0 %v3983, 96
        %v4336 = vpop.permute.xlu0 %4335
        %4337 = vrot.lane.b32.xlu0 %v3986, 96
        %v4338 = vpop.permute.xlu0 %4337
        %4339 = vrot.lane.b32.xlu0 %v3989, 96
        %v4340 = vpop.permute.xlu0 %4339
        %4341 = vrot.lane.b32.xlu0 %v3992, 96
        %v4342 = vpop.permute.xlu0 %4341
        %4343 = vrot.lane.b32.xlu0 %v3995, 96
        %v4344 = vpop.permute.xlu0 %4343
        %4345 = vrot.lane.b32.xlu0 %v3998, 96
        %v4346 = vpop.permute.xlu0 %4345
        %4347 = vrot.lane.b32.xlu0 %v4001, 96
        %v4348 = vpop.permute.xlu0 %4347
        %4349 = vrot.lane.b32.xlu0 %v4004, 96
        %v4350 = vpop.permute.xlu0 %4349
        %4351 = vrot.lane.b32.xlu0 %v4007, 96
        %v4352 = vpop.permute.xlu0 %4351
        %4353 = vrot.lane.b32.xlu0 %v4010, 96
        %v4354 = vpop.permute.xlu0 %4353
        %4355 = vrot.lane.b32.xlu0 %v4013, 96
        %v4356 = vpop.permute.xlu0 %4355
        %4357 = vrot.lane.b32.xlu0 %v4016, 96
        %v4358 = vpop.permute.xlu0 %4357
        %v4359 = vsel %vm3338, %v4296, %v4328
        %v4360 = vsel %vm3338, %v4298, %v4330
        %v4361 = vsel %vm3338, %v4300, %v4332
        %v4362 = vsel %vm3338, %v4302, %v4334
        %v4363 = vsel %vm3338, %v4304, %v4336
        %v4364 = vsel %vm3338, %v4306, %v4338
        %v4365 = vsel %vm3338, %v4308, %v4340
        %v4366 = vsel %vm3338, %v4310, %v4342
        %v4367 = vsel %vm3338, %v4312, %v4344
        %v4368 = vsel %vm3338, %v4314, %v4346
        %v4369 = vsel %vm3338, %v4316, %v4348
        %v4370 = vsel %vm3338, %v4318, %v4350
        %v4371 = vsel %vm3338, %v4320, %v4352
        %v4372 = vsel %vm3338, %v4322, %v4354
        %v4373 = vsel %vm3338, %v4324, %v4356
        %v4374 = vsel %vm3338, %v4326, %v4358
        %v4375 = vsel %vm3338, %v4264, %v4296
        %v4376 = vsel %vm3338, %v4266, %v4298
        %v4377 = vsel %vm3338, %v4268, %v4300
        %v4378 = vsel %vm3338, %v4270, %v4302
        %v4379 = vsel %vm3338, %v4272, %v4304
        %v4380 = vsel %vm3338, %v4274, %v4306
        %v4381 = vsel %vm3338, %v4276, %v4308
        %v4382 = vsel %vm3338, %v4278, %v4310
        %v4383 = vsel %vm3338, %v4280, %v4312
        %v4384 = vsel %vm3338, %v4282, %v4314
        %v4385 = vsel %vm3338, %v4284, %v4316
        %v4386 = vsel %vm3338, %v4286, %v4318
        %v4387 = vsel %vm3338, %v4288, %v4320
        %v4388 = vsel %vm3338, %v4290, %v4322
        %v4389 = vsel %vm3338, %v4292, %v4324
        %v4390 = vsel %vm3338, %v4294, %v4326
        %v4391 = vsel %vm3338, %v4328, %v4264
        %v4392 = vsel %vm3338, %v4330, %v4266
        %v4393 = vsel %vm3338, %v4332, %v4268
        %v4394 = vsel %vm3338, %v4334, %v4270
        %v4395 = vsel %vm3338, %v4336, %v4272
        %v4396 = vsel %vm3338, %v4338, %v4274
        %v4397 = vsel %vm3338, %v4340, %v4276
        %v4398 = vsel %vm3338, %v4342, %v4278
        %v4399 = vsel %vm3338, %v4344, %v4280
        %v4400 = vsel %vm3338, %v4346, %v4282
        %v4401 = vsel %vm3338, %v4348, %v4284
        %v4402 = vsel %vm3338, %v4350, %v4286
        %v4403 = vsel %vm3338, %v4352, %v4288
        %v4404 = vsel %vm3338, %v4354, %v4290
        %v4405 = vsel %vm3338, %v4356, %v4292
        %v4406 = vsel %vm3338, %v4358, %v4294
        %v4407 = vmul.f32 %v4215, %v4375
        %v4408 = vmul.f32 %v4216, %v4359
        %v4409 = vmul.f32 %v4217, %v4391
        %v4410 = vmul.f32 %v4218, %v4376
        %v4411 = vmul.f32 %v4219, %v4360
        %v4412 = vmul.f32 %v4220, %v4392
        %v4413 = vmul.f32 %v4221, %v4377
        %v4414 = vmul.f32 %v4222, %v4361
        %v4415 = vmul.f32 %v4223, %v4393
        %v4416 = vmul.f32 %v4224, %v4378
        %v4417 = vmul.f32 %v4225, %v4362
        %v4418 = vmul.f32 %v4226, %v4394
        %v4419 = vmul.f32 %v4227, %v4379
        %v4420 = vmul.f32 %v4228, %v4363
        %v4421 = vmul.f32 %v4229, %v4395
        %v4422 = vmul.f32 %v4230, %v4380
        %v4423 = vmul.f32 %v4231, %v4364
        %v4424 = vmul.f32 %v4232, %v4396
        %v4425 = vmul.f32 %v4233, %v4381
        %v4426 = vmul.f32 %v4234, %v4365
        %v4427 = vmul.f32 %v4235, %v4397
        %v4428 = vmul.f32 %v4236, %v4382
        %v4429 = vmul.f32 %v4237, %v4366
        %v4430 = vmul.f32 %v4238, %v4398
        %v4431 = vmul.f32 %v4239, %v4383
        %v4432 = vmul.f32 %v4240, %v4367
        %v4433 = vmul.f32 %v4241, %v4399
        %v4434 = vmul.f32 %v4242, %v4384
        %v4435 = vmul.f32 %v4243, %v4368
        %v4436 = vmul.f32 %v4244, %v4400
        %v4437 = vmul.f32 %v4245, %v4385
        %v4438 = vmul.f32 %v4246, %v4369
        %v4439 = vmul.f32 %v4247, %v4401
        %v4440 = vmul.f32 %v4248, %v4386
        %v4441 = vmul.f32 %v4249, %v4370
        %v4442 = vmul.f32 %v4250, %v4402
        %v4443 = vmul.f32 %v4251, %v4387
        %v4444 = vmul.f32 %v4252, %v4371
        %v4445 = vmul.f32 %v4253, %v4403
        %v4446 = vmul.f32 %v4254, %v4388
        %v4447 = vmul.f32 %v4255, %v4372
        %v4448 = vmul.f32 %v4256, %v4404
        %v4449 = vmul.f32 %v4257, %v4389
        %v4450 = vmul.f32 %v4258, %v4373
        %v4451 = vmul.f32 %v4259, %v4405
        %v4452 = vmul.f32 %v4260, %v4390
        %v4453 = vmul.f32 %v4261, %v4374
        %v4454 = vmul.f32 %v4262, %v4406
        %v4455 = vadd.f32 %v4087, %v4407
        %v4456 = vadd.f32 %v4088, %v4408
        %v4457 = vadd.f32 %v4089, %v4409
        %v4458 = vadd.f32 %v4090, %v4410
        %v4459 = vadd.f32 %v4091, %v4411
        %v4460 = vadd.f32 %v4092, %v4412
        %v4461 = vadd.f32 %v4093, %v4413
        %v4462 = vadd.f32 %v4094, %v4414
        %v4463 = vadd.f32 %v4095, %v4415
        %v4464 = vadd.f32 %v4096, %v4416
        %v4465 = vadd.f32 %v4097, %v4417
        %v4466 = vadd.f32 %v4098, %v4418
        %v4467 = vadd.f32 %v4099, %v4419
        %v4468 = vadd.f32 %v4100, %v4420
        %v4469 = vadd.f32 %v4101, %v4421
        %v4470 = vadd.f32 %v4102, %v4422
        %v4471 = vadd.f32 %v4103, %v4423
        %v4472 = vadd.f32 %v4104, %v4424
        %v4473 = vadd.f32 %v4105, %v4425
        %v4474 = vadd.f32 %v4106, %v4426
        %v4475 = vadd.f32 %v4107, %v4427
        %v4476 = vadd.f32 %v4108, %v4428
        %v4477 = vadd.f32 %v4109, %v4429
        %v4478 = vadd.f32 %v4110, %v4430
        %v4479 = vadd.f32 %v4111, %v4431
        %v4480 = vadd.f32 %v4112, %v4432
        %v4481 = vadd.f32 %v4113, %v4433
        %v4482 = vadd.f32 %v4114, %v4434
        %v4483 = vadd.f32 %v4115, %v4435
        %v4484 = vadd.f32 %v4116, %v4436
        %v4485 = vadd.f32 %v4117, %v4437
        %v4486 = vadd.f32 %v4118, %v4438
        %v4487 = vadd.f32 %v4119, %v4439
        %v4488 = vadd.f32 %v4120, %v4440
        %v4489 = vadd.f32 %v4121, %v4441
        %v4490 = vadd.f32 %v4122, %v4442
        %v4491 = vadd.f32 %v4123, %v4443
        %v4492 = vadd.f32 %v4124, %v4444
        %v4493 = vadd.f32 %v4125, %v4445
        %v4494 = vadd.f32 %v4126, %v4446
        %v4495 = vadd.f32 %v4127, %v4447
        %v4496 = vadd.f32 %v4128, %v4448
        %v4497 = vadd.f32 %v4129, %v4449
        %v4498 = vadd.f32 %v4130, %v4450
        %v4499 = vadd.f32 %v4131, %v4451
        %v4500 = vadd.f32 %v4132, %v4452
        %v4501 = vadd.f32 %v4133, %v4453
        %v4502 = vadd.f32 %v4134, %v4454
        %s4503 = scalar_lea.vmem %s3, 25
        %v4504 = vld [vmem:[%s4503] ss:$8 sm:$0x7]
        %s4505 = scalar_lea.vmem %s3, 26
        %v4506 = vld [vmem:[%s4505] ss:$8 sm:$0x7]
        %s4507 = scalar_lea.vmem %s3, 27
        %v4508 = vld [vmem:[%s4507] ss:$8 sm:$0x7]
        %v4510 = vlaneseq
        %v4511 = vshrl.u32 %v4510, 7
        %v4512 = vsub.s32 0, %v4511
        %v4513 = vrot.slane %v4504, %v4512
        %v4514 = vlaneseq
        %v4515 = vshrl.u32 %v4514, 7
        %v4516 = vsub.s32 1, %v4515
        %v4517 = vrot.slane %v4504, %v4516
        %v4520 = vmul.f32 %v3483, %v4513
        %v4521 = vmul.f32 %v3484, %v4517
        %v4522 = vmul.f32 %v3486, %v4513
        %v4523 = vmul.f32 %v3487, %v4517
        %v4524 = vmul.f32 %v3489, %v4513
        %v4525 = vmul.f32 %v3490, %v4517
        %v4526 = vmul.f32 %v3492, %v4513
        %v4527 = vmul.f32 %v3493, %v4517
        %v4528 = vmul.f32 %v3495, %v4513
        %v4529 = vmul.f32 %v3496, %v4517
        %v4530 = vmul.f32 %v3498, %v4513
        %v4531 = vmul.f32 %v3499, %v4517
        %v4532 = vmul.f32 %v3501, %v4513
        %v4533 = vmul.f32 %v3502, %v4517
        %v4534 = vmul.f32 %v3504, %v4513
        %v4535 = vmul.f32 %v3505, %v4517
        %v4536 = vmul.f32 %v3507, %v4513
        %v4537 = vmul.f32 %v3508, %v4517
        %v4538 = vmul.f32 %v3510, %v4513
        %v4539 = vmul.f32 %v3511, %v4517
        %v4540 = vmul.f32 %v3513, %v4513
        %v4541 = vmul.f32 %v3514, %v4517
        %v4542 = vmul.f32 %v3516, %v4513
        %v4543 = vmul.f32 %v3517, %v4517
        %v4544 = vmul.f32 %v3519, %v4513
        %v4545 = vmul.f32 %v3520, %v4517
        %v4546 = vmul.f32 %v3522, %v4513
        %v4547 = vmul.f32 %v3523, %v4517
        %v4548 = vmul.f32 %v3525, %v4513
        %v4549 = vmul.f32 %v3526, %v4517
        %v4550 = vmul.f32 %v3528, %v4513
        %v4551 = vmul.f32 %v3529, %v4517
        %v4552 = vmul.f32 %v4520, %v4455
        %v4553 = vmul.f32 %v4521, %v4456
        %v4554 = vmul.f32 %v4522, %v4458
        %v4555 = vmul.f32 %v4523, %v4459
        %v4556 = vmul.f32 %v4524, %v4461
        %v4557 = vmul.f32 %v4525, %v4462
        %v4558 = vmul.f32 %v4526, %v4464
        %v4559 = vmul.f32 %v4527, %v4465
        %v4560 = vmul.f32 %v4528, %v4467
        %v4561 = vmul.f32 %v4529, %v4468
        %v4562 = vmul.f32 %v4530, %v4470
        %v4563 = vmul.f32 %v4531, %v4471
        %v4564 = vmul.f32 %v4532, %v4473
        %v4565 = vmul.f32 %v4533, %v4474
        %v4566 = vmul.f32 %v4534, %v4476
        %v4567 = vmul.f32 %v4535, %v4477
        %v4568 = vmul.f32 %v4536, %v4479
        %v4569 = vmul.f32 %v4537, %v4480
        %v4570 = vmul.f32 %v4538, %v4482
        %v4571 = vmul.f32 %v4539, %v4483
        %v4572 = vmul.f32 %v4540, %v4485
        %v4573 = vmul.f32 %v4541, %v4486
        %v4574 = vmul.f32 %v4542, %v4488
        %v4575 = vmul.f32 %v4543, %v4489
        %v4576 = vmul.f32 %v4544, %v4491
        %v4577 = vmul.f32 %v4545, %v4492
        %v4578 = vmul.f32 %v4546, %v4494
        %v4579 = vmul.f32 %v4547, %v4495
        %v4580 = vmul.f32 %v4548, %v4497
        %v4581 = vmul.f32 %v4549, %v4498
        %v4582 = vmul.f32 %v4550, %v4500
        %v4583 = vmul.f32 %v4551, %v4501
        %v4585 = vlaneseq
        %v4586 = vshrl.u32 %v4585, 7
        %v4587 = vsub.s32 0, %v4586
        %v4588 = vrot.slane %v4506, %v4587
        %v4589 = vlaneseq
        %v4590 = vshrl.u32 %v4589, 7
        %v4591 = vsub.s32 1, %v4590
        %v4592 = vrot.slane %v4506, %v4591
        %v4595 = vsub.f32 %v4588, %v3064
        %v4596 = vsub.f32 %v4592, %v3064
        %v4597 = vsub.f32 %v4588, %v3065
        %v4598 = vsub.f32 %v4592, %v3065
        %v4599 = vsub.f32 %v4588, %v3066
        %v4600 = vsub.f32 %v4592, %v3066
        %v4601 = vsub.f32 %v4588, %v3067
        %v4602 = vsub.f32 %v4592, %v3067
        %v4603 = vsub.f32 %v4588, %v3068
        %v4604 = vsub.f32 %v4592, %v3068
        %v4605 = vsub.f32 %v4588, %v3069
        %v4606 = vsub.f32 %v4592, %v3069
        %v4607 = vsub.f32 %v4588, %v3070
        %v4608 = vsub.f32 %v4592, %v3070
        %v4609 = vsub.f32 %v4588, %v3071
        %v4610 = vsub.f32 %v4592, %v3071
        %v4611 = vsub.f32 %v4588, %v3072
        %v4612 = vsub.f32 %v4592, %v3072
        %v4613 = vsub.f32 %v4588, %v3073
        %v4614 = vsub.f32 %v4592, %v3073
        %v4615 = vsub.f32 %v4588, %v3074
        %v4616 = vsub.f32 %v4592, %v3074
        %v4617 = vsub.f32 %v4588, %v3075
        %v4618 = vsub.f32 %v4592, %v3075
        %v4619 = vsub.f32 %v4588, %v3076
        %v4620 = vsub.f32 %v4592, %v3076
        %v4621 = vsub.f32 %v4588, %v3077
        %v4622 = vsub.f32 %v4592, %v3077
        %v4623 = vsub.f32 %v4588, %v3078
        %v4624 = vsub.f32 %v4592, %v3078
        %v4625 = vsub.f32 %v4588, %v3079
        %v4626 = vsub.f32 %v4592, %v3079
        %v4628 = vlaneseq
        %v4629 = vshrl.u32 %v4628, 7
        %v4630 = vsub.s32 0, %v4629
        %v4631 = vrot.slane %v4508, %v4630
        %v4632 = vlaneseq
        %v4633 = vshrl.u32 %v4632, 7
        %v4634 = vsub.s32 1, %v4633
        %v4635 = vrot.slane %v4508, %v4634
        %v4638 = vmul.f32 %v4595, %v4631
        %v4639 = vmul.f32 %v4596, %v4635
        %v4640 = vmul.f32 %v4597, %v4631
        %v4641 = vmul.f32 %v4598, %v4635
        %v4642 = vmul.f32 %v4599, %v4631
        %v4643 = vmul.f32 %v4600, %v4635
        %v4644 = vmul.f32 %v4601, %v4631
        %v4645 = vmul.f32 %v4602, %v4635
        %v4646 = vmul.f32 %v4603, %v4631
        %v4647 = vmul.f32 %v4604, %v4635
        %v4648 = vmul.f32 %v4605, %v4631
        %v4649 = vmul.f32 %v4606, %v4635
        %v4650 = vmul.f32 %v4607, %v4631
        %v4651 = vmul.f32 %v4608, %v4635
        %v4652 = vmul.f32 %v4609, %v4631
        %v4653 = vmul.f32 %v4610, %v4635
        %v4654 = vmul.f32 %v4611, %v4631
        %v4655 = vmul.f32 %v4612, %v4635
        %v4656 = vmul.f32 %v4613, %v4631
        %v4657 = vmul.f32 %v4614, %v4635
        %v4658 = vmul.f32 %v4615, %v4631
        %v4659 = vmul.f32 %v4616, %v4635
        %v4660 = vmul.f32 %v4617, %v4631
        %v4661 = vmul.f32 %v4618, %v4635
        %v4662 = vmul.f32 %v4619, %v4631
        %v4663 = vmul.f32 %v4620, %v4635
        %v4664 = vmul.f32 %v4621, %v4631
        %v4665 = vmul.f32 %v4622, %v4635
        %v4666 = vmul.f32 %v4623, %v4631
        %v4667 = vmul.f32 %v4624, %v4635
        %v4668 = vmul.f32 %v4625, %v4631
        %v4669 = vmul.f32 %v4626, %v4635
        %4670 = vrot.lane.b32.xlu0 %v4455, 96
        %v4671 = vpop.permute.xlu0 %4670
        %4672 = vrot.lane.b32.xlu0 %v4458, 96
        %v4673 = vpop.permute.xlu0 %4672
        %4674 = vrot.lane.b32.xlu0 %v4461, 96
        %v4675 = vpop.permute.xlu0 %4674
        %4676 = vrot.lane.b32.xlu0 %v4464, 96
        %v4677 = vpop.permute.xlu0 %4676
        %4678 = vrot.lane.b32.xlu0 %v4467, 96
        %v4679 = vpop.permute.xlu0 %4678
        %4680 = vrot.lane.b32.xlu0 %v4470, 96
        %v4681 = vpop.permute.xlu0 %4680
        %4682 = vrot.lane.b32.xlu0 %v4473, 96
        %v4683 = vpop.permute.xlu0 %4682
        %4684 = vrot.lane.b32.xlu0 %v4476, 96
        %v4685 = vpop.permute.xlu0 %4684
        %4686 = vrot.lane.b32.xlu0 %v4479, 96
        %v4687 = vpop.permute.xlu0 %4686
        %4688 = vrot.lane.b32.xlu0 %v4482, 96
        %v4689 = vpop.permute.xlu0 %4688
        %4690 = vrot.lane.b32.xlu0 %v4485, 96
        %v4691 = vpop.permute.xlu0 %4690
        %4692 = vrot.lane.b32.xlu0 %v4488, 96
        %v4693 = vpop.permute.xlu0 %4692
        %4694 = vrot.lane.b32.xlu0 %v4491, 96
        %v4695 = vpop.permute.xlu0 %4694
        %4696 = vrot.lane.b32.xlu0 %v4494, 96
        %v4697 = vpop.permute.xlu0 %4696
        %4698 = vrot.lane.b32.xlu0 %v4497, 96
        %v4699 = vpop.permute.xlu0 %4698
        %4700 = vrot.lane.b32.xlu0 %v4500, 96
        %v4701 = vpop.permute.xlu0 %4700
        %4702 = vrot.lane.b32.xlu0 %v4456, 96
        %v4703 = vpop.permute.xlu0 %4702
        %4704 = vrot.lane.b32.xlu0 %v4459, 96
        %v4705 = vpop.permute.xlu0 %4704
        %4706 = vrot.lane.b32.xlu0 %v4462, 96
        %v4707 = vpop.permute.xlu0 %4706
        %4708 = vrot.lane.b32.xlu0 %v4465, 96
        %v4709 = vpop.permute.xlu0 %4708
        %4710 = vrot.lane.b32.xlu0 %v4468, 96
        %v4711 = vpop.permute.xlu0 %4710
        %4712 = vrot.lane.b32.xlu0 %v4471, 96
        %v4713 = vpop.permute.xlu0 %4712
        %4714 = vrot.lane.b32.xlu0 %v4474, 96
        %v4715 = vpop.permute.xlu0 %4714
        %4716 = vrot.lane.b32.xlu0 %v4477, 96
        %v4717 = vpop.permute.xlu0 %4716
        %4718 = vrot.lane.b32.xlu0 %v4480, 96
        %v4719 = vpop.permute.xlu0 %4718
        %4720 = vrot.lane.b32.xlu0 %v4483, 96
        %v4721 = vpop.permute.xlu0 %4720
        %4722 = vrot.lane.b32.xlu0 %v4486, 96
        %v4723 = vpop.permute.xlu0 %4722
        %4724 = vrot.lane.b32.xlu0 %v4489, 96
        %v4725 = vpop.permute.xlu0 %4724
        %4726 = vrot.lane.b32.xlu0 %v4492, 96
        %v4727 = vpop.permute.xlu0 %4726
        %4728 = vrot.lane.b32.xlu0 %v4495, 96
        %v4729 = vpop.permute.xlu0 %4728
        %4730 = vrot.lane.b32.xlu0 %v4498, 96
        %v4731 = vpop.permute.xlu0 %4730
        %4732 = vrot.lane.b32.xlu0 %v4501, 96
        %v4733 = vpop.permute.xlu0 %4732
        %4734 = vrot.lane.b32.xlu0 %v4457, 96
        %v4735 = vpop.permute.xlu0 %4734
        %4736 = vrot.lane.b32.xlu0 %v4460, 96
        %v4737 = vpop.permute.xlu0 %4736
        %4738 = vrot.lane.b32.xlu0 %v4463, 96
        %v4739 = vpop.permute.xlu0 %4738
        %4740 = vrot.lane.b32.xlu0 %v4466, 96
        %v4741 = vpop.permute.xlu0 %4740
        %4742 = vrot.lane.b32.xlu0 %v4469, 96
        %v4743 = vpop.permute.xlu0 %4742
        %4744 = vrot.lane.b32.xlu0 %v4472, 96
        %v4745 = vpop.permute.xlu0 %4744
        %4746 = vrot.lane.b32.xlu0 %v4475, 96
        %v4747 = vpop.permute.xlu0 %4746
        %4748 = vrot.lane.b32.xlu0 %v4478, 96
        %v4749 = vpop.permute.xlu0 %4748
        %4750 = vrot.lane.b32.xlu0 %v4481, 96
        %v4751 = vpop.permute.xlu0 %4750
        %4752 = vrot.lane.b32.xlu0 %v4484, 96
        %v4753 = vpop.permute.xlu0 %4752
        %4754 = vrot.lane.b32.xlu0 %v4487, 96
        %v4755 = vpop.permute.xlu0 %4754
        %4756 = vrot.lane.b32.xlu0 %v4490, 96
        %v4757 = vpop.permute.xlu0 %4756
        %4758 = vrot.lane.b32.xlu0 %v4493, 96
        %v4759 = vpop.permute.xlu0 %4758
        %4760 = vrot.lane.b32.xlu0 %v4496, 96
        %v4761 = vpop.permute.xlu0 %4760
        %4762 = vrot.lane.b32.xlu0 %v4499, 96
        %v4763 = vpop.permute.xlu0 %4762
        %4764 = vrot.lane.b32.xlu0 %v4502, 96
        %v4765 = vpop.permute.xlu0 %4764
        %v4766 = vsel %vm3338, %v4703, %v4735
        %v4767 = vsel %vm3338, %v4705, %v4737
        %v4768 = vsel %vm3338, %v4707, %v4739
        %v4769 = vsel %vm3338, %v4709, %v4741
        %v4770 = vsel %vm3338, %v4711, %v4743
        %v4771 = vsel %vm3338, %v4713, %v4745
        %v4772 = vsel %vm3338, %v4715, %v4747
        %v4773 = vsel %vm3338, %v4717, %v4749
        %v4774 = vsel %vm3338, %v4719, %v4751
        %v4775 = vsel %vm3338, %v4721, %v4753
        %v4776 = vsel %vm3338, %v4723, %v4755
        %v4777 = vsel %vm3338, %v4725, %v4757
        %v4778 = vsel %vm3338, %v4727, %v4759
        %v4779 = vsel %vm3338, %v4729, %v4761
        %v4780 = vsel %vm3338, %v4731, %v4763
        %v4781 = vsel %vm3338, %v4733, %v4765
        %v4782 = vsel %vm3338, %v4671, %v4703
        %v4783 = vsel %vm3338, %v4673, %v4705
        %v4784 = vsel %vm3338, %v4675, %v4707
        %v4785 = vsel %vm3338, %v4677, %v4709
        %v4786 = vsel %vm3338, %v4679, %v4711
        %v4787 = vsel %vm3338, %v4681, %v4713
        %v4788 = vsel %vm3338, %v4683, %v4715
        %v4789 = vsel %vm3338, %v4685, %v4717
        %v4790 = vsel %vm3338, %v4687, %v4719
        %v4791 = vsel %vm3338, %v4689, %v4721
        %v4792 = vsel %vm3338, %v4691, %v4723
        %v4793 = vsel %vm3338, %v4693, %v4725
        %v4794 = vsel %vm3338, %v4695, %v4727
        %v4795 = vsel %vm3338, %v4697, %v4729
        %v4796 = vsel %vm3338, %v4699, %v4731
        %v4797 = vsel %vm3338, %v4701, %v4733
        %v4798 = vmul.f32 %v4638, %v4782
        %v4799 = vmul.f32 %v4639, %v4766
        %v4800 = vmul.f32 %v4640, %v4783
        %v4801 = vmul.f32 %v4641, %v4767
        %v4802 = vmul.f32 %v4642, %v4784
        %v4803 = vmul.f32 %v4643, %v4768
        %v4804 = vmul.f32 %v4644, %v4785
        %v4805 = vmul.f32 %v4645, %v4769
        %v4806 = vmul.f32 %v4646, %v4786
        %v4807 = vmul.f32 %v4647, %v4770
        %v4808 = vmul.f32 %v4648, %v4787
        %v4809 = vmul.f32 %v4649, %v4771
        %v4810 = vmul.f32 %v4650, %v4788
        %v4811 = vmul.f32 %v4651, %v4772
        %v4812 = vmul.f32 %v4652, %v4789
        %v4813 = vmul.f32 %v4653, %v4773
        %v4814 = vmul.f32 %v4654, %v4790
        %v4815 = vmul.f32 %v4655, %v4774
        %v4816 = vmul.f32 %v4656, %v4791
        %v4817 = vmul.f32 %v4657, %v4775
        %v4818 = vmul.f32 %v4658, %v4792
        %v4819 = vmul.f32 %v4659, %v4776
        %v4820 = vmul.f32 %v4660, %v4793
        %v4821 = vmul.f32 %v4661, %v4777
        %v4822 = vmul.f32 %v4662, %v4794
        %v4823 = vmul.f32 %v4663, %v4778
        %v4824 = vmul.f32 %v4664, %v4795
        %v4825 = vmul.f32 %v4665, %v4779
        %v4826 = vmul.f32 %v4666, %v4796
        %v4827 = vmul.f32 %v4667, %v4780
        %v4828 = vmul.f32 %v4668, %v4797
        %v4829 = vmul.f32 %v4669, %v4781
        %v4830 = vadd.f32 %v4552, %v4798
        %v4831 = vadd.f32 %v4553, %v4799
        %v4832 = vadd.f32 %v4554, %v4800
        %v4833 = vadd.f32 %v4555, %v4801
        %v4834 = vadd.f32 %v4556, %v4802
        %v4835 = vadd.f32 %v4557, %v4803
        %v4836 = vadd.f32 %v4558, %v4804
        %v4837 = vadd.f32 %v4559, %v4805
        %v4838 = vadd.f32 %v4560, %v4806
        %v4839 = vadd.f32 %v4561, %v4807
        %v4840 = vadd.f32 %v4562, %v4808
        %v4841 = vadd.f32 %v4563, %v4809
        %v4842 = vadd.f32 %v4564, %v4810
        %v4843 = vadd.f32 %v4565, %v4811
        %v4844 = vadd.f32 %v4566, %v4812
        %v4845 = vadd.f32 %v4567, %v4813
        %v4846 = vadd.f32 %v4568, %v4814
        %v4847 = vadd.f32 %v4569, %v4815
        %v4848 = vadd.f32 %v4570, %v4816
        %v4849 = vadd.f32 %v4571, %v4817
        %v4850 = vadd.f32 %v4572, %v4818
        %v4851 = vadd.f32 %v4573, %v4819
        %v4852 = vadd.f32 %v4574, %v4820
        %v4853 = vadd.f32 %v4575, %v4821
        %v4854 = vadd.f32 %v4576, %v4822
        %v4855 = vadd.f32 %v4577, %v4823
        %v4856 = vadd.f32 %v4578, %v4824
        %v4857 = vadd.f32 %v4579, %v4825
        %v4858 = vadd.f32 %v4580, %v4826
        %v4859 = vadd.f32 %v4581, %v4827
        %v4860 = vadd.f32 %v4582, %v4828
        %v4861 = vadd.f32 %v4583, %v4829
        %s4862 = scalar_lea.vmem %s3, 28
        %v4863 = vld [vmem:[%s4862] ss:$8 sm:$0x3]
        %v4865 = vlaneseq
        %v4866 = vshrl.u32 %v4865, 7
        %v4867 = vsub.s32 0, %v4866
        %v4868 = vrot.slane %v4863, %v4867
        %v4869 = vlaneseq
        %v4870 = vshrl.u32 %v4869, 7
        %v4871 = vsub.s32 1, %v4870
        %v4872 = vrot.slane %v4863, %v4871
        %v4875 = vsub.f32 %v3064, %v4868
        %v4876 = vsub.f32 %v3064, %v4872
        %v4877 = vsub.f32 %v3065, %v4868
        %v4878 = vsub.f32 %v3065, %v4872
        %v4879 = vsub.f32 %v3066, %v4868
        %v4880 = vsub.f32 %v3066, %v4872
        %v4881 = vsub.f32 %v3067, %v4868
        %v4882 = vsub.f32 %v3067, %v4872
        %v4883 = vsub.f32 %v3068, %v4868
        %v4884 = vsub.f32 %v3068, %v4872
        %v4885 = vsub.f32 %v3069, %v4868
        %v4886 = vsub.f32 %v3069, %v4872
        %v4887 = vsub.f32 %v3070, %v4868
        %v4888 = vsub.f32 %v3070, %v4872
        %v4889 = vsub.f32 %v3071, %v4868
        %v4890 = vsub.f32 %v3071, %v4872
        %v4891 = vsub.f32 %v3072, %v4868
        %v4892 = vsub.f32 %v3072, %v4872
        %v4893 = vsub.f32 %v3073, %v4868
        %v4894 = vsub.f32 %v3073, %v4872
        %v4895 = vsub.f32 %v3074, %v4868
        %v4896 = vsub.f32 %v3074, %v4872
        %v4897 = vsub.f32 %v3075, %v4868
        %v4898 = vsub.f32 %v3075, %v4872
        %v4899 = vsub.f32 %v3076, %v4868
        %v4900 = vsub.f32 %v3076, %v4872
        %v4901 = vsub.f32 %v3077, %v4868
        %v4902 = vsub.f32 %v3077, %v4872
        %v4903 = vsub.f32 %v3078, %v4868
        %v4904 = vsub.f32 %v3078, %v4872
        %v4905 = vsub.f32 %v3079, %v4868
        %v4906 = vsub.f32 %v3079, %v4872
        %v4907 = vmul.f32 %v4875, 2.3333333
        %v4908 = vmul.f32 %v4876, 2.3333333
        %v4909 = vmul.f32 %v4877, 2.3333333
        %v4910 = vmul.f32 %v4878, 2.3333333
        %v4911 = vmul.f32 %v4879, 2.3333333
        %v4912 = vmul.f32 %v4880, 2.3333333
        %v4913 = vmul.f32 %v4881, 2.3333333
        %v4914 = vmul.f32 %v4882, 2.3333333
        %v4915 = vmul.f32 %v4883, 2.3333333
        %v4916 = vmul.f32 %v4884, 2.3333333
        %v4917 = vmul.f32 %v4885, 2.3333333
        %v4918 = vmul.f32 %v4886, 2.3333333
        %v4919 = vmul.f32 %v4887, 2.3333333
        %v4920 = vmul.f32 %v4888, 2.3333333
        %v4921 = vmul.f32 %v4889, 2.3333333
        %v4922 = vmul.f32 %v4890, 2.3333333
        %v4923 = vmul.f32 %v4891, 2.3333333
        %v4924 = vmul.f32 %v4892, 2.3333333
        %v4925 = vmul.f32 %v4893, 2.3333333
        %v4926 = vmul.f32 %v4894, 2.3333333
        %v4927 = vmul.f32 %v4895, 2.3333333
        %v4928 = vmul.f32 %v4896, 2.3333333
        %v4929 = vmul.f32 %v4897, 2.3333333
        %v4930 = vmul.f32 %v4898, 2.3333333
        %v4931 = vmul.f32 %v4899, 2.3333333
        %v4932 = vmul.f32 %v4900, 2.3333333
        %v4933 = vmul.f32 %v4901, 2.3333333
        %v4934 = vmul.f32 %v4902, 2.3333333
        %v4935 = vmul.f32 %v4903, 2.3333333
        %v4936 = vmul.f32 %v4904, 2.3333333
        %v4937 = vmul.f32 %v4905, 2.3333333
        %v4938 = vmul.f32 %v4906, 2.3333333
        %v4939 = vmul.f32 %v4907, %v4907
        %v4940 = vmul.f32 %v4908, %v4908
        %v4941 = vmul.f32 %v4909, %v4909
        %v4942 = vmul.f32 %v4910, %v4910
        %v4943 = vmul.f32 %v4911, %v4911
        %v4944 = vmul.f32 %v4912, %v4912
        %v4945 = vmul.f32 %v4913, %v4913
        %v4946 = vmul.f32 %v4914, %v4914
        %v4947 = vmul.f32 %v4915, %v4915
        %v4948 = vmul.f32 %v4916, %v4916
        %v4949 = vmul.f32 %v4917, %v4917
        %v4950 = vmul.f32 %v4918, %v4918
        %v4951 = vmul.f32 %v4919, %v4919
        %v4952 = vmul.f32 %v4920, %v4920
        %v4953 = vmul.f32 %v4921, %v4921
        %v4954 = vmul.f32 %v4922, %v4922
        %v4955 = vmul.f32 %v4923, %v4923
        %v4956 = vmul.f32 %v4924, %v4924
        %v4957 = vmul.f32 %v4925, %v4925
        %v4958 = vmul.f32 %v4926, %v4926
        %v4959 = vmul.f32 %v4927, %v4927
        %v4960 = vmul.f32 %v4928, %v4928
        %v4961 = vmul.f32 %v4929, %v4929
        %v4962 = vmul.f32 %v4930, %v4930
        %v4963 = vmul.f32 %v4931, %v4931
        %v4964 = vmul.f32 %v4932, %v4932
        %v4965 = vmul.f32 %v4933, %v4933
        %v4966 = vmul.f32 %v4934, %v4934
        %v4967 = vmul.f32 %v4935, %v4935
        %v4968 = vmul.f32 %v4936, %v4936
        %v4969 = vmul.f32 %v4937, %v4937
        %v4970 = vmul.f32 %v4938, %v4938
        %v4971 = vsub.f32 0.0, %v4939
        %v4972 = vsub.f32 0.0, %v4940
        %v4973 = vsub.f32 0.0, %v4941
        %v4974 = vsub.f32 0.0, %v4942
        %v4975 = vsub.f32 0.0, %v4943
        %v4976 = vsub.f32 0.0, %v4944
        %v4977 = vsub.f32 0.0, %v4945
        %v4978 = vsub.f32 0.0, %v4946
        %v4979 = vsub.f32 0.0, %v4947
        %v4980 = vsub.f32 0.0, %v4948
        %v4981 = vsub.f32 0.0, %v4949
        %v4982 = vsub.f32 0.0, %v4950
        %v4983 = vsub.f32 0.0, %v4951
        %v4984 = vsub.f32 0.0, %v4952
        %v4985 = vsub.f32 0.0, %v4953
        %v4986 = vsub.f32 0.0, %v4954
        %v4987 = vsub.f32 0.0, %v4955
        %v4988 = vsub.f32 0.0, %v4956
        %v4989 = vsub.f32 0.0, %v4957
        %v4990 = vsub.f32 0.0, %v4958
        %v4991 = vsub.f32 0.0, %v4959
        %v4992 = vsub.f32 0.0, %v4960
        %v4993 = vsub.f32 0.0, %v4961
        %v4994 = vsub.f32 0.0, %v4962
        %v4995 = vsub.f32 0.0, %v4963
        %v4996 = vsub.f32 0.0, %v4964
        %v4997 = vsub.f32 0.0, %v4965
        %v4998 = vsub.f32 0.0, %v4966
        %v4999 = vsub.f32 0.0, %v4967
        %v5000 = vsub.f32 0.0, %v4968
        %v5001 = vsub.f32 0.0, %v4969
        %v5002 = vsub.f32 0.0, %v4970
        %v5003 = vmul.f32 %v4971, 1.442695
        %v5004 = vpow.pop %v5003
        %v5005 = vmul.f32 %v4972, 1.442695
        %v5006 = vpow.pop %v5005
        %v5007 = vmul.f32 %v4973, 1.442695
        %v5008 = vpow.pop %v5007
        %v5009 = vmul.f32 %v4974, 1.442695
        %v5010 = vpow.pop %v5009
        %v5011 = vmul.f32 %v4975, 1.442695
        %v5012 = vpow.pop %v5011
        %v5013 = vmul.f32 %v4976, 1.442695
        %v5014 = vpow.pop %v5013
        %v5015 = vmul.f32 %v4977, 1.442695
        %v5016 = vpow.pop %v5015
        %v5017 = vmul.f32 %v4978, 1.442695
        %v5018 = vpow.pop %v5017
        %v5019 = vmul.f32 %v4979, 1.442695
        %v5020 = vpow.pop %v5019
        %v5021 = vmul.f32 %v4980, 1.442695
        %v5022 = vpow.pop %v5021
        %v5023 = vmul.f32 %v4981, 1.442695
        %v5024 = vpow.pop %v5023
        %v5025 = vmul.f32 %v4982, 1.442695
        %v5026 = vpow.pop %v5025
        %v5027 = vmul.f32 %v4983, 1.442695
        %v5028 = vpow.pop %v5027
        %v5029 = vmul.f32 %v4984, 1.442695
        %v5030 = vpow.pop %v5029
        %v5031 = vmul.f32 %v4985, 1.442695
        %v5032 = vpow.pop %v5031
        %v5033 = vmul.f32 %v4986, 1.442695
        %v5034 = vpow.pop %v5033
        %v5035 = vmul.f32 %v4987, 1.442695
        %v5036 = vpow.pop %v5035
        %v5037 = vmul.f32 %v4988, 1.442695
        %v5038 = vpow.pop %v5037
        %v5039 = vmul.f32 %v4989, 1.442695
        %v5040 = vpow.pop %v5039
        %v5041 = vmul.f32 %v4990, 1.442695
        %v5042 = vpow.pop %v5041
        %v5043 = vmul.f32 %v4991, 1.442695
        %v5044 = vpow.pop %v5043
        %v5045 = vmul.f32 %v4992, 1.442695
        %v5046 = vpow.pop %v5045
        %v5047 = vmul.f32 %v4993, 1.442695
        %v5048 = vpow.pop %v5047
        %v5049 = vmul.f32 %v4994, 1.442695
        %v5050 = vpow.pop %v5049
        %v5051 = vmul.f32 %v4995, 1.442695
        %v5052 = vpow.pop %v5051
        %v5053 = vmul.f32 %v4996, 1.442695
        %v5054 = vpow.pop %v5053
        %v5055 = vmul.f32 %v4997, 1.442695
        %v5056 = vpow.pop %v5055
        %v5057 = vmul.f32 %v4998, 1.442695
        %v5058 = vpow.pop %v5057
        %v5059 = vmul.f32 %v4999, 1.442695
        %v5060 = vpow.pop %v5059
        %v5061 = vmul.f32 %v5000, 1.442695
        %v5062 = vpow.pop %v5061
        %v5063 = vmul.f32 %v5001, 1.442695
        %v5064 = vpow.pop %v5063
        %v5065 = vmul.f32 %v5002, 1.442695
        %v5066 = vpow.pop %v5065
        %v5067 = vadd.f32 %v4830, %v5004
        %v5068 = vadd.f32 %v4831, %v5006
        %v5069 = vadd.f32 %v4832, %v5008
        %v5070 = vadd.f32 %v4833, %v5010
        %v5071 = vadd.f32 %v4834, %v5012
        %v5072 = vadd.f32 %v4835, %v5014
        %v5073 = vadd.f32 %v4836, %v5016
        %v5074 = vadd.f32 %v4837, %v5018
        %v5075 = vadd.f32 %v4838, %v5020
        %v5076 = vadd.f32 %v4839, %v5022
        %v5077 = vadd.f32 %v4840, %v5024
        %v5078 = vadd.f32 %v4841, %v5026
        %v5079 = vadd.f32 %v4842, %v5028
        %v5080 = vadd.f32 %v4843, %v5030
        %v5081 = vadd.f32 %v4844, %v5032
        %v5082 = vadd.f32 %v4845, %v5034
        %v5083 = vadd.f32 %v4846, %v5036
        %v5084 = vadd.f32 %v4847, %v5038
        %v5085 = vadd.f32 %v4848, %v5040
        %v5086 = vadd.f32 %v4849, %v5042
        %v5087 = vadd.f32 %v4850, %v5044
        %v5088 = vadd.f32 %v4851, %v5046
        %v5089 = vadd.f32 %v4852, %v5048
        %v5090 = vadd.f32 %v4853, %v5050
        %v5091 = vadd.f32 %v4854, %v5052
        %v5092 = vadd.f32 %v4855, %v5054
        %v5093 = vadd.f32 %v4856, %v5056
        %v5094 = vadd.f32 %v4857, %v5058
        %v5095 = vadd.f32 %v4858, %v5060
        %v5096 = vadd.f32 %v4859, %v5062
        %v5097 = vadd.f32 %v4860, %v5064
        %v5098 = vadd.f32 %v4861, %v5066
        %v5099 = vpack.c.bf16 %v5069, %v5067
        %v5100 = vpack.c.bf16 %v5070, %v5068
        %v5101 = vpack.c.bf16 %v2843, %v2841
        %v5102 = vpack.c.bf16 %v5073, %v5071
        %v5103 = vpack.c.bf16 %v5074, %v5072
        %v5104 = vpack.c.bf16 %v2847, %v2845
        %v5105 = vpack.c.bf16 %v5077, %v5075
        %v5106 = vpack.c.bf16 %v5078, %v5076
        %v5107 = vpack.c.bf16 %v2851, %v2849
        %v5108 = vpack.c.bf16 %v5081, %v5079
        %v5109 = vpack.c.bf16 %v5082, %v5080
        %v5110 = vpack.c.bf16 %v2855, %v2853
        %v5111 = vpack.c.bf16 %v5085, %v5083
        %v5112 = vpack.c.bf16 %v5086, %v5084
        %v5113 = vpack.c.bf16 %v2859, %v2857
        %v5114 = vpack.c.bf16 %v5089, %v5087
        %v5115 = vpack.c.bf16 %v5090, %v5088
        %v5116 = vpack.c.bf16 %v2863, %v2861
        %v5117 = vpack.c.bf16 %v5093, %v5091
        %v5118 = vpack.c.bf16 %v5094, %v5092
        %v5119 = vpack.c.bf16 %v2867, %v2865
        %v5120 = vpack.c.bf16 %v5097, %v5095
        %v5121 = vpack.c.bf16 %v5098, %v5096
        %v5122 = vpack.c.bf16 %v2871, %v2869
        %v5123 = vld [vmem:[%s4] sm:$0xf]
        %v5124 = vld [vmem:[%s4 + $0x4] sm:$0xf]
        %v5125 = vld [vmem:[%s4 + $0x8] sm:$0xf]
        %v5126 = vld [vmem:[%s4 + $0xc] sm:$0xf]
        %v5127 = vld [vmem:[%s4 + $0x10] sm:$0xf]
        %v5128 = vld [vmem:[%s4 + $0x14] sm:$0xf]
        %v5129 = vld [vmem:[%s4 + $0x18] sm:$0xf]
        %v5130 = vld [vmem:[%s4 + $0x1c] sm:$0xf]
        %v5131 = vld [vmem:[%s4 + $0x20] sm:$0xf]
        %v5132 = vld [vmem:[%s4 + $0x24] sm:$0xf]
        %v5133 = vld [vmem:[%s4 + $0x28] sm:$0xf]
        %v5134 = vld [vmem:[%s4 + $0x2c] sm:$0xf]
        %v5135 = vld [vmem:[%s4 + $0x30] sm:$0xf]
        %v5136 = vld [vmem:[%s4 + $0x34] sm:$0xf]
        %v5137 = vld [vmem:[%s4 + $0x38] sm:$0xf]
        %v5138 = vld [vmem:[%s4 + $0x3c] sm:$0xf]
        %v5139 = vld [vmem:[%s4 + $0x40] sm:$0xf]
        %v5140 = vld [vmem:[%s4 + $0x44] sm:$0xf]
        %v5141 = vld [vmem:[%s4 + $0x48] sm:$0xf]
        %v5142 = vld [vmem:[%s4 + $0x4c] sm:$0xf]
        %v5143 = vld [vmem:[%s4 + $0x50] sm:$0xf]
        %v5144 = vld [vmem:[%s4 + $0x54] sm:$0xf]
        %v5145 = vld [vmem:[%s4 + $0x58] sm:$0xf]
        %v5146 = vld [vmem:[%s4 + $0x5c] sm:$0xf]
        %v5147 = vld [vmem:[%s4 + $0x60] sm:$0xf]
        %v5148 = vld [vmem:[%s4 + $0x64] sm:$0xf]
        %v5149 = vld [vmem:[%s4 + $0x68] sm:$0xf]
        %v5150 = vld [vmem:[%s4 + $0x6c] sm:$0xf]
        %v5151 = vld [vmem:[%s4 + $0x70] sm:$0xf]
        %v5152 = vld [vmem:[%s4 + $0x74] sm:$0xf]
        %v5153 = vld [vmem:[%s4 + $0x78] sm:$0xf]
        %v5154 = vld [vmem:[%s4 + $0x7c] sm:$0xf]
        %v5155 = vld [vmem:[%s4 + $0x80] sm:$0xf]
        %v5156 = vld [vmem:[%s4 + $0x84] sm:$0xf]
        %v5157 = vld [vmem:[%s4 + $0x88] sm:$0xf]
        %v5158 = vld [vmem:[%s4 + $0x8c] sm:$0xf]
        %v5195 = vunpack.c.l.b16 %v5123
        %v5196 = vunpack.c.l.b16 %v5124
        %v5197 = vunpack.c.l.b16 %v5125
        %v5198 = vunpack.c.l.b16 %v5126
        %v5199 = vunpack.c.l.b16 %v5127
        %v5200 = vunpack.c.l.b16 %v5128
        %v5201 = vunpack.c.l.b16 %v5129
        %v5202 = vunpack.c.l.b16 %v5130
        %v5203 = vunpack.c.l.b16 %v5131
        %v5204 = vunpack.c.l.b16 %v5132
        %v5205 = vunpack.c.l.b16 %v5133
        %v5206 = vunpack.c.l.b16 %v5134
        %v5207 = vunpack.c.l.b16 %v5135
        %v5208 = vunpack.c.l.b16 %v5136
        %v5209 = vunpack.c.l.b16 %v5137
        %v5210 = vunpack.c.l.b16 %v5138
        %v5211 = vunpack.c.l.b16 %v5139
        %v5212 = vunpack.c.l.b16 %v5140
        %v5213 = vunpack.c.l.b16 %v5141
        %v5214 = vunpack.c.l.b16 %v5142
        %v5215 = vunpack.c.l.b16 %v5143
        %v5216 = vunpack.c.l.b16 %v5144
        %v5217 = vunpack.c.l.b16 %v5145
        %v5218 = vunpack.c.l.b16 %v5146
        %v5219 = vunpack.c.l.b16 %v5147
        %v5220 = vunpack.c.l.b16 %v5148
        %v5221 = vunpack.c.l.b16 %v5149
        %v5222 = vunpack.c.l.b16 %v5150
        %v5223 = vunpack.c.l.b16 %v5151
        %v5224 = vunpack.c.l.b16 %v5152
        %v5225 = vunpack.c.l.b16 %v5153
        %v5226 = vunpack.c.l.b16 %v5154
        %v5227 = vunpack.c.l.b16 %v5155
        %v5228 = vunpack.c.l.b16 %v5156
        %v5229 = vunpack.c.l.b16 %v5157
        %v5230 = vunpack.c.l.b16 %v5158
        %v5231 = vpack.c.b16 %v5196, %v5195
        %v5232 = vpack.c.b16 %v5198, %v5197
        %v5233 = vpack.c.b16 %v5200, %v5199
        %v5234 = vpack.c.b16 %v5202, %v5201
        %v5235 = vpack.c.b16 %v5204, %v5203
        %v5236 = vpack.c.b16 %v5206, %v5205
        %v5237 = vpack.c.b16 %v5208, %v5207
        %v5238 = vpack.c.b16 %v5210, %v5209
        %v5239 = vpack.c.b16 %v5212, %v5211
        %v5240 = vpack.c.b16 %v5214, %v5213
        %v5241 = vpack.c.b16 %v5216, %v5215
        %v5242 = vpack.c.b16 %v5218, %v5217
        %v5243 = vpack.c.b16 %v5220, %v5219
        %v5244 = vpack.c.b16 %v5222, %v5221
        %v5245 = vpack.c.b16 %v5224, %v5223
        %v5246 = vpack.c.b16 %v5226, %v5225
        %v5247 = vpack.c.b16 %v5228, %v5227
        %v5248 = vpack.c.b16 %v5230, %v5229
        %v5268 = vsel %vm951, %v5101, 0
        %v5271 = vsel %vm951, %v5104, 0
        %v5274 = vsel %vm951, %v5107, 0
        %v5277 = vsel %vm951, %v5110, 0
        %v5280 = vsel %vm951, %v5113, 0
        %v5283 = vsel %vm951, %v5116, 0
        %v5286 = vsel %vm951, %v5119, 0
        %v5289 = vsel %vm951, %v5122, 0
        %5291 = vmatprep.subr.bf16.mxu0 0
        %5292 = vmatpush1.bf16.msra.mxu0 %v5231
        %5293 = vmatprep.subr.bf16.mxu0 0
        %5294 = vmatpush1.bf16.msra.mxu0 %v5232
        %5295 = vmatprep.subr.bf16.mxu0 0
        %5296 = vmatpush1.bf16.msra.mxu0 %v5233
        %5297 = vmatprep.subr.bf16.mxu0 0
        %5298 = vmatpush1.bf16.msra.mxu0 %v5234
        %5299 = vmatprep.subr.bf16.mxu0 0
        %5300 = vmatpush1.bf16.msra.mxu0 %v5235
        %5301 = vmatprep.subr.bf16.mxu0 0
        %5302 = vmatpush1.bf16.msra.mxu0 %v5236
        %5303 = vmatprep.subr.bf16.mxu0 0
        %5304 = vmatpush1.bf16.msra.mxu0 %v5237
        %5305 = vmatprep.subr.bf16.mxu0 0
        %5306 = vmatpush1.bf16.msra.mxu0 %v5238
        %5307 = vmatprep.subr.bf16.mxu0 0
        %5308 = vmatpush1.bf16.msra.mxu0 %v5239
        %5309 = vmatprep.subr.bf16.mxu0 0
        %5310 = vmatpush1.bf16.msra.mxu0 %v5240
        %5311 = vmatprep.subr.bf16.mxu0 0
        %5312 = vmatpush1.bf16.msra.mxu0 %v5241
        %5313 = vmatprep.subr.bf16.mxu0 0
        %5314 = vmatpush1.bf16.msra.mxu0 %v5242
        %5315 = vmatprep.subr.bf16.mxu0 0
        %5316 = vmatpush1.bf16.msra.mxu0 %v5243
        %5317 = vmatprep.subr.bf16.mxu0 0
        %5318 = vmatpush1.bf16.msra.mxu0 %v5244
        %5319 = vmatprep.subr.bf16.mxu0 0
        %5320 = vmatpush1.bf16.msra.mxu0 %v5245
        %5321 = vmatprep.subr.bf16.mxu0 0
        %5322 = vmatpush1.bf16.msra.mxu0 %v5246
        %5323 = vmatprep.mubr.bf16.mxu0 %v5100
        %5324 = vmatmul.mubr.bf16.gmra.mrb[0].mxu0 %v5099
        %v5325 = vpop.f32.mrb[0].mxu0
        %v5326 = vadd.f32 0.0, %v5325
        %v5327 = vpop.f32.mrb[0].mxu0
        %v5328 = vpop.f32.mrb[0].mxu0
        %v5329 = vadd.f32 0.0, %v5328
        %v5330 = vpop.f32.mrb[0].mxu0
        %5331 = vmatprep.mubr.bf16.mxu0 %v5103
        %5332 = vmatmul.mubr.bf16.gmra.mrb[0].mxu0 %v5102
        %v5333 = vpop.f32.mrb[0].mxu0
        %v5334 = vadd.f32 0.0, %v5333
        %v5335 = vpop.f32.mrb[0].mxu0
        %v5336 = vpop.f32.mrb[0].mxu0
        %v5337 = vadd.f32 0.0, %v5336
        %v5338 = vpop.f32.mrb[0].mxu0
        %5339 = vmatprep.mubr.bf16.mxu0 %v5106
        %5340 = vmatmul.mubr.bf16.gmra.mrb[0].mxu0 %v5105
        %v5341 = vpop.f32.mrb[0].mxu0
        %v5342 = vadd.f32 0.0, %v5341
        %v5343 = vpop.f32.mrb[0].mxu0
        %v5344 = vpop.f32.mrb[0].mxu0
        %v5345 = vadd.f32 0.0, %v5344
        %v5346 = vpop.f32.mrb[0].mxu0
        %5347 = vmatprep.mubr.bf16.mxu0 %v5109
        %5348 = vmatmul.mubr.bf16.gmra.mrb[0].mxu0 %v5108
        %v5349 = vpop.f32.mrb[0].mxu0
        %v5350 = vadd.f32 0.0, %v5349
        %v5351 = vpop.f32.mrb[0].mxu0
        %v5352 = vpop.f32.mrb[0].mxu0
        %v5353 = vadd.f32 0.0, %v5352
        %v5354 = vpop.f32.mrb[0].mxu0
        %5355 = vmatprep.mubr.bf16.mxu0 %v5112
        %5356 = vmatmul.mubr.bf16.gmra.mrb[0].mxu0 %v5111
        %v5357 = vpop.f32.mrb[0].mxu0
        %v5358 = vadd.f32 0.0, %v5357
        %v5359 = vpop.f32.mrb[0].mxu0
        %v5360 = vpop.f32.mrb[0].mxu0
        %v5361 = vadd.f32 0.0, %v5360
        %v5362 = vpop.f32.mrb[0].mxu0
        %5363 = vmatprep.mubr.bf16.mxu0 %v5115
        %5364 = vmatmul.mubr.bf16.gmra.mrb[0].mxu0 %v5114
        %v5365 = vpop.f32.mrb[0].mxu0
        %v5366 = vadd.f32 0.0, %v5365
        %v5367 = vpop.f32.mrb[0].mxu0
        %v5368 = vpop.f32.mrb[0].mxu0
        %v5369 = vadd.f32 0.0, %v5368
        %v5370 = vpop.f32.mrb[0].mxu0
        %5371 = vmatprep.mubr.bf16.mxu0 %v5118
        %5372 = vmatmul.mubr.bf16.gmra.mrb[0].mxu0 %v5117
        %v5373 = vpop.f32.mrb[0].mxu0
        %v5374 = vadd.f32 0.0, %v5373
        %v5375 = vpop.f32.mrb[0].mxu0
        %v5376 = vpop.f32.mrb[0].mxu0
        %v5377 = vadd.f32 0.0, %v5376
        %v5378 = vpop.f32.mrb[0].mxu0
        %5379 = vmatprep.mubr.bf16.mxu0 %v5121
        %5380 = vmatmul.mubr.bf16.gmra.mrb[0].mxu0 %v5120
        %v5381 = vpop.f32.mrb[0].mxu0
        %v5382 = vadd.f32 0.0, %v5381
        %v5383 = vpop.f32.mrb[0].mxu0
        %v5384 = vpop.f32.mrb[0].mxu0
        %v5385 = vadd.f32 0.0, %v5384
        %v5386 = vpop.f32.mrb[0].mxu0
        %5387 = vdwg.mxu0
        %5388 = vmatprep.subr.bf16.mxu0 0
        %5389 = vmatpush1.bf16.msra.mxu0 %v5247
        %5390 = vmatprep.subr.bf16.mxu0 0
        %5391 = vmatpush1.bf16.msra.mxu0 %v5248
        %5392 = vmatprep.subr.bf16.mxu0 0
        %5393 = vmatpush1.bf16.msra.mxu0 0
        %5394 = vmatprep.subr.bf16.mxu0 0
        %5395 = vmatpush1.bf16.msra.mxu0 0
        %5396 = vmatprep.subr.bf16.mxu0 0
        %5397 = vmatpush1.bf16.msra.mxu0 0
        %5398 = vmatprep.subr.bf16.mxu0 0
        %5399 = vmatpush1.bf16.msra.mxu0 0
        %5400 = vmatprep.subr.bf16.mxu0 0
        %5401 = vmatpush1.bf16.msra.mxu0 0
        %5402 = vmatprep.subr.bf16.mxu0 0
        %5403 = vmatpush1.bf16.msra.mxu0 0
        %5404 = vmatprep.subr.bf16.mxu0 0
        %5405 = vmatpush1.bf16.msra.mxu0 0
        %5406 = vmatprep.subr.bf16.mxu0 0
        %5407 = vmatpush1.bf16.msra.mxu0 0
        %5408 = vmatprep.subr.bf16.mxu0 0
        %5409 = vmatpush1.bf16.msra.mxu0 0
        %5410 = vmatprep.subr.bf16.mxu0 0
        %5411 = vmatpush1.bf16.msra.mxu0 0
        %5412 = vmatprep.subr.bf16.mxu0 0
        %5413 = vmatpush1.bf16.msra.mxu0 0
        %5414 = vmatprep.subr.bf16.mxu0 0
        %5415 = vmatpush1.bf16.msra.mxu0 0
        %5416 = vmatprep.subr.bf16.mxu0 0
        %5417 = vmatpush1.bf16.msra.mxu0 0
        %5418 = vmatprep.subr.bf16.mxu0 0
        %5419 = vmatpush1.bf16.msra.mxu0 0
        %5420 = vmatprep.mubr.bf16.mxu0 0
        %5421 = vmatmul.mubr.bf16.gmra.mrb[0].mxu0 %v5268
        %v5422 = vpop.f32.mrb[0].mxu0
        %v5423 = vadd.f32 %v5326, %v5422
        %v5424 = vpop.f32.mrb[0].mxu0
        %v5425 = vpop.f32.mrb[0].mxu0
        %v5426 = vadd.f32 %v5329, %v5425
        %v5427 = vpop.f32.mrb[0].mxu0
        %5428 = vmatprep.mubr.bf16.mxu0 0
        %5429 = vmatmul.mubr.bf16.gmra.mrb[0].mxu0 %v5271
        %v5430 = vpop.f32.mrb[0].mxu0
        %v5431 = vadd.f32 %v5334, %v5430
        %v5432 = vpop.f32.mrb[0].mxu0
        %v5433 = vpop.f32.mrb[0].mxu0
        %v5434 = vadd.f32 %v5337, %v5433
        %v5435 = vpop.f32.mrb[0].mxu0
        %5436 = vmatprep.mubr.bf16.mxu0 0
        %5437 = vmatmul.mubr.bf16.gmra.mrb[0].mxu0 %v5274
        %v5438 = vpop.f32.mrb[0].mxu0
        %v5439 = vadd.f32 %v5342, %v5438
        %v5440 = vpop.f32.mrb[0].mxu0
        %v5441 = vpop.f32.mrb[0].mxu0
        %v5442 = vadd.f32 %v5345, %v5441
        %v5443 = vpop.f32.mrb[0].mxu0
        %5444 = vmatprep.mubr.bf16.mxu0 0
        %5445 = vmatmul.mubr.bf16.gmra.mrb[0].mxu0 %v5277
        %v5446 = vpop.f32.mrb[0].mxu0
        %v5447 = vadd.f32 %v5350, %v5446
        %v5448 = vpop.f32.mrb[0].mxu0
        %v5449 = vpop.f32.mrb[0].mxu0
        %v5450 = vadd.f32 %v5353, %v5449
        %v5451 = vpop.f32.mrb[0].mxu0
        %5452 = vmatprep.mubr.bf16.mxu0 0
        %5453 = vmatmul.mubr.bf16.gmra.mrb[0].mxu0 %v5280
        %v5454 = vpop.f32.mrb[0].mxu0
        %v5455 = vadd.f32 %v5358, %v5454
        %v5456 = vpop.f32.mrb[0].mxu0
        %v5457 = vpop.f32.mrb[0].mxu0
        %v5458 = vadd.f32 %v5361, %v5457
        %v5459 = vpop.f32.mrb[0].mxu0
        %5460 = vmatprep.mubr.bf16.mxu0 0
        %5461 = vmatmul.mubr.bf16.gmra.mrb[0].mxu0 %v5283
        %v5462 = vpop.f32.mrb[0].mxu0
        %v5463 = vadd.f32 %v5366, %v5462
        %v5464 = vpop.f32.mrb[0].mxu0
        %v5465 = vpop.f32.mrb[0].mxu0
        %v5466 = vadd.f32 %v5369, %v5465
        %v5467 = vpop.f32.mrb[0].mxu0
        %5468 = vmatprep.mubr.bf16.mxu0 0
        %5469 = vmatmul.mubr.bf16.gmra.mrb[0].mxu0 %v5286
        %v5470 = vpop.f32.mrb[0].mxu0
        %v5471 = vadd.f32 %v5374, %v5470
        %v5472 = vpop.f32.mrb[0].mxu0
        %v5473 = vpop.f32.mrb[0].mxu0
        %v5474 = vadd.f32 %v5377, %v5473
        %v5475 = vpop.f32.mrb[0].mxu0
        %5476 = vmatprep.mubr.bf16.mxu0 0
        %5477 = vmatmul.mubr.bf16.gmra.mrb[0].mxu0 %v5289
        %v5478 = vpop.f32.mrb[0].mxu0
        %v5479 = vadd.f32 %v5382, %v5478
        %v5480 = vpop.f32.mrb[0].mxu0
        %v5481 = vpop.f32.mrb[0].mxu0
        %v5482 = vadd.f32 %v5385, %v5481
        %v5483 = vpop.f32.mrb[0].mxu0
        %5484 = vdwg.mxu0
        %5485 = vst [vmem:[%s218] sm:$0xff] %v5423
        %5486 = vst [vmem:[%s218 + $0x8] sm:$0xff] %v5426
        %5487 = vst [vmem:[%s218 + $0x10] sm:$0xff] %v5431
        %5488 = vst [vmem:[%s218 + $0x18] sm:$0xff] %v5434
        %5489 = vst [vmem:[%s218 + $0x20] sm:$0xff] %v5439
        %5490 = vst [vmem:[%s218 + $0x28] sm:$0xff] %v5442
        %5491 = vst [vmem:[%s218 + $0x30] sm:$0xff] %v5447
        %5492 = vst [vmem:[%s218 + $0x38] sm:$0xff] %v5450
        %5493 = vst [vmem:[%s218 + $0x40] sm:$0xff] %v5455
        %5494 = vst [vmem:[%s218 + $0x48] sm:$0xff] %v5458
        %5495 = vst [vmem:[%s218 + $0x50] sm:$0xff] %v5463
        %5496 = vst [vmem:[%s218 + $0x58] sm:$0xff] %v5466
        %5497 = vst [vmem:[%s218 + $0x60] sm:$0xff] %v5471
        %5498 = vst [vmem:[%s218 + $0x68] sm:$0xff] %v5474
        %5499 = vst [vmem:[%s218 + $0x70] sm:$0xff] %v5479
        %5500 = vst [vmem:[%s218 + $0x78] sm:$0xff] %v5482
        %s5501 = sand.u32 %s137, 1
        %s5502 = scalar_lea.sflag [#allocation3], %s5501
        %s5503 = sand.u32 %s137, 1
        %s5504 = smul.addr %s5503, 128
        %s5505 = scalar_lea.vmem [#allocation2], %s5504
        // Predicated region
        $region41: #{tpu_custom_call.1} parent=39 // pred_check
          %p5506 = pneg %p147
        $region42: #{tpu_custom_call.1} parent=39 // pred_check_branch
          %5508 = sbr.rel (%p5506) target = $region44
        $region43: #{tpu_custom_call.1} parent=39 // pred_region
          %s5509 = smul.u32 16, %s19
          %s5511 = ssub.s32 2048, 2048
          %5512 = vsyncadd %s5502, %s5511
          %s5513 = smul.addr %s5509, 128
          %s5514 = scalar_lea.hbm %s5, %s5513
          %s5515 = sshll.u32 %s5505, 4
          %s5516 = int_to_ptr.vmem [resolvable:$true] %s5515
          %5521 = dma.vmem_to_hbm [thread:$0]  %s5516, 2048, %s5514, %s5502, 128, 128, 8
        $region44: #{tpu_custom_call.1} parent=39 // pred_fallthru
          _
      $region40: #{tpu_custom_call.1} parent=5 // pred_fallthru
        _
      %p5522 = scmp.le.s32.totalorder 2, %s14
      // Predicated region
      $region45: #{tpu_custom_call.1} parent=5 // pred_check
        %p5523 = pneg %p5522
      $region46: #{tpu_custom_call.1} parent=5 // pred_check_branch
        %5525 = sbr.rel (%p5523) target = $region48
      $region47: #{tpu_custom_call.1} parent=5 // pred_region
        %s5526 = ssub.s32 %s14, 2
        // Predicated region
        $region49: #{tpu_custom_call.1} parent=47 // pred_check
          %p5527 = pneg %p153
        $region50: #{tpu_custom_call.1} parent=47 // pred_check_branch
          %5529 = sbr.rel (%p5527) target = $region52
        $region51: #{tpu_custom_call.1} parent=47 // pred_region
          %s5530 = sand.u32 %s138, 1
          %s5531 = scalar_lea.sflag [#allocation3], %s5530
          %s5532 = sand.u32 %s138, 1
          %s5533 = smul.addr %s5532, 128
          %s5534 = scalar_lea.vmem [#allocation2], %s5533
          %5535 = dma.done %s5531, 2048
        $region52: #{tpu_custom_call.1} parent=47 // pred_fallthru
          _
      $region48: #{tpu_custom_call.1} parent=5 // pred_fallthru
        _
    $region6: #{tpu_custom_call.1} parent=1 // loop_footer
      %s18 = sadd.s32 1, %s14
    $region7: #{tpu_custom_call.1} parent=1 // loop_footer_branch
      %13 = sbr.rel target = $region3
    $region8: #{tpu_custom_call.1} parent=1 // loop_exit
      _
    %5536 = vsyncpa [#allocation3], 1
    %s5537 = scalar_lea.sflag [#allocation3], 1
    %5538 = vsyncpa %s5537, 1

</llo_original>
